<compile_context>
chip_gen: v7x
topology: tpu7x:2x2x1
jax: 0.10.0
libtpu: 0.0.40
codegen_flags: <defaults>
</compile_context>

<pallas_src>
import functools

import jax
import jax.numpy as jnp
from jax.experimental import pallas as pl
from jax.experimental.pallas import tpu as pltpu

HIDDEN = 8
NUM_NETS = 11
BN_EPS = 0.8          # nn.BatchNorm1d(out_feat, 0.8) -> eps = 0.8
LEAKY_SLOPE = 0.2
FEAT_ROWS = NUM_NETS * HIDDEN   # 88 packed feature rows
BANK_ROWS = 16                  # ones row + 10 generated variables (+ pad)

# Net order (== output column order of the final torch.cat).
NET_NAMES = ("age", "workclass", "edu_level", "marital_status", "occupation",
             "relationship", "race", "sex", "hours_per_week", "native_country",
             "income")
EXTRA_IN = {"age": 0, "workclass": 4, "edu_level": 5, "marital_status": 4,
            "occupation": 5, "relationship": 5, "race": 0, "sex": 0,
            "hours_per_week": 6, "native_country": 0, "income": 10}
# Noise-slot order of input.transpose(0, 1) (the `name` list in forward()).
Z_NAMES = ("race", "age", "sex", "native_country", "marital_status",
           "edu_level", "occupation", "hours_per_week", "workclass",
           "relationship", "income")

_NET_IDX = {n: i for i, n in enumerate(NET_NAMES)}
_Z_IDX = {n: i for i, n in enumerate(Z_NAMES)}

# Conditioning columns of each generated variable, in the exact torch.cat
# order of forward().
COND = {
    "age": (), "race": (), "sex": (), "native_country": (),
    "marital_status": ("race", "age", "sex", "native_country"),
    "edu_level": ("race", "age", "sex", "native_country", "marital_status"),
    "occupation": ("race", "age", "sex", "marital_status", "edu_level"),
    "hours_per_week": ("race", "age", "sex", "native_country",
                       "marital_status", "edu_level"),
    "workclass": ("age", "marital_status", "edu_level", "native_country"),
    "relationship": ("age", "sex", "native_country", "marital_status",
                     "edu_level"),
    "income": ("race", "age", "sex", "native_country", "marital_status",
               "edu_level", "occupation", "hours_per_week", "workclass",
               "relationship"),
}

# Conditioning-bank row order (bank row 0 is the constant-ones bias row,
# rows 1..10 are the generated variables in compute order).
BANK_ORDER = ("sex", "age", "race", "native_country", "marital_status",
              "edu_level", "occupation", "hours_per_week", "workclass",
              "relationship")

# (output variable, generator net) per packed unit; every feature-row slab
# uses UNITS order x HIDDEN rows:
#   rows  0-31: level-0 pack (sex<-race_net, age, race<-sex_net, nc)
#   rows 32-63: level-3 pack (occupation, hours, workclass, relationship)
#   rows 64-71: marital_status, 72-79: edu_level, 80-87: income
UNITS = (("sex", "race"), ("age", "age"), ("race", "sex"),
         ("native_country", "native_country"),
         ("occupation", "occupation"), ("hours_per_week", "hours_per_week"),
         ("workclass", "workclass"), ("relationship", "relationship"),
         ("marital_status", "marital_status"), ("edu_level", "edu_level"),
         ("income", "income"))


def _leaky(x):
  # max(x, 0.2*x) == LeakyReLU(0.2) for slope < 1; 2 VPU passes instead of 3.
  return jnp.maximum(x, LEAKY_SLOPE * x)


# =============================================================================
# Pallas kernel
# =============================================================================
def _cfgan_kernel(xf_ref, w0n_ref, w0cb_ref, wh_ref, bn_ref, b5_ref,
                  out_ref, bank):
  """All activations are (features, B): batch on the lane axis.

  bank: (16, B) VMEM scratch. Row 0 = 1.0 (bias row), rows 1..10 hold the
  generated variables in BANK_ORDER; each stage's bias + conditioning is one
  (P, k) @ (k, B) MXU matmul against a contiguous bank prefix.
  """
  f32 = jnp.float32
  B = out_ref.shape[1]
  bank[0:1, :] = jnp.ones((1, B), f32)

  # All stages' first-layer noise projections in one lane-dense MXU matmul.
  hz_all = jnp.dot(w0n_ref[...], xf_ref[...], preferred_element_type=f32)

  def stage(r0, P, wh0, nout, b5r0, ncond):
    rows = slice(r0, r0 + P)
    h = hz_all[r0:r0 + P]                              # (P, B)
    if ncond == 0:
      h = h + w0cb_ref[rows, 0:1]                      # first-layer bias only
    else:
      # bias + conditioning in one small MXU matmul (bank row 0 is ones).
      h = h + jnp.dot(w0cb_ref[rows, 0:ncond + 1], bank[0:ncond + 1, :],
                      preferred_element_type=f32)
    h = _leaky(h)
    # 4 x [Linear (pre-BN bias dropped: exactly cancelled by the mean
    # subtraction) -> BatchNorm1d(train-mode batch stats, eps=0.8) ->
    # LeakyReLU]. BN affine folded into one scale + one shift; one-pass
    # variance keeps the two lane reductions independent (eps=0.8 >> rounding).
    for l in range(4):
      w = wh_ref[wh0 + l * P:wh0 + (l + 1) * P, 0:P]
      h = jnp.dot(w, h, preferred_element_type=f32)
      mu = jnp.mean(h, axis=-1, keepdims=True)
      var = jnp.mean(h * h, axis=-1, keepdims=True) - mu * mu
      scale = bn_ref[rows, l:l + 1] * jax.lax.rsqrt(var + BN_EPS)
      shift = bn_ref[rows, 4 + l:5 + l] - mu * scale
      h = _leaky(h * scale + shift)
    # Final Linear(hidden, 1) per net (block columns of bn_ref) + Tanh.
    w5 = bn_ref[rows, 8:8 + nout]                      # (P, nout)
    out = jax.lax.dot_general(w5, h, (((0,), (0,)), ((), ())),
                              preferred_element_type=f32)
    return jnp.tanh(out + b5_ref[b5r0:b5r0 + nout, :])  # (nout, B)

  # -- level 0: sex / age / race / native_country (block-diagonal pack) ------
  out0 = stage(0, 32, 0, 4, 0, ncond=0)
  bank[1:5, :] = out0
  # -- marital_status (cond: sex, age, race, nc) ------------------------------
  ms = stage(64, 8, 256, 1, 8, ncond=4)
  bank[5:6, :] = ms
  # -- edu_level (cond: ... + marital_status) ---------------------------------
  edu = stage(72, 8, 288, 1, 9, ncond=5)
  bank[6:7, :] = edu
  # -- level 3: occupation / hours / workclass / relationship ----------------
  out3 = stage(32, 32, 128, 4, 4, ncond=6)
  bank[7:11, :] = out3
  # -- income (cond: all 10) ---------------------------------------------------
  inc = stage(80, 8, 320, 1, 10, ncond=10)

  # Write directly in the torch.cat (NET_NAMES) row order; lane-dense (11, B).
  out_ref[0:1, :] = out0[1:2, :]     # age
  out_ref[1:2, :] = out3[2:3, :]     # workclass
  out_ref[2:3, :] = edu              # edu_level
  out_ref[3:4, :] = ms               # marital_status
  out_ref[4:5, :] = out3[0:1, :]     # occupation
  out_ref[5:6, :] = out3[3:4, :]     # relationship
  out_ref[6:7, :] = out0[2:3, :]     # race
  out_ref[7:8, :] = out0[0:1, :]     # sex
  out_ref[8:9, :] = out3[1:2, :]     # hours_per_week
  out_ref[9:10, :] = out0[3:4, :]    # native_country
  out_ref[10:11, :] = inc            # income


# =============================================================================
# Parameter packing: coalesce all per-net weights into 5 slabs
# =============================================================================
def _pack_params(params, z_size, noise_dtype):
  """Slabs (feature rows packed in UNITS order x HIDDEN):
       w0n  (88, 11*z): first-layer noise weights (noise-slot zero-padded)
       w0cb (88, 16)   : col 0 = first-layer bias, cols 1-10 = cond (bank order)
       whs  (352, 32)  : hidden matrices (groups block-diag 32x32, singles 8x8)
       bn   (88, 16)   : cols 0-3 gamma, 4-7 beta, 8-11 final-projection cols
       b5v  (16, 1)    : final biases, one row per unit
  TODO(synk): in production this packing would be precomputed once; here it
  runs as tiny XLA ops inside the jitted wrapper.
  """
  f32 = jnp.float32
  H = HIDDEN
  zw = NUM_NETS * z_size
  w0, wh, b = params["w0"], params["wh"], params["b"]
  gamma, beta = params["gamma"], params["beta"]
  w5, b5 = params["w5"], params["b5"]

  w0n = jnp.zeros((FEAT_ROWS, zw), f32)
  w0cb = jnp.zeros((FEAT_ROWS, BANK_ROWS), f32)
  bn = jnp.zeros((FEAT_ROWS, 16), f32)
  b5v = jnp.zeros((16, 1), f32)
  whs = jnp.zeros((2 * 4 * 32 + 3 * 4 * H, 32), f32)

  for u, (ovar, net) in enumerate(UNITS):
    g = _NET_IDX[net]
    rows = slice(u * H, (u + 1) * H)
    # Noise-slot selection folded into the zero-padded (8, 11*z) weight block.
    s = _Z_IDX[ovar]
    w0n = w0n.at[rows, s * z_size:(s + 1) * z_size].set(w0[g, :z_size, :].T)
    w0cb = w0cb.at[rows, 0].set(b[g, 0, :])                # first-layer bias
    for m, cvar in enumerate(COND[ovar]):                  # conditioning cols
      w0cb = w0cb.at[rows, 1 + BANK_ORDER.index(cvar)].set(w0[g, z_size + m, :])
    for l in range(4):   # BN affine (pre-BN linear bias dropped: exact)
      bn = bn.at[rows, l].set(gamma[g, l, :])
      bn = bn.at[rows, 4 + l].set(beta[g, l, :])
    j = u % 4 if u < 8 else 0
    bn = bn.at[rows, 8 + j].set(w5[g, :, 0])               # final projection
    b5v = b5v.at[u, 0].set(b5[g, 0, 0])
    if u < 8:                                  # packed groups: block-diagonal
      p, jj = u // 4, u % 4
      for l in range(4):
        blk = (p * 4 + l) * 32
        whs = whs.at[blk + jj * H:blk + (jj + 1) * H,
                     jj * H:(jj + 1) * H].set(wh[g, l].T)
    else:                                      # singles: 8x8 in cols 0:8
      si = u - 8
      for l in range(4):
        blk = 256 + (si * 4 + l) * H
        whs = whs.at[blk:blk + H, 0:H].set(wh[g, l].T)

  return (w0n.astype(noise_dtype), w0cb, whs, bn, b5v)


@functools.partial(jax.jit, static_argnames=("z_size", "noise_dtype"))
def cfgan_forward(x, params, *, z_size, noise_dtype=jnp.float32):
  """x: (B, 11, z_size) -> (B, 11) float32 (the torch.cat output)."""
  B = x.shape[0]
  # Lane-dense noise: (11*z, B), batch on the lane axis (MXU-native RHS,
  # contiguous input DMA).  noise_dtype=jnp.bfloat16 halves the dominant VMEM
  # resident / startup DMA (f32 accumulation) -- most valuable on v7x's 64 MiB.
  xf = jnp.transpose(x, (1, 2, 0)).reshape(NUM_NETS * z_size, B)
  xf = xf.astype(noise_dtype)
  w0n, w0cb, whs, bn, b5v = _pack_params(params, z_size, noise_dtype)

  dsize = jnp.dtype(noise_dtype).itemsize
  # Explicit VMEM budget: noise + hz_all/activations/bank/out (~2 KB / batch
  # element in f32) + packed params; scales with B, capped at physical 128 MiB.
  vmem_limit = int(min(128 * 1024 * 1024,
                       max(32 * 1024 * 1024,
                           4 * 1024 * 1024 + (88 * dsize + 2048) * B)))
  flops = 2 * B * (FEAT_ROWS * NUM_NETS * z_size      # first-layer noise
                   + FEAT_ROWS * (NUM_NETS + 1)       # bias + conditioning
                   + 2 * 4 * 32 * 32                  # group hidden layers
                   + 3 * 4 * HIDDEN * HIDDEN          # single hidden layers
                   + FEAT_ROWS)                       # final projections
  cost = pl.CostEstimate(
      flops=int(flops),
      transcendentals=int(NUM_NETS * B),
      bytes_accessed=int((88 * dsize + NUM_NETS * 4) * B + 120 * 1024))

  vmem = lambda: pl.BlockSpec(memory_space=pltpu.MemorySpace.VMEM)
  out_k = pl.pallas_call(
      _cfgan_kernel,
      out_shape=jax.ShapeDtypeStruct((NUM_NETS, B), jnp.float32),
      in_specs=[vmem() for _ in range(6)],
      out_specs=vmem(),
      scratch_shapes=[pltpu.VMEM((BANK_ROWS, B), jnp.float32)],
      compiler_params=pltpu.CompilerParams(vmem_limit_bytes=vmem_limit),
      cost_estimate=cost,
  )(xf, w0n, w0cb, whs, bn, b5v)
  # Rows are already in torch.cat column order; just put batch back in front.
  # TODO(synk): dual-TensorCore split + batch-grid two-pass BN for batches
  # beyond full-VMEM residency (would change where BN statistics are reduced).
  return out_k.T


# =============================================================================
# Pure-JAX reference (direct port of the PyTorch forward, (B, feat) layout)
# =============================================================================
def _generator(x, w0, wh, b, gamma, beta, w5, b5, in_dim):
  h = jnp.dot(x, w0[:in_dim, :], preferred_element_type=jnp.float32) + b[0:1, :]
  h = _leaky(h)
  for l in range(4):
    h = jnp.dot(h, wh[l], preferred_element_type=jnp.float32) + b[l + 1:l + 2, :]
    mu = jnp.mean(h, axis=0, keepdims=True)
    var = jnp.mean(jnp.square(h - mu), axis=0, keepdims=True)
    h = (h - mu) * jax.lax.rsqrt(var + BN_EPS)
    h = h * gamma[l:l + 1, :] + beta[l:l + 1, :]
    h = _leaky(h)
  out = jnp.dot(h, w5, preferred_element_type=jnp.float32) + b5
  return jnp.tanh(out)  # (B, 1)


def _cfgan_math(z_all, w0_all, wh_all, b_all, gamma_all, beta_all, w5_all,
                b5_all, z_size):

  def Z(name):
    return z_all[_Z_IDX[name]]                      # (B, z_size)

  def run(net_name, x):
    g = _NET_IDX[net_name]
    return _generator(x, w0_all[g], wh_all[g], b_all[g], gamma_all[g],
                      beta_all[g], w5_all[g], b5_all[g],
                      z_size + EXTRA_IN[net_name])

  cat = lambda parts: jnp.concatenate(parts, axis=1)

  out = {}
  out["sex"] = run("race", Z("sex"))                # race/sex net swap
  out["age"] = run("age", Z("age"))
  out["race"] = run("sex", Z("race"))
  out["native_country"] = run("native_country", Z("native_country"))
  out["marital_status"] = run(
      "marital_status",
      cat([Z("marital_status"), out["race"], out["age"], out["sex"],
           out["native_country"]]))
  out["edu_level"] = run(
      "edu_level",
      cat([Z("edu_level"), out["race"], out["age"], out["sex"],
           out["native_country"], out["marital_status"]]))
  out["occupation"] = run(
      "occupation",
      cat([Z("occupation"), out["race"], out["age"], out["sex"],
           out["marital_status"], out["edu_level"]]))
  out["hours_per_week"] = run(
      "hours_per_week",
      cat([Z("hours_per_week"), out["race"], out["age"], out["sex"],
           out["native_country"], out["marital_status"], out["edu_level"]]))
  out["workclass"] = run(
      "workclass",
      cat([Z("workclass"), out["age"], out["marital_status"],
           out["edu_level"], out["native_country"]]))
  out["relationship"] = run(
      "relationship",
      cat([Z("relationship"), out["age"], out["sex"], out["native_country"],
           out["marital_status"], out["edu_level"]]))
  out["income"] = run(
      "income",
      cat([Z("income"), out["race"], out["age"], out["sex"],
           out["native_country"], out["marital_status"], out["edu_level"],
           out["occupation"], out["hours_per_week"], out["workclass"],
           out["relationship"]]))
  return cat([out[n] for n in NET_NAMES])           # (B, 11)


@functools.partial(jax.jit, static_argnames=("z_size",))
def cfgan_reference(x, params, *, z_size):
  zt = jnp.transpose(x, (1, 0, 2)).astype(jnp.float32)
  return _cfgan_math(zt, params["w0"], params["wh"], params["b"],
                     params["gamma"], params["beta"], params["w5"],
                     params["b5"], z_size)


def init_params(key, z_size):
  """Deterministic PyTorch-style init; first-layer weights zero-padded to
  (z_size + 10) input rows so all 11 nets stack into one array."""
  max_in = z_size + 10
  w0s, whs, bs, gs, bes, w5s, b5s = [], [], [], [], [], [], []
  for n in NET_NAMES:
    in_dim = z_size + EXTRA_IN[n]
    key, k0, k1, k2, k3, k4, k5 = jax.random.split(key, 7)
    bound0 = 1.0 / float(in_dim) ** 0.5
    boundh = 1.0 / float(HIDDEN) ** 0.5
    w0 = jnp.zeros((max_in, HIDDEN), jnp.float32).at[:in_dim].set(
        jax.random.uniform(k0, (in_dim, HIDDEN), jnp.float32, -bound0, bound0))
    wh = jax.random.uniform(k1, (4, HIDDEN, HIDDEN), jnp.float32, -boundh, boundh)
    b0 = jax.random.uniform(k2, (1, HIDDEN), jnp.float32, -bound0, bound0)
    bh = jax.random.uniform(k3, (4, HIDDEN), jnp.float32, -boundh, boundh)
    b = jnp.concatenate([b0, bh], axis=0)                    # (5, HIDDEN)
    gamma = jnp.ones((4, HIDDEN), jnp.float32)               # BN default init
    beta = jnp.zeros((4, HIDDEN), jnp.float32)
    w5 = jax.random.uniform(k4, (HIDDEN, 1), jnp.float32, -boundh, boundh)
    b5 = jax.random.uniform(k5, (1, 1), jnp.float32, -boundh, boundh)
    w0s.append(w0); whs.append(wh); bs.append(b); gs.append(gamma)
    bes.append(beta); w5s.append(w5); b5s.append(b5)
  stack = lambda xs: jnp.stack(xs, axis=0)
  return {"w0": stack(w0s), "wh": stack(whs), "b": stack(bs),
          "gamma": stack(gs), "beta": stack(bes), "w5": stack(w5s),
          "b5": stack(b5s)}


if __name__ == "__main__":
  B, Z_SIZE = 4, 8
  key = jax.random.PRNGKey(0)
  kx, kp = jax.random.split(key)
  x = jax.random.normal(kx, (B, NUM_NETS, Z_SIZE), jnp.float32)
  params = init_params(kp, Z_SIZE)

  out = jax.block_until_ready(cfgan_forward(x, params, z_size=Z_SIZE))
  ref = jax.block_until_ready(cfgan_reference(x, params, z_size=Z_SIZE))

  assert out.shape == (B, NUM_NETS) and out.dtype == jnp.float32
  if not bool(jnp.allclose(out, ref, atol=5e-2, rtol=5e-2)):
    raise AssertionError(
        "kernel mismatch vs reference, max abs diff = "
        f"{float(jnp.max(jnp.abs(out - ref)))}")

  # bf16-noise path (v7x VMEM-ceiling option): compile/run smoke test only.
  out_bf16 = jax.block_until_ready(
      cfgan_forward(x, params, z_size=Z_SIZE, noise_dtype=jnp.bfloat16))
  assert out_bf16.shape == (B, NUM_NETS)
  assert bool(jnp.all(jnp.isfinite(out_bf16)))

  print("KERNEL_OK")
</pallas_src>

<mosaic_0001>
module attributes {stable_mosaic.version = 11 : i64} {
  func.func @_cfgan_kernel(%arg0: memref<88x4xf32, #tpu.memory_space<vmem>>, %arg1: memref<88x88xf32, #tpu.memory_space<vmem>>, %arg2: memref<88x16xf32, #tpu.memory_space<vmem>>, %arg3: memref<352x32xf32, #tpu.memory_space<vmem>>, %arg4: memref<88x16xf32, #tpu.memory_space<vmem>>, %arg5: memref<16x1xf32, #tpu.memory_space<vmem>>, %arg6: memref<11x4xf32, #tpu.memory_space<vmem>>, %arg7: memref<16x4xf32, #tpu.memory_space<vmem>>) attributes {dimension_semantics = [], scalar_prefetch = 0 : i64, scratch_operands = 1 : i64, tpu.core_type = #tpu.core_type<tc>} {
    %cst = arith.constant 1.000000e+00 : f32
    %0 = vector.broadcast %cst : f32 to vector<1x4xf32>
    %c0 = arith.constant 0 : index
    %c0_0 = arith.constant 0 : index
    %1 = vector.load %arg7[%c0, %c0_0] : memref<16x4xf32, #tpu.memory_space<vmem>>, vector<1x4xf32>
    tpu.vector_store %arg7[%c0, %c0_0], %0 {strides = array<i32>} : memref<16x4xf32, #tpu.memory_space<vmem>>, vector<1x4xf32>,
    %c0_1 = arith.constant 0 : index
    %c0_2 = arith.constant 0 : index
    %2 = vector.load %arg1[%c0_1, %c0_2] : memref<88x88xf32, #tpu.memory_space<vmem>>, vector<88x88xf32>
    %c0_3 = arith.constant 0 : index
    %c0_4 = arith.constant 0 : index
    %3 = vector.load %arg0[%c0_3, %c0_4] : memref<88x4xf32, #tpu.memory_space<vmem>>, vector<88x4xf32>
    %cst_5 = arith.constant dense<0.000000e+00> : vector<88x4xf32>
    %4 = tpu.matmul %2, %3, %cst_5 {dimension_numbers = #tpu.dot_dimension_numbers<[1], [0], [0], [1], [0, 0, 1, 1], [], []>} : vector<88x88xf32>, vector<88x4xf32>, vector<88x4xf32> -> vector<88x4xf32>
    %5 = vector.extract_strided_slice %4 {offsets = [0, 0], sizes = [32, 4], strides = [1, 1]} : vector<88x4xf32> to vector<32x4xf32>
    %c0_6 = arith.constant 0 : index
    %c0_7 = arith.constant 0 : index
    %6 = vector.load %arg2[%c0_6, %c0_7] : memref<88x16xf32, #tpu.memory_space<vmem>>, vector<32x1xf32>
    %7 = vector.broadcast %6 : vector<32x1xf32> to vector<32x4xf32>
    %8 = arith.addf %5, %7 : vector<32x4xf32>
    %cst_8 = arith.constant 2.000000e-01 : f32
    %9 = vector.broadcast %cst_8 : f32 to vector<32x4xf32>
    %10 = arith.mulf %9, %8 : vector<32x4xf32>
    %11 = arith.maximumf %8, %10 : vector<32x4xf32>
    %c0_9 = arith.constant 0 : index
    %c0_10 = arith.constant 0 : index
    %12 = vector.load %arg3[%c0_9, %c0_10] : memref<352x32xf32, #tpu.memory_space<vmem>>, vector<32x32xf32>
    %cst_11 = arith.constant dense<0.000000e+00> : vector<32x4xf32>
    %13 = tpu.matmul %12, %11, %cst_11 {dimension_numbers = #tpu.dot_dimension_numbers<[1], [0], [0], [1], [0, 0, 1, 1], [], []>} : vector<32x32xf32>, vector<32x4xf32>, vector<32x4xf32> -> vector<32x4xf32>
    %cst_12 = arith.constant dense<0.000000e+00> : vector<32xf32>
    %14 = vector.multi_reduction <add>, %13, %cst_12 [1] : vector<32x4xf32> to vector<32xf32>
    %15 = vector.shape_cast %14 : vector<32xf32> to vector<32x1xf32>
    %cst_13 = arith.constant 4.000000e+00 : f32
    %16 = vector.broadcast %cst_13 : f32 to vector<32x1xf32>
    %17 = arith.divf %15, %16 : vector<32x1xf32>
    %18 = arith.mulf %13, %13 : vector<32x4xf32>
    %cst_14 = arith.constant dense<0.000000e+00> : vector<32xf32>
    %19 = vector.multi_reduction <add>, %18, %cst_14 [1] : vector<32x4xf32> to vector<32xf32>
    %20 = vector.shape_cast %19 : vector<32xf32> to vector<32x1xf32>
    %cst_15 = arith.constant 4.000000e+00 : f32
    %21 = vector.broadcast %cst_15 : f32 to vector<32x1xf32>
    %22 = arith.divf %20, %21 : vector<32x1xf32>
    %23 = arith.mulf %17, %17 : vector<32x1xf32>
    %24 = arith.subf %22, %23 : vector<32x1xf32>
    %c0_16 = arith.constant 0 : index
    %c0_17 = arith.constant 0 : index
    %25 = vector.load %arg4[%c0_16, %c0_17] : memref<88x16xf32, #tpu.memory_space<vmem>>, vector<32x1xf32>
    %cst_18 = arith.constant 8.000000e-01 : f32
    %26 = vector.broadcast %cst_18 : f32 to vector<32x1xf32>
    %27 = arith.addf %24, %26 : vector<32x1xf32>
    %28 = math.rsqrt %27 : vector<32x1xf32>
    %29 = arith.mulf %25, %28 : vector<32x1xf32>
    %c0_19 = arith.constant 0 : index
    %c4 = arith.constant 4 : index
    %30 = vector.load %arg4[%c0_19, %c4] : memref<88x16xf32, #tpu.memory_space<vmem>>, vector<32x1xf32>
    %31 = arith.mulf %17, %29 : vector<32x1xf32>
    %32 = arith.subf %30, %31 : vector<32x1xf32>
    %33 = vector.broadcast %29 : vector<32x1xf32> to vector<32x4xf32>
    %34 = arith.mulf %13, %33 : vector<32x4xf32>
    %35 = vector.broadcast %32 : vector<32x1xf32> to vector<32x4xf32>
    %36 = arith.addf %34, %35 : vector<32x4xf32>
    %cst_20 = arith.constant 2.000000e-01 : f32
    %37 = vector.broadcast %cst_20 : f32 to vector<32x4xf32>
    %38 = arith.mulf %37, %36 : vector<32x4xf32>
    %39 = arith.maximumf %36, %38 : vector<32x4xf32>
    %c32 = arith.constant 32 : index
    %c0_21 = arith.constant 0 : index
    %40 = vector.load %arg3[%c32, %c0_21] : memref<352x32xf32, #tpu.memory_space<vmem>>, vector<32x32xf32>
    %cst_22 = arith.constant dense<0.000000e+00> : vector<32x4xf32>
    %41 = tpu.matmul %40, %39, %cst_22 {dimension_numbers = #tpu.dot_dimension_numbers<[1], [0], [0], [1], [0, 0, 1, 1], [], []>} : vector<32x32xf32>, vector<32x4xf32>, vector<32x4xf32> -> vector<32x4xf32>
    %cst_23 = arith.constant dense<0.000000e+00> : vector<32xf32>
    %42 = vector.multi_reduction <add>, %41, %cst_23 [1] : vector<32x4xf32> to vector<32xf32>
    %43 = vector.shape_cast %42 : vector<32xf32> to vector<32x1xf32>
    %cst_24 = arith.constant 4.000000e+00 : f32
    %44 = vector.broadcast %cst_24 : f32 to vector<32x1xf32>
    %45 = arith.divf %43, %44 : vector<32x1xf32>
    %46 = arith.mulf %41, %41 : vector<32x4xf32>
    %cst_25 = arith.constant dense<0.000000e+00> : vector<32xf32>
    %47 = vector.multi_reduction <add>, %46, %cst_25 [1] : vector<32x4xf32> to vector<32xf32>
    %48 = vector.shape_cast %47 : vector<32xf32> to vector<32x1xf32>
    %cst_26 = arith.constant 4.000000e+00 : f32
    %49 = vector.broadcast %cst_26 : f32 to vector<32x1xf32>
    %50 = arith.divf %48, %49 : vector<32x1xf32>
    %51 = arith.mulf %45, %45 : vector<32x1xf32>
    %52 = arith.subf %50, %51 : vector<32x1xf32>
    %c0_27 = arith.constant 0 : index
    %c1 = arith.constant 1 : index
    %53 = vector.load %arg4[%c0_27, %c1] : memref<88x16xf32, #tpu.memory_space<vmem>>, vector<32x1xf32>
    %cst_28 = arith.constant 8.000000e-01 : f32
    %54 = vector.broadcast %cst_28 : f32 to vector<32x1xf32>
    %55 = arith.addf %52, %54 : vector<32x1xf32>
    %56 = math.rsqrt %55 : vector<32x1xf32>
    %57 = arith.mulf %53, %56 : vector<32x1xf32>
    %c0_29 = arith.constant 0 : index
    %c5 = arith.constant 5 : index
    %58 = vector.load %arg4[%c0_29, %c5] : memref<88x16xf32, #tpu.memory_space<vmem>>, vector<32x1xf32>
    %59 = arith.mulf %45, %57 : vector<32x1xf32>
    %60 = arith.subf %58, %59 : vector<32x1xf32>
    %61 = vector.broadcast %57 : vector<32x1xf32> to vector<32x4xf32>
    %62 = arith.mulf %41, %61 : vector<32x4xf32>
    %63 = vector.broadcast %60 : vector<32x1xf32> to vector<32x4xf32>
    %64 = arith.addf %62, %63 : vector<32x4xf32>
    %cst_30 = arith.constant 2.000000e-01 : f32
    %65 = vector.broadcast %cst_30 : f32 to vector<32x4xf32>
    %66 = arith.mulf %65, %64 : vector<32x4xf32>
    %67 = arith.maximumf %64, %66 : vector<32x4xf32>
    %c64 = arith.constant 64 : index
    %c0_31 = arith.constant 0 : index
    %68 = vector.load %arg3[%c64, %c0_31] : memref<352x32xf32, #tpu.memory_space<vmem>>, vector<32x32xf32>
    %cst_32 = arith.constant dense<0.000000e+00> : vector<32x4xf32>
    %69 = tpu.matmul %68, %67, %cst_32 {dimension_numbers = #tpu.dot_dimension_numbers<[1], [0], [0], [1], [0, 0, 1, 1], [], []>} : vector<32x32xf32>, vector<32x4xf32>, vector<32x4xf32> -> vector<32x4xf32>
    %cst_33 = arith.constant dense<0.000000e+00> : vector<32xf32>
    %70 = vector.multi_reduction <add>, %69, %cst_33 [1] : vector<32x4xf32> to vector<32xf32>
    %71 = vector.shape_cast %70 : vector<32xf32> to vector<32x1xf32>
    %cst_34 = arith.constant 4.000000e+00 : f32
    %72 = vector.broadcast %cst_34 : f32 to vector<32x1xf32>
    %73 = arith.divf %71, %72 : vector<32x1xf32>
    %74 = arith.mulf %69, %69 : vector<32x4xf32>
    %cst_35 = arith.constant dense<0.000000e+00> : vector<32xf32>
    %75 = vector.multi_reduction <add>, %74, %cst_35 [1] : vector<32x4xf32> to vector<32xf32>
    %76 = vector.shape_cast %75 : vector<32xf32> to vector<32x1xf32>
    %cst_36 = arith.constant 4.000000e+00 : f32
    %77 = vector.broadcast %cst_36 : f32 to vector<32x1xf32>
    %78 = arith.divf %76, %77 : vector<32x1xf32>
    %79 = arith.mulf %73, %73 : vector<32x1xf32>
    %80 = arith.subf %78, %79 : vector<32x1xf32>
    %c0_37 = arith.constant 0 : index
    %c2 = arith.constant 2 : index
    %81 = vector.load %arg4[%c0_37, %c2] : memref<88x16xf32, #tpu.memory_space<vmem>>, vector<32x1xf32>
    %cst_38 = arith.constant 8.000000e-01 : f32
    %82 = vector.broadcast %cst_38 : f32 to vector<32x1xf32>
    %83 = arith.addf %80, %82 : vector<32x1xf32>
    %84 = math.rsqrt %83 : vector<32x1xf32>
    %85 = arith.mulf %81, %84 : vector<32x1xf32>
    %c0_39 = arith.constant 0 : index
    %c6 = arith.constant 6 : index
    %86 = vector.load %arg4[%c0_39, %c6] : memref<88x16xf32, #tpu.memory_space<vmem>>, vector<32x1xf32>
    %87 = arith.mulf %73, %85 : vector<32x1xf32>
    %88 = arith.subf %86, %87 : vector<32x1xf32>
    %89 = vector.broadcast %85 : vector<32x1xf32> to vector<32x4xf32>
    %90 = arith.mulf %69, %89 : vector<32x4xf32>
    %91 = vector.broadcast %88 : vector<32x1xf32> to vector<32x4xf32>
    %92 = arith.addf %90, %91 : vector<32x4xf32>
    %cst_40 = arith.constant 2.000000e-01 : f32
    %93 = vector.broadcast %cst_40 : f32 to vector<32x4xf32>
    %94 = arith.mulf %93, %92 : vector<32x4xf32>
    %95 = arith.maximumf %92, %94 : vector<32x4xf32>
    %c96 = arith.constant 96 : index
    %c0_41 = arith.constant 0 : index
    %96 = vector.load %arg3[%c96, %c0_41] : memref<352x32xf32, #tpu.memory_space<vmem>>, vector<32x32xf32>
    %cst_42 = arith.constant dense<0.000000e+00> : vector<32x4xf32>
    %97 = tpu.matmul %96, %95, %cst_42 {dimension_numbers = #tpu.dot_dimension_numbers<[1], [0], [0], [1], [0, 0, 1, 1], [], []>} : vector<32x32xf32>, vector<32x4xf32>, vector<32x4xf32> -> vector<32x4xf32>
    %cst_43 = arith.constant dense<0.000000e+00> : vector<32xf32>
    %98 = vector.multi_reduction <add>, %97, %cst_43 [1] : vector<32x4xf32> to vector<32xf32>
    %99 = vector.shape_cast %98 : vector<32xf32> to vector<32x1xf32>
    %cst_44 = arith.constant 4.000000e+00 : f32
    %100 = vector.broadcast %cst_44 : f32 to vector<32x1xf32>
    %101 = arith.divf %99, %100 : vector<32x1xf32>
    %102 = arith.mulf %97, %97 : vector<32x4xf32>
    %cst_45 = arith.constant dense<0.000000e+00> : vector<32xf32>
    %103 = vector.multi_reduction <add>, %102, %cst_45 [1] : vector<32x4xf32> to vector<32xf32>
    %104 = vector.shape_cast %103 : vector<32xf32> to vector<32x1xf32>
    %cst_46 = arith.constant 4.000000e+00 : f32
    %105 = vector.broadcast %cst_46 : f32 to vector<32x1xf32>
    %106 = arith.divf %104, %105 : vector<32x1xf32>
    %107 = arith.mulf %101, %101 : vector<32x1xf32>
    %108 = arith.subf %106, %107 : vector<32x1xf32>
    %c0_47 = arith.constant 0 : index
    %c3 = arith.constant 3 : index
    %109 = vector.load %arg4[%c0_47, %c3] : memref<88x16xf32, #tpu.memory_space<vmem>>, vector<32x1xf32>
    %cst_48 = arith.constant 8.000000e-01 : f32
    %110 = vector.broadcast %cst_48 : f32 to vector<32x1xf32>
    %111 = arith.addf %108, %110 : vector<32x1xf32>
    %112 = math.rsqrt %111 : vector<32x1xf32>
    %113 = arith.mulf %109, %112 : vector<32x1xf32>
    %c0_49 = arith.constant 0 : index
    %c7 = arith.constant 7 : index
    %114 = vector.load %arg4[%c0_49, %c7] : memref<88x16xf32, #tpu.memory_space<vmem>>, vector<32x1xf32>
    %115 = arith.mulf %101, %113 : vector<32x1xf32>
    %116 = arith.subf %114, %115 : vector<32x1xf32>
    %117 = vector.broadcast %113 : vector<32x1xf32> to vector<32x4xf32>
    %118 = arith.mulf %97, %117 : vector<32x4xf32>
    %119 = vector.broadcast %116 : vector<32x1xf32> to vector<32x4xf32>
    %120 = arith.addf %118, %119 : vector<32x4xf32>
    %cst_50 = arith.constant 2.000000e-01 : f32
    %121 = vector.broadcast %cst_50 : f32 to vector<32x4xf32>
    %122 = arith.mulf %121, %120 : vector<32x4xf32>
    %123 = arith.maximumf %120, %122 : vector<32x4xf32>
    %c0_51 = arith.constant 0 : index
    %c8 = arith.constant 8 : index
    %124 = vector.load %arg4[%c0_51, %c8] : memref<88x16xf32, #tpu.memory_space<vmem>>, vector<32x4xf32>
    %cst_52 = arith.constant dense<0.000000e+00> : vector<4x4xf32>
    %125 = tpu.matmul %124, %123, %cst_52 {dimension_numbers = #tpu.dot_dimension_numbers<[0], [0], [1], [1], [0, 1, 1, 1], [], []>} : vector<32x4xf32>, vector<32x4xf32>, vector<4x4xf32> -> vector<4x4xf32>
    %c0_53 = arith.constant 0 : index
    %c0_54 = arith.constant 0 : index
    %126 = vector.load %arg5[%c0_53, %c0_54] : memref<16x1xf32, #tpu.memory_space<vmem>>, vector<4x1xf32>
    %127 = vector.broadcast %126 : vector<4x1xf32> to vector<4x4xf32>
    %128 = arith.addf %125, %127 : vector<4x4xf32>
    %129 = math.tanh %128 : vector<4x4xf32>
    %c1_55 = arith.constant 1 : index
    %c0_56 = arith.constant 0 : index
    %130 = vector.load %arg7[%c1_55, %c0_56] : memref<16x4xf32, #tpu.memory_space<vmem>>, vector<4x4xf32>
    tpu.vector_store %arg7[%c1_55, %c0_56], %129 {strides = array<i32>} : memref<16x4xf32, #tpu.memory_space<vmem>>, vector<4x4xf32>,
    %131 = vector.extract_strided_slice %4 {offsets = [64, 0], sizes = [8, 4], strides = [1, 1]} : vector<88x4xf32> to vector<8x4xf32>
    %c64_57 = arith.constant 64 : index
    %c0_58 = arith.constant 0 : index
    %132 = vector.load %arg2[%c64_57, %c0_58] : memref<88x16xf32, #tpu.memory_space<vmem>>, vector<8x5xf32>
    %c0_59 = arith.constant 0 : index
    %c0_60 = arith.constant 0 : index
    %133 = vector.load %arg7[%c0_59, %c0_60] : memref<16x4xf32, #tpu.memory_space<vmem>>, vector<5x4xf32>
    %cst_61 = arith.constant dense<0.000000e+00> : vector<8x4xf32>
    %134 = tpu.matmul %132, %133, %cst_61 {dimension_numbers = #tpu.dot_dimension_numbers<[1], [0], [0], [1], [0, 0, 1, 1], [], []>} : vector<8x5xf32>, vector<5x4xf32>, vector<8x4xf32> -> vector<8x4xf32>
    %135 = arith.addf %131, %134 : vector<8x4xf32>
    %cst_62 = arith.constant 2.000000e-01 : f32
    %136 = vector.broadcast %cst_62 : f32 to vector<8x4xf32>
    %137 = arith.mulf %136, %135 : vector<8x4xf32>
    %138 = arith.maximumf %135, %137 : vector<8x4xf32>
    %c256 = arith.constant 256 : index
    %c0_63 = arith.constant 0 : index
    %139 = vector.load %arg3[%c256, %c0_63] : memref<352x32xf32, #tpu.memory_space<vmem>>, vector<8x8xf32>
    %cst_64 = arith.constant dense<0.000000e+00> : vector<8x4xf32>
    %140 = tpu.matmul %139, %138, %cst_64 {dimension_numbers = #tpu.dot_dimension_numbers<[1], [0], [0], [1], [0, 0, 1, 1], [], []>} : vector<8x8xf32>, vector<8x4xf32>, vector<8x4xf32> -> vector<8x4xf32>
    %cst_65 = arith.constant dense<0.000000e+00> : vector<8xf32>
    %141 = vector.multi_reduction <add>, %140, %cst_65 [1] : vector<8x4xf32> to vector<8xf32>
    %142 = vector.shape_cast %141 : vector<8xf32> to vector<8x1xf32>
    %cst_66 = arith.constant 4.000000e+00 : f32
    %143 = vector.broadcast %cst_66 : f32 to vector<8x1xf32>
    %144 = arith.divf %142, %143 : vector<8x1xf32>
    %145 = arith.mulf %140, %140 : vector<8x4xf32>
    %cst_67 = arith.constant dense<0.000000e+00> : vector<8xf32>
    %146 = vector.multi_reduction <add>, %145, %cst_67 [1] : vector<8x4xf32> to vector<8xf32>
    %147 = vector.shape_cast %146 : vector<8xf32> to vector<8x1xf32>
    %cst_68 = arith.constant 4.000000e+00 : f32
    %148 = vector.broadcast %cst_68 : f32 to vector<8x1xf32>
    %149 = arith.divf %147, %148 : vector<8x1xf32>
    %150 = arith.mulf %144, %144 : vector<8x1xf32>
    %151 = arith.subf %149, %150 : vector<8x1xf32>
    %c64_69 = arith.constant 64 : index
    %c0_70 = arith.constant 0 : index
    %152 = vector.load %arg4[%c64_69, %c0_70] : memref<88x16xf32, #tpu.memory_space<vmem>>, vector<8x1xf32>
    %cst_71 = arith.constant 8.000000e-01 : f32
    %153 = vector.broadcast %cst_71 : f32 to vector<8x1xf32>
    %154 = arith.addf %151, %153 : vector<8x1xf32>
    %155 = math.rsqrt %154 : vector<8x1xf32>
    %156 = arith.mulf %152, %155 : vector<8x1xf32>
    %c64_72 = arith.constant 64 : index
    %c4_73 = arith.constant 4 : index
    %157 = vector.load %arg4[%c64_72, %c4_73] : memref<88x16xf32, #tpu.memory_space<vmem>>, vector<8x1xf32>
    %158 = arith.mulf %144, %156 : vector<8x1xf32>
    %159 = arith.subf %157, %158 : vector<8x1xf32>
    %160 = vector.broadcast %156 : vector<8x1xf32> to vector<8x4xf32>
    %161 = arith.mulf %140, %160 : vector<8x4xf32>
    %162 = vector.broadcast %159 : vector<8x1xf32> to vector<8x4xf32>
    %163 = arith.addf %161, %162 : vector<8x4xf32>
    %cst_74 = arith.constant 2.000000e-01 : f32
    %164 = vector.broadcast %cst_74 : f32 to vector<8x4xf32>
    %165 = arith.mulf %164, %163 : vector<8x4xf32>
    %166 = arith.maximumf %163, %165 : vector<8x4xf32>
    %c264 = arith.constant 264 : index
    %c0_75 = arith.constant 0 : index
    %167 = vector.load %arg3[%c264, %c0_75] : memref<352x32xf32, #tpu.memory_space<vmem>>, vector<8x8xf32>
    %cst_76 = arith.constant dense<0.000000e+00> : vector<8x4xf32>
    %168 = tpu.matmul %167, %166, %cst_76 {dimension_numbers = #tpu.dot_dimension_numbers<[1], [0], [0], [1], [0, 0, 1, 1], [], []>} : vector<8x8xf32>, vector<8x4xf32>, vector<8x4xf32> -> vector<8x4xf32>
    %cst_77 = arith.constant dense<0.000000e+00> : vector<8xf32>
    %169 = vector.multi_reduction <add>, %168, %cst_77 [1] : vector<8x4xf32> to vector<8xf32>
    %170 = vector.shape_cast %169 : vector<8xf32> to vector<8x1xf32>
    %cst_78 = arith.constant 4.000000e+00 : f32
    %171 = vector.broadcast %cst_78 : f32 to vector<8x1xf32>
    %172 = arith.divf %170, %171 : vector<8x1xf32>
    %173 = arith.mulf %168, %168 : vector<8x4xf32>
    %cst_79 = arith.constant dense<0.000000e+00> : vector<8xf32>
    %174 = vector.multi_reduction <add>, %173, %cst_79 [1] : vector<8x4xf32> to vector<8xf32>
    %175 = vector.shape_cast %174 : vector<8xf32> to vector<8x1xf32>
    %cst_80 = arith.constant 4.000000e+00 : f32
    %176 = vector.broadcast %cst_80 : f32 to vector<8x1xf32>
    %177 = arith.divf %175, %176 : vector<8x1xf32>
    %178 = arith.mulf %172, %172 : vector<8x1xf32>
    %179 = arith.subf %177, %178 : vector<8x1xf32>
    %c64_81 = arith.constant 64 : index
    %c1_82 = arith.constant 1 : index
    %180 = vector.load %arg4[%c64_81, %c1_82] : memref<88x16xf32, #tpu.memory_space<vmem>>, vector<8x1xf32>
    %cst_83 = arith.constant 8.000000e-01 : f32
    %181 = vector.broadcast %cst_83 : f32 to vector<8x1xf32>
    %182 = arith.addf %179, %181 : vector<8x1xf32>
    %183 = math.rsqrt %182 : vector<8x1xf32>
    %184 = arith.mulf %180, %183 : vector<8x1xf32>
    %c64_84 = arith.constant 64 : index
    %c5_85 = arith.constant 5 : index
    %185 = vector.load %arg4[%c64_84, %c5_85] : memref<88x16xf32, #tpu.memory_space<vmem>>, vector<8x1xf32>
    %186 = arith.mulf %172, %184 : vector<8x1xf32>
    %187 = arith.subf %185, %186 : vector<8x1xf32>
    %188 = vector.broadcast %184 : vector<8x1xf32> to vector<8x4xf32>
    %189 = arith.mulf %168, %188 : vector<8x4xf32>
    %190 = vector.broadcast %187 : vector<8x1xf32> to vector<8x4xf32>
    %191 = arith.addf %189, %190 : vector<8x4xf32>
    %cst_86 = arith.constant 2.000000e-01 : f32
    %192 = vector.broadcast %cst_86 : f32 to vector<8x4xf32>
    %193 = arith.mulf %192, %191 : vector<8x4xf32>
    %194 = arith.maximumf %191, %193 : vector<8x4xf32>
    %c272 = arith.constant 272 : index
    %c0_87 = arith.constant 0 : index
    %195 = vector.load %arg3[%c272, %c0_87] : memref<352x32xf32, #tpu.memory_space<vmem>>, vector<8x8xf32>
    %cst_88 = arith.constant dense<0.000000e+00> : vector<8x4xf32>
    %196 = tpu.matmul %195, %194, %cst_88 {dimension_numbers = #tpu.dot_dimension_numbers<[1], [0], [0], [1], [0, 0, 1, 1], [], []>} : vector<8x8xf32>, vector<8x4xf32>, vector<8x4xf32> -> vector<8x4xf32>
    %cst_89 = arith.constant dense<0.000000e+00> : vector<8xf32>
    %197 = vector.multi_reduction <add>, %196, %cst_89 [1] : vector<8x4xf32> to vector<8xf32>
    %198 = vector.shape_cast %197 : vector<8xf32> to vector<8x1xf32>
    %cst_90 = arith.constant 4.000000e+00 : f32
    %199 = vector.broadcast %cst_90 : f32 to vector<8x1xf32>
    %200 = arith.divf %198, %199 : vector<8x1xf32>
    %201 = arith.mulf %196, %196 : vector<8x4xf32>
    %cst_91 = arith.constant dense<0.000000e+00> : vector<8xf32>
    %202 = vector.multi_reduction <add>, %201, %cst_91 [1] : vector<8x4xf32> to vector<8xf32>
    %203 = vector.shape_cast %202 : vector<8xf32> to vector<8x1xf32>
    %cst_92 = arith.constant 4.000000e+00 : f32
    %204 = vector.broadcast %cst_92 : f32 to vector<8x1xf32>
    %205 = arith.divf %203, %204 : vector<8x1xf32>
    %206 = arith.mulf %200, %200 : vector<8x1xf32>
    %207 = arith.subf %205, %206 : vector<8x1xf32>
    %c64_93 = arith.constant 64 : index
    %c2_94 = arith.constant 2 : index
    %208 = vector.load %arg4[%c64_93, %c2_94] : memref<88x16xf32, #tpu.memory_space<vmem>>, vector<8x1xf32>
    %cst_95 = arith.constant 8.000000e-01 : f32
    %209 = vector.broadcast %cst_95 : f32 to vector<8x1xf32>
    %210 = arith.addf %207, %209 : vector<8x1xf32>
    %211 = math.rsqrt %210 : vector<8x1xf32>
    %212 = arith.mulf %208, %211 : vector<8x1xf32>
    %c64_96 = arith.constant 64 : index
    %c6_97 = arith.constant 6 : index
    %213 = vector.load %arg4[%c64_96, %c6_97] : memref<88x16xf32, #tpu.memory_space<vmem>>, vector<8x1xf32>
    %214 = arith.mulf %200, %212 : vector<8x1xf32>
    %215 = arith.subf %213, %214 : vector<8x1xf32>
    %216 = vector.broadcast %212 : vector<8x1xf32> to vector<8x4xf32>
    %217 = arith.mulf %196, %216 : vector<8x4xf32>
    %218 = vector.broadcast %215 : vector<8x1xf32> to vector<8x4xf32>
    %219 = arith.addf %217, %218 : vector<8x4xf32>
    %cst_98 = arith.constant 2.000000e-01 : f32
    %220 = vector.broadcast %cst_98 : f32 to vector<8x4xf32>
    %221 = arith.mulf %220, %219 : vector<8x4xf32>
    %222 = arith.maximumf %219, %221 : vector<8x4xf32>
    %c280 = arith.constant 280 : index
    %c0_99 = arith.constant 0 : index
    %223 = vector.load %arg3[%c280, %c0_99] : memref<352x32xf32, #tpu.memory_space<vmem>>, vector<8x8xf32>
    %cst_100 = arith.constant dense<0.000000e+00> : vector<8x4xf32>
    %224 = tpu.matmul %223, %222, %cst_100 {dimension_numbers = #tpu.dot_dimension_numbers<[1], [0], [0], [1], [0, 0, 1, 1], [], []>} : vector<8x8xf32>, vector<8x4xf32>, vector<8x4xf32> -> vector<8x4xf32>
    %cst_101 = arith.constant dense<0.000000e+00> : vector<8xf32>
    %225 = vector.multi_reduction <add>, %224, %cst_101 [1] : vector<8x4xf32> to vector<8xf32>
    %226 = vector.shape_cast %225 : vector<8xf32> to vector<8x1xf32>
    %cst_102 = arith.constant 4.000000e+00 : f32
    %227 = vector.broadcast %cst_102 : f32 to vector<8x1xf32>
    %228 = arith.divf %226, %227 : vector<8x1xf32>
    %229 = arith.mulf %224, %224 : vector<8x4xf32>
    %cst_103 = arith.constant dense<0.000000e+00> : vector<8xf32>
    %230 = vector.multi_reduction <add>, %229, %cst_103 [1] : vector<8x4xf32> to vector<8xf32>
    %231 = vector.shape_cast %230 : vector<8xf32> to vector<8x1xf32>
    %cst_104 = arith.constant 4.000000e+00 : f32
    %232 = vector.broadcast %cst_104 : f32 to vector<8x1xf32>
    %233 = arith.divf %231, %232 : vector<8x1xf32>
    %234 = arith.mulf %228, %228 : vector<8x1xf32>
    %235 = arith.subf %233, %234 : vector<8x1xf32>
    %c64_105 = arith.constant 64 : index
    %c3_106 = arith.constant 3 : index
    %236 = vector.load %arg4[%c64_105, %c3_106] : memref<88x16xf32, #tpu.memory_space<vmem>>, vector<8x1xf32>
    %cst_107 = arith.constant 8.000000e-01 : f32
    %237 = vector.broadcast %cst_107 : f32 to vector<8x1xf32>
    %238 = arith.addf %235, %237 : vector<8x1xf32>
    %239 = math.rsqrt %238 : vector<8x1xf32>
    %240 = arith.mulf %236, %239 : vector<8x1xf32>
    %c64_108 = arith.constant 64 : index
    %c7_109 = arith.constant 7 : index
    %241 = vector.load %arg4[%c64_108, %c7_109] : memref<88x16xf32, #tpu.memory_space<vmem>>, vector<8x1xf32>
    %242 = arith.mulf %228, %240 : vector<8x1xf32>
    %243 = arith.subf %241, %242 : vector<8x1xf32>
    %244 = vector.broadcast %240 : vector<8x1xf32> to vector<8x4xf32>
    %245 = arith.mulf %224, %244 : vector<8x4xf32>
    %246 = vector.broadcast %243 : vector<8x1xf32> to vector<8x4xf32>
    %247 = arith.addf %245, %246 : vector<8x4xf32>
    %cst_110 = arith.constant 2.000000e-01 : f32
    %248 = vector.broadcast %cst_110 : f32 to vector<8x4xf32>
    %249 = arith.mulf %248, %247 : vector<8x4xf32>
    %250 = arith.maximumf %247, %249 : vector<8x4xf32>
    %c64_111 = arith.constant 64 : index
    %c8_112 = arith.constant 8 : index
    %251 = vector.load %arg4[%c64_111, %c8_112] : memref<88x16xf32, #tpu.memory_space<vmem>>, vector<8x1xf32>
    %cst_113 = arith.constant dense<0.000000e+00> : vector<1x4xf32>
    %252 = tpu.matmul %251, %250, %cst_113 {dimension_numbers = #tpu.dot_dimension_numbers<[0], [0], [1], [1], [0, 1, 1, 1], [], []>} : vector<8x1xf32>, vector<8x4xf32>, vector<1x4xf32> -> vector<1x4xf32>
    %c8_114 = arith.constant 8 : index
    %c0_115 = arith.constant 0 : index
    %253 = vector.load %arg5[%c8_114, %c0_115] : memref<16x1xf32, #tpu.memory_space<vmem>>, vector<1x1xf32>
    %254 = vector.broadcast %253 : vector<1x1xf32> to vector<1x4xf32>
    %255 = arith.addf %252, %254 : vector<1x4xf32>
    %256 = math.tanh %255 : vector<1x4xf32>
    %c5_116 = arith.constant 5 : index
    %c0_117 = arith.constant 0 : index
    %257 = vector.load %arg7[%c5_116, %c0_117] : memref<16x4xf32, #tpu.memory_space<vmem>>, vector<1x4xf32>
    tpu.vector_store %arg7[%c5_116, %c0_117], %256 {strides = array<i32>} : memref<16x4xf32, #tpu.memory_space<vmem>>, vector<1x4xf32>,
    %258 = vector.extract_strided_slice %4 {offsets = [72, 0], sizes = [8, 4], strides = [1, 1]} : vector<88x4xf32> to vector<8x4xf32>
    %c72 = arith.constant 72 : index
    %c0_118 = arith.constant 0 : index
    %259 = vector.load %arg2[%c72, %c0_118] : memref<88x16xf32, #tpu.memory_space<vmem>>, vector<8x6xf32>
    %c0_119 = arith.constant 0 : index
    %c0_120 = arith.constant 0 : index
    %260 = vector.load %arg7[%c0_119, %c0_120] : memref<16x4xf32, #tpu.memory_space<vmem>>, vector<6x4xf32>
    %cst_121 = arith.constant dense<0.000000e+00> : vector<8x4xf32>
    %261 = tpu.matmul %259, %260, %cst_121 {dimension_numbers = #tpu.dot_dimension_numbers<[1], [0], [0], [1], [0, 0, 1, 1], [], []>} : vector<8x6xf32>, vector<6x4xf32>, vector<8x4xf32> -> vector<8x4xf32>
    %262 = arith.addf %258, %261 : vector<8x4xf32>
    %cst_122 = arith.constant 2.000000e-01 : f32
    %263 = vector.broadcast %cst_122 : f32 to vector<8x4xf32>
    %264 = arith.mulf %263, %262 : vector<8x4xf32>
    %265 = arith.maximumf %262, %264 : vector<8x4xf32>
    %c288 = arith.constant 288 : index
    %c0_123 = arith.constant 0 : index
    %266 = vector.load %arg3[%c288, %c0_123] : memref<352x32xf32, #tpu.memory_space<vmem>>, vector<8x8xf32>
    %cst_124 = arith.constant dense<0.000000e+00> : vector<8x4xf32>
    %267 = tpu.matmul %266, %265, %cst_124 {dimension_numbers = #tpu.dot_dimension_numbers<[1], [0], [0], [1], [0, 0, 1, 1], [], []>} : vector<8x8xf32>, vector<8x4xf32>, vector<8x4xf32> -> vector<8x4xf32>
    %cst_125 = arith.constant dense<0.000000e+00> : vector<8xf32>
    %268 = vector.multi_reduction <add>, %267, %cst_125 [1] : vector<8x4xf32> to vector<8xf32>
    %269 = vector.shape_cast %268 : vector<8xf32> to vector<8x1xf32>
    %cst_126 = arith.constant 4.000000e+00 : f32
    %270 = vector.broadcast %cst_126 : f32 to vector<8x1xf32>
    %271 = arith.divf %269, %270 : vector<8x1xf32>
    %272 = arith.mulf %267, %267 : vector<8x4xf32>
    %cst_127 = arith.constant dense<0.000000e+00> : vector<8xf32>
    %273 = vector.multi_reduction <add>, %272, %cst_127 [1] : vector<8x4xf32> to vector<8xf32>
    %274 = vector.shape_cast %273 : vector<8xf32> to vector<8x1xf32>
    %cst_128 = arith.constant 4.000000e+00 : f32
    %275 = vector.broadcast %cst_128 : f32 to vector<8x1xf32>
    %276 = arith.divf %274, %275 : vector<8x1xf32>
    %277 = arith.mulf %271, %271 : vector<8x1xf32>
    %278 = arith.subf %276, %277 : vector<8x1xf32>
    %c72_129 = arith.constant 72 : index
    %c0_130 = arith.constant 0 : index
    %279 = vector.load %arg4[%c72_129, %c0_130] : memref<88x16xf32, #tpu.memory_space<vmem>>, vector<8x1xf32>
    %cst_131 = arith.constant 8.000000e-01 : f32
    %280 = vector.broadcast %cst_131 : f32 to vector<8x1xf32>
    %281 = arith.addf %278, %280 : vector<8x1xf32>
    %282 = math.rsqrt %281 : vector<8x1xf32>
    %283 = arith.mulf %279, %282 : vector<8x1xf32>
    %c72_132 = arith.constant 72 : index
    %c4_133 = arith.constant 4 : index
    %284 = vector.load %arg4[%c72_132, %c4_133] : memref<88x16xf32, #tpu.memory_space<vmem>>, vector<8x1xf32>
    %285 = arith.mulf %271, %283 : vector<8x1xf32>
    %286 = arith.subf %284, %285 : vector<8x1xf32>
    %287 = vector.broadcast %283 : vector<8x1xf32> to vector<8x4xf32>
    %288 = arith.mulf %267, %287 : vector<8x4xf32>
    %289 = vector.broadcast %286 : vector<8x1xf32> to vector<8x4xf32>
    %290 = arith.addf %288, %289 : vector<8x4xf32>
    %cst_134 = arith.constant 2.000000e-01 : f32
    %291 = vector.broadcast %cst_134 : f32 to vector<8x4xf32>
    %292 = arith.mulf %291, %290 : vector<8x4xf32>
    %293 = arith.maximumf %290, %292 : vector<8x4xf32>
    %c296 = arith.constant 296 : index
    %c0_135 = arith.constant 0 : index
    %294 = vector.load %arg3[%c296, %c0_135] : memref<352x32xf32, #tpu.memory_space<vmem>>, vector<8x8xf32>
    %cst_136 = arith.constant dense<0.000000e+00> : vector<8x4xf32>
    %295 = tpu.matmul %294, %293, %cst_136 {dimension_numbers = #tpu.dot_dimension_numbers<[1], [0], [0], [1], [0, 0, 1, 1], [], []>} : vector<8x8xf32>, vector<8x4xf32>, vector<8x4xf32> -> vector<8x4xf32>
    %cst_137 = arith.constant dense<0.000000e+00> : vector<8xf32>
    %296 = vector.multi_reduction <add>, %295, %cst_137 [1] : vector<8x4xf32> to vector<8xf32>
    %297 = vector.shape_cast %296 : vector<8xf32> to vector<8x1xf32>
    %cst_138 = arith.constant 4.000000e+00 : f32
    %298 = vector.broadcast %cst_138 : f32 to vector<8x1xf32>
    %299 = arith.divf %297, %298 : vector<8x1xf32>
    %300 = arith.mulf %295, %295 : vector<8x4xf32>
    %cst_139 = arith.constant dense<0.000000e+00> : vector<8xf32>
    %301 = vector.multi_reduction <add>, %300, %cst_139 [1] : vector<8x4xf32> to vector<8xf32>
    %302 = vector.shape_cast %301 : vector<8xf32> to vector<8x1xf32>
    %cst_140 = arith.constant 4.000000e+00 : f32
    %303 = vector.broadcast %cst_140 : f32 to vector<8x1xf32>
    %304 = arith.divf %302, %303 : vector<8x1xf32>
    %305 = arith.mulf %299, %299 : vector<8x1xf32>
    %306 = arith.subf %304, %305 : vector<8x1xf32>
    %c72_141 = arith.constant 72 : index
    %c1_142 = arith.constant 1 : index
    %307 = vector.load %arg4[%c72_141, %c1_142] : memref<88x16xf32, #tpu.memory_space<vmem>>, vector<8x1xf32>
    %cst_143 = arith.constant 8.000000e-01 : f32
    %308 = vector.broadcast %cst_143 : f32 to vector<8x1xf32>
    %309 = arith.addf %306, %308 : vector<8x1xf32>
    %310 = math.rsqrt %309 : vector<8x1xf32>
    %311 = arith.mulf %307, %310 : vector<8x1xf32>
    %c72_144 = arith.constant 72 : index
    %c5_145 = arith.constant 5 : index
    %312 = vector.load %arg4[%c72_144, %c5_145] : memref<88x16xf32, #tpu.memory_space<vmem>>, vector<8x1xf32>
    %313 = arith.mulf %299, %311 : vector<8x1xf32>
    %314 = arith.subf %312, %313 : vector<8x1xf32>
    %315 = vector.broadcast %311 : vector<8x1xf32> to vector<8x4xf32>
    %316 = arith.mulf %295, %315 : vector<8x4xf32>
    %317 = vector.broadcast %314 : vector<8x1xf32> to vector<8x4xf32>
    %318 = arith.addf %316, %317 : vector<8x4xf32>
    %cst_146 = arith.constant 2.000000e-01 : f32
    %319 = vector.broadcast %cst_146 : f32 to vector<8x4xf32>
    %320 = arith.mulf %319, %318 : vector<8x4xf32>
    %321 = arith.maximumf %318, %320 : vector<8x4xf32>
    %c304 = arith.constant 304 : index
    %c0_147 = arith.constant 0 : index
    %322 = vector.load %arg3[%c304, %c0_147] : memref<352x32xf32, #tpu.memory_space<vmem>>, vector<8x8xf32>
    %cst_148 = arith.constant dense<0.000000e+00> : vector<8x4xf32>
    %323 = tpu.matmul %322, %321, %cst_148 {dimension_numbers = #tpu.dot_dimension_numbers<[1], [0], [0], [1], [0, 0, 1, 1], [], []>} : vector<8x8xf32>, vector<8x4xf32>, vector<8x4xf32> -> vector<8x4xf32>
    %cst_149 = arith.constant dense<0.000000e+00> : vector<8xf32>
    %324 = vector.multi_reduction <add>, %323, %cst_149 [1] : vector<8x4xf32> to vector<8xf32>
    %325 = vector.shape_cast %324 : vector<8xf32> to vector<8x1xf32>
    %cst_150 = arith.constant 4.000000e+00 : f32
    %326 = vector.broadcast %cst_150 : f32 to vector<8x1xf32>
    %327 = arith.divf %325, %326 : vector<8x1xf32>
    %328 = arith.mulf %323, %323 : vector<8x4xf32>
    %cst_151 = arith.constant dense<0.000000e+00> : vector<8xf32>
    %329 = vector.multi_reduction <add>, %328, %cst_151 [1] : vector<8x4xf32> to vector<8xf32>
    %330 = vector.shape_cast %329 : vector<8xf32> to vector<8x1xf32>
    %cst_152 = arith.constant 4.000000e+00 : f32
    %331 = vector.broadcast %cst_152 : f32 to vector<8x1xf32>
    %332 = arith.divf %330, %331 : vector<8x1xf32>
    %333 = arith.mulf %327, %327 : vector<8x1xf32>
    %334 = arith.subf %332, %333 : vector<8x1xf32>
    %c72_153 = arith.constant 72 : index
    %c2_154 = arith.constant 2 : index
    %335 = vector.load %arg4[%c72_153, %c2_154] : memref<88x16xf32, #tpu.memory_space<vmem>>, vector<8x1xf32>
    %cst_155 = arith.constant 8.000000e-01 : f32
    %336 = vector.broadcast %cst_155 : f32 to vector<8x1xf32>
    %337 = arith.addf %334, %336 : vector<8x1xf32>
    %338 = math.rsqrt %337 : vector<8x1xf32>
    %339 = arith.mulf %335, %338 : vector<8x1xf32>
    %c72_156 = arith.constant 72 : index
    %c6_157 = arith.constant 6 : index
    %340 = vector.load %arg4[%c72_156, %c6_157] : memref<88x16xf32, #tpu.memory_space<vmem>>, vector<8x1xf32>
    %341 = arith.mulf %327, %339 : vector<8x1xf32>
    %342 = arith.subf %340, %341 : vector<8x1xf32>
    %343 = vector.broadcast %339 : vector<8x1xf32> to vector<8x4xf32>
    %344 = arith.mulf %323, %343 : vector<8x4xf32>
    %345 = vector.broadcast %342 : vector<8x1xf32> to vector<8x4xf32>
    %346 = arith.addf %344, %345 : vector<8x4xf32>
    %cst_158 = arith.constant 2.000000e-01 : f32
    %347 = vector.broadcast %cst_158 : f32 to vector<8x4xf32>
    %348 = arith.mulf %347, %346 : vector<8x4xf32>
    %349 = arith.maximumf %346, %348 : vector<8x4xf32>
    %c312 = arith.constant 312 : index
    %c0_159 = arith.constant 0 : index
    %350 = vector.load %arg3[%c312, %c0_159] : memref<352x32xf32, #tpu.memory_space<vmem>>, vector<8x8xf32>
    %cst_160 = arith.constant dense<0.000000e+00> : vector<8x4xf32>
    %351 = tpu.matmul %350, %349, %cst_160 {dimension_numbers = #tpu.dot_dimension_numbers<[1], [0], [0], [1], [0, 0, 1, 1], [], []>} : vector<8x8xf32>, vector<8x4xf32>, vector<8x4xf32> -> vector<8x4xf32>
    %cst_161 = arith.constant dense<0.000000e+00> : vector<8xf32>
    %352 = vector.multi_reduction <add>, %351, %cst_161 [1] : vector<8x4xf32> to vector<8xf32>
    %353 = vector.shape_cast %352 : vector<8xf32> to vector<8x1xf32>
    %cst_162 = arith.constant 4.000000e+00 : f32
    %354 = vector.broadcast %cst_162 : f32 to vector<8x1xf32>
    %355 = arith.divf %353, %354 : vector<8x1xf32>
    %356 = arith.mulf %351, %351 : vector<8x4xf32>
    %cst_163 = arith.constant dense<0.000000e+00> : vector<8xf32>
    %357 = vector.multi_reduction <add>, %356, %cst_163 [1] : vector<8x4xf32> to vector<8xf32>
    %358 = vector.shape_cast %357 : vector<8xf32> to vector<8x1xf32>
    %cst_164 = arith.constant 4.000000e+00 : f32
    %359 = vector.broadcast %cst_164 : f32 to vector<8x1xf32>
    %360 = arith.divf %358, %359 : vector<8x1xf32>
    %361 = arith.mulf %355, %355 : vector<8x1xf32>
    %362 = arith.subf %360, %361 : vector<8x1xf32>
    %c72_165 = arith.constant 72 : index
    %c3_166 = arith.constant 3 : index
    %363 = vector.load %arg4[%c72_165, %c3_166] : memref<88x16xf32, #tpu.memory_space<vmem>>, vector<8x1xf32>
    %cst_167 = arith.constant 8.000000e-01 : f32
    %364 = vector.broadcast %cst_167 : f32 to vector<8x1xf32>
    %365 = arith.addf %362, %364 : vector<8x1xf32>
    %366 = math.rsqrt %365 : vector<8x1xf32>
    %367 = arith.mulf %363, %366 : vector<8x1xf32>
    %c72_168 = arith.constant 72 : index
    %c7_169 = arith.constant 7 : index
    %368 = vector.load %arg4[%c72_168, %c7_169] : memref<88x16xf32, #tpu.memory_space<vmem>>, vector<8x1xf32>
    %369 = arith.mulf %355, %367 : vector<8x1xf32>
    %370 = arith.subf %368, %369 : vector<8x1xf32>
    %371 = vector.broadcast %367 : vector<8x1xf32> to vector<8x4xf32>
    %372 = arith.mulf %351, %371 : vector<8x4xf32>
    %373 = vector.broadcast %370 : vector<8x1xf32> to vector<8x4xf32>
    %374 = arith.addf %372, %373 : vector<8x4xf32>
    %cst_170 = arith.constant 2.000000e-01 : f32
    %375 = vector.broadcast %cst_170 : f32 to vector<8x4xf32>
    %376 = arith.mulf %375, %374 : vector<8x4xf32>
    %377 = arith.maximumf %374, %376 : vector<8x4xf32>
    %c72_171 = arith.constant 72 : index
    %c8_172 = arith.constant 8 : index
    %378 = vector.load %arg4[%c72_171, %c8_172] : memref<88x16xf32, #tpu.memory_space<vmem>>, vector<8x1xf32>
    %cst_173 = arith.constant dense<0.000000e+00> : vector<1x4xf32>
    %379 = tpu.matmul %378, %377, %cst_173 {dimension_numbers = #tpu.dot_dimension_numbers<[0], [0], [1], [1], [0, 1, 1, 1], [], []>} : vector<8x1xf32>, vector<8x4xf32>, vector<1x4xf32> -> vector<1x4xf32>
    %c9 = arith.constant 9 : index
    %c0_174 = arith.constant 0 : index
    %380 = vector.load %arg5[%c9, %c0_174] : memref<16x1xf32, #tpu.memory_space<vmem>>, vector<1x1xf32>
    %381 = vector.broadcast %380 : vector<1x1xf32> to vector<1x4xf32>
    %382 = arith.addf %379, %381 : vector<1x4xf32>
    %383 = math.tanh %382 : vector<1x4xf32>
    %c6_175 = arith.constant 6 : index
    %c0_176 = arith.constant 0 : index
    %384 = vector.load %arg7[%c6_175, %c0_176] : memref<16x4xf32, #tpu.memory_space<vmem>>, vector<1x4xf32>
    tpu.vector_store %arg7[%c6_175, %c0_176], %383 {strides = array<i32>} : memref<16x4xf32, #tpu.memory_space<vmem>>, vector<1x4xf32>,
    %385 = vector.extract_strided_slice %4 {offsets = [32, 0], sizes = [32, 4], strides = [1, 1]} : vector<88x4xf32> to vector<32x4xf32>
    %c32_177 = arith.constant 32 : index
    %c0_178 = arith.constant 0 : index
    %386 = vector.load %arg2[%c32_177, %c0_178] : memref<88x16xf32, #tpu.memory_space<vmem>>, vector<32x7xf32>
    %c0_179 = arith.constant 0 : index
    %c0_180 = arith.constant 0 : index
    %387 = vector.load %arg7[%c0_179, %c0_180] : memref<16x4xf32, #tpu.memory_space<vmem>>, vector<7x4xf32>
    %cst_181 = arith.constant dense<0.000000e+00> : vector<32x4xf32>
    %388 = tpu.matmul %386, %387, %cst_181 {dimension_numbers = #tpu.dot_dimension_numbers<[1], [0], [0], [1], [0, 0, 1, 1], [], []>} : vector<32x7xf32>, vector<7x4xf32>, vector<32x4xf32> -> vector<32x4xf32>
    %389 = arith.addf %385, %388 : vector<32x4xf32>
    %cst_182 = arith.constant 2.000000e-01 : f32
    %390 = vector.broadcast %cst_182 : f32 to vector<32x4xf32>
    %391 = arith.mulf %390, %389 : vector<32x4xf32>
    %392 = arith.maximumf %389, %391 : vector<32x4xf32>
    %c128 = arith.constant 128 : index
    %c0_183 = arith.constant 0 : index
    %393 = vector.load %arg3[%c128, %c0_183] : memref<352x32xf32, #tpu.memory_space<vmem>>, vector<32x32xf32>
    %cst_184 = arith.constant dense<0.000000e+00> : vector<32x4xf32>
    %394 = tpu.matmul %393, %392, %cst_184 {dimension_numbers = #tpu.dot_dimension_numbers<[1], [0], [0], [1], [0, 0, 1, 1], [], []>} : vector<32x32xf32>, vector<32x4xf32>, vector<32x4xf32> -> vector<32x4xf32>
    %cst_185 = arith.constant dense<0.000000e+00> : vector<32xf32>
    %395 = vector.multi_reduction <add>, %394, %cst_185 [1] : vector<32x4xf32> to vector<32xf32>
    %396 = vector.shape_cast %395 : vector<32xf32> to vector<32x1xf32>
    %cst_186 = arith.constant 4.000000e+00 : f32
    %397 = vector.broadcast %cst_186 : f32 to vector<32x1xf32>
    %398 = arith.divf %396, %397 : vector<32x1xf32>
    %399 = arith.mulf %394, %394 : vector<32x4xf32>
    %cst_187 = arith.constant dense<0.000000e+00> : vector<32xf32>
    %400 = vector.multi_reduction <add>, %399, %cst_187 [1] : vector<32x4xf32> to vector<32xf32>
    %401 = vector.shape_cast %400 : vector<32xf32> to vector<32x1xf32>
    %cst_188 = arith.constant 4.000000e+00 : f32
    %402 = vector.broadcast %cst_188 : f32 to vector<32x1xf32>
    %403 = arith.divf %401, %402 : vector<32x1xf32>
    %404 = arith.mulf %398, %398 : vector<32x1xf32>
    %405 = arith.subf %403, %404 : vector<32x1xf32>
    %c32_189 = arith.constant 32 : index
    %c0_190 = arith.constant 0 : index
    %406 = vector.load %arg4[%c32_189, %c0_190] : memref<88x16xf32, #tpu.memory_space<vmem>>, vector<32x1xf32>
    %cst_191 = arith.constant 8.000000e-01 : f32
    %407 = vector.broadcast %cst_191 : f32 to vector<32x1xf32>
    %408 = arith.addf %405, %407 : vector<32x1xf32>
    %409 = math.rsqrt %408 : vector<32x1xf32>
    %410 = arith.mulf %406, %409 : vector<32x1xf32>
    %c32_192 = arith.constant 32 : index
    %c4_193 = arith.constant 4 : index
    %411 = vector.load %arg4[%c32_192, %c4_193] : memref<88x16xf32, #tpu.memory_space<vmem>>, vector<32x1xf32>
    %412 = arith.mulf %398, %410 : vector<32x1xf32>
    %413 = arith.subf %411, %412 : vector<32x1xf32>
    %414 = vector.broadcast %410 : vector<32x1xf32> to vector<32x4xf32>
    %415 = arith.mulf %394, %414 : vector<32x4xf32>
    %416 = vector.broadcast %413 : vector<32x1xf32> to vector<32x4xf32>
    %417 = arith.addf %415, %416 : vector<32x4xf32>
    %cst_194 = arith.constant 2.000000e-01 : f32
    %418 = vector.broadcast %cst_194 : f32 to vector<32x4xf32>
    %419 = arith.mulf %418, %417 : vector<32x4xf32>
    %420 = arith.maximumf %417, %419 : vector<32x4xf32>
    %c160 = arith.constant 160 : index
    %c0_195 = arith.constant 0 : index
    %421 = vector.load %arg3[%c160, %c0_195] : memref<352x32xf32, #tpu.memory_space<vmem>>, vector<32x32xf32>
    %cst_196 = arith.constant dense<0.000000e+00> : vector<32x4xf32>
    %422 = tpu.matmul %421, %420, %cst_196 {dimension_numbers = #tpu.dot_dimension_numbers<[1], [0], [0], [1], [0, 0, 1, 1], [], []>} : vector<32x32xf32>, vector<32x4xf32>, vector<32x4xf32> -> vector<32x4xf32>
    %cst_197 = arith.constant dense<0.000000e+00> : vector<32xf32>
    %423 = vector.multi_reduction <add>, %422, %cst_197 [1] : vector<32x4xf32> to vector<32xf32>
    %424 = vector.shape_cast %423 : vector<32xf32> to vector<32x1xf32>
    %cst_198 = arith.constant 4.000000e+00 : f32
    %425 = vector.broadcast %cst_198 : f32 to vector<32x1xf32>
    %426 = arith.divf %424, %425 : vector<32x1xf32>
    %427 = arith.mulf %422, %422 : vector<32x4xf32>
    %cst_199 = arith.constant dense<0.000000e+00> : vector<32xf32>
    %428 = vector.multi_reduction <add>, %427, %cst_199 [1] : vector<32x4xf32> to vector<32xf32>
    %429 = vector.shape_cast %428 : vector<32xf32> to vector<32x1xf32>
    %cst_200 = arith.constant 4.000000e+00 : f32
    %430 = vector.broadcast %cst_200 : f32 to vector<32x1xf32>
    %431 = arith.divf %429, %430 : vector<32x1xf32>
    %432 = arith.mulf %426, %426 : vector<32x1xf32>
    %433 = arith.subf %431, %432 : vector<32x1xf32>
    %c32_201 = arith.constant 32 : index
    %c1_202 = arith.constant 1 : index
    %434 = vector.load %arg4[%c32_201, %c1_202] : memref<88x16xf32, #tpu.memory_space<vmem>>, vector<32x1xf32>
    %cst_203 = arith.constant 8.000000e-01 : f32
    %435 = vector.broadcast %cst_203 : f32 to vector<32x1xf32>
    %436 = arith.addf %433, %435 : vector<32x1xf32>
    %437 = math.rsqrt %436 : vector<32x1xf32>
    %438 = arith.mulf %434, %437 : vector<32x1xf32>
    %c32_204 = arith.constant 32 : index
    %c5_205 = arith.constant 5 : index
    %439 = vector.load %arg4[%c32_204, %c5_205] : memref<88x16xf32, #tpu.memory_space<vmem>>, vector<32x1xf32>
    %440 = arith.mulf %426, %438 : vector<32x1xf32>
    %441 = arith.subf %439, %440 : vector<32x1xf32>
    %442 = vector.broadcast %438 : vector<32x1xf32> to vector<32x4xf32>
    %443 = arith.mulf %422, %442 : vector<32x4xf32>
    %444 = vector.broadcast %441 : vector<32x1xf32> to vector<32x4xf32>
    %445 = arith.addf %443, %444 : vector<32x4xf32>
    %cst_206 = arith.constant 2.000000e-01 : f32
    %446 = vector.broadcast %cst_206 : f32 to vector<32x4xf32>
    %447 = arith.mulf %446, %445 : vector<32x4xf32>
    %448 = arith.maximumf %445, %447 : vector<32x4xf32>
    %c192 = arith.constant 192 : index
    %c0_207 = arith.constant 0 : index
    %449 = vector.load %arg3[%c192, %c0_207] : memref<352x32xf32, #tpu.memory_space<vmem>>, vector<32x32xf32>
    %cst_208 = arith.constant dense<0.000000e+00> : vector<32x4xf32>
    %450 = tpu.matmul %449, %448, %cst_208 {dimension_numbers = #tpu.dot_dimension_numbers<[1], [0], [0], [1], [0, 0, 1, 1], [], []>} : vector<32x32xf32>, vector<32x4xf32>, vector<32x4xf32> -> vector<32x4xf32>
    %cst_209 = arith.constant dense<0.000000e+00> : vector<32xf32>
    %451 = vector.multi_reduction <add>, %450, %cst_209 [1] : vector<32x4xf32> to vector<32xf32>
    %452 = vector.shape_cast %451 : vector<32xf32> to vector<32x1xf32>
    %cst_210 = arith.constant 4.000000e+00 : f32
    %453 = vector.broadcast %cst_210 : f32 to vector<32x1xf32>
    %454 = arith.divf %452, %453 : vector<32x1xf32>
    %455 = arith.mulf %450, %450 : vector<32x4xf32>
    %cst_211 = arith.constant dense<0.000000e+00> : vector<32xf32>
    %456 = vector.multi_reduction <add>, %455, %cst_211 [1] : vector<32x4xf32> to vector<32xf32>
    %457 = vector.shape_cast %456 : vector<32xf32> to vector<32x1xf32>
    %cst_212 = arith.constant 4.000000e+00 : f32
    %458 = vector.broadcast %cst_212 : f32 to vector<32x1xf32>
    %459 = arith.divf %457, %458 : vector<32x1xf32>
    %460 = arith.mulf %454, %454 : vector<32x1xf32>
    %461 = arith.subf %459, %460 : vector<32x1xf32>
    %c32_213 = arith.constant 32 : index
    %c2_214 = arith.constant 2 : index
    %462 = vector.load %arg4[%c32_213, %c2_214] : memref<88x16xf32, #tpu.memory_space<vmem>>, vector<32x1xf32>
    %cst_215 = arith.constant 8.000000e-01 : f32
    %463 = vector.broadcast %cst_215 : f32 to vector<32x1xf32>
    %464 = arith.addf %461, %463 : vector<32x1xf32>
    %465 = math.rsqrt %464 : vector<32x1xf32>
    %466 = arith.mulf %462, %465 : vector<32x1xf32>
    %c32_216 = arith.constant 32 : index
    %c6_217 = arith.constant 6 : index
    %467 = vector.load %arg4[%c32_216, %c6_217] : memref<88x16xf32, #tpu.memory_space<vmem>>, vector<32x1xf32>
    %468 = arith.mulf %454, %466 : vector<32x1xf32>
    %469 = arith.subf %467, %468 : vector<32x1xf32>
    %470 = vector.broadcast %466 : vector<32x1xf32> to vector<32x4xf32>
    %471 = arith.mulf %450, %470 : vector<32x4xf32>
    %472 = vector.broadcast %469 : vector<32x1xf32> to vector<32x4xf32>
    %473 = arith.addf %471, %472 : vector<32x4xf32>
    %cst_218 = arith.constant 2.000000e-01 : f32
    %474 = vector.broadcast %cst_218 : f32 to vector<32x4xf32>
    %475 = arith.mulf %474, %473 : vector<32x4xf32>
    %476 = arith.maximumf %473, %475 : vector<32x4xf32>
    %c224 = arith.constant 224 : index
    %c0_219 = arith.constant 0 : index
    %477 = vector.load %arg3[%c224, %c0_219] : memref<352x32xf32, #tpu.memory_space<vmem>>, vector<32x32xf32>
    %cst_220 = arith.constant dense<0.000000e+00> : vector<32x4xf32>
    %478 = tpu.matmul %477, %476, %cst_220 {dimension_numbers = #tpu.dot_dimension_numbers<[1], [0], [0], [1], [0, 0, 1, 1], [], []>} : vector<32x32xf32>, vector<32x4xf32>, vector<32x4xf32> -> vector<32x4xf32>
    %cst_221 = arith.constant dense<0.000000e+00> : vector<32xf32>
    %479 = vector.multi_reduction <add>, %478, %cst_221 [1] : vector<32x4xf32> to vector<32xf32>
    %480 = vector.shape_cast %479 : vector<32xf32> to vector<32x1xf32>
    %cst_222 = arith.constant 4.000000e+00 : f32
    %481 = vector.broadcast %cst_222 : f32 to vector<32x1xf32>
    %482 = arith.divf %480, %481 : vector<32x1xf32>
    %483 = arith.mulf %478, %478 : vector<32x4xf32>
    %cst_223 = arith.constant dense<0.000000e+00> : vector<32xf32>
    %484 = vector.multi_reduction <add>, %483, %cst_223 [1] : vector<32x4xf32> to vector<32xf32>
    %485 = vector.shape_cast %484 : vector<32xf32> to vector<32x1xf32>
    %cst_224 = arith.constant 4.000000e+00 : f32
    %486 = vector.broadcast %cst_224 : f32 to vector<32x1xf32>
    %487 = arith.divf %485, %486 : vector<32x1xf32>
    %488 = arith.mulf %482, %482 : vector<32x1xf32>
    %489 = arith.subf %487, %488 : vector<32x1xf32>
    %c32_225 = arith.constant 32 : index
    %c3_226 = arith.constant 3 : index
    %490 = vector.load %arg4[%c32_225, %c3_226] : memref<88x16xf32, #tpu.memory_space<vmem>>, vector<32x1xf32>
    %cst_227 = arith.constant 8.000000e-01 : f32
    %491 = vector.broadcast %cst_227 : f32 to vector<32x1xf32>
    %492 = arith.addf %489, %491 : vector<32x1xf32>
    %493 = math.rsqrt %492 : vector<32x1xf32>
    %494 = arith.mulf %490, %493 : vector<32x1xf32>
    %c32_228 = arith.constant 32 : index
    %c7_229 = arith.constant 7 : index
    %495 = vector.load %arg4[%c32_228, %c7_229] : memref<88x16xf32, #tpu.memory_space<vmem>>, vector<32x1xf32>
    %496 = arith.mulf %482, %494 : vector<32x1xf32>
    %497 = arith.subf %495, %496 : vector<32x1xf32>
    %498 = vector.broadcast %494 : vector<32x1xf32> to vector<32x4xf32>
    %499 = arith.mulf %478, %498 : vector<32x4xf32>
    %500 = vector.broadcast %497 : vector<32x1xf32> to vector<32x4xf32>
    %501 = arith.addf %499, %500 : vector<32x4xf32>
    %cst_230 = arith.constant 2.000000e-01 : f32
    %502 = vector.broadcast %cst_230 : f32 to vector<32x4xf32>
    %503 = arith.mulf %502, %501 : vector<32x4xf32>
    %504 = arith.maximumf %501, %503 : vector<32x4xf32>
    %c32_231 = arith.constant 32 : index
    %c8_232 = arith.constant 8 : index
    %505 = vector.load %arg4[%c32_231, %c8_232] : memref<88x16xf32, #tpu.memory_space<vmem>>, vector<32x4xf32>
    %cst_233 = arith.constant dense<0.000000e+00> : vector<4x4xf32>
    %506 = tpu.matmul %505, %504, %cst_233 {dimension_numbers = #tpu.dot_dimension_numbers<[0], [0], [1], [1], [0, 1, 1, 1], [], []>} : vector<32x4xf32>, vector<32x4xf32>, vector<4x4xf32> -> vector<4x4xf32>
    %c4_234 = arith.constant 4 : index
    %c0_235 = arith.constant 0 : index
    %507 = vector.load %arg5[%c4_234, %c0_235] : memref<16x1xf32, #tpu.memory_space<vmem>>, vector<4x1xf32>
    %508 = vector.broadcast %507 : vector<4x1xf32> to vector<4x4xf32>
    %509 = arith.addf %506, %508 : vector<4x4xf32>
    %510 = math.tanh %509 : vector<4x4xf32>
    %c7_236 = arith.constant 7 : index
    %c0_237 = arith.constant 0 : index
    %511 = vector.load %arg7[%c7_236, %c0_237] : memref<16x4xf32, #tpu.memory_space<vmem>>, vector<4x4xf32>
    tpu.vector_store %arg7[%c7_236, %c0_237], %510 {strides = array<i32>} : memref<16x4xf32, #tpu.memory_space<vmem>>, vector<4x4xf32>,
    %512 = vector.extract_strided_slice %4 {offsets = [80, 0], sizes = [8, 4], strides = [1, 1]} : vector<88x4xf32> to vector<8x4xf32>
    %c80 = arith.constant 80 : index
    %c0_238 = arith.constant 0 : index
    %513 = vector.load %arg2[%c80, %c0_238] : memref<88x16xf32, #tpu.memory_space<vmem>>, vector<8x11xf32>
    %c0_239 = arith.constant 0 : index
    %c0_240 = arith.constant 0 : index
    %514 = vector.load %arg7[%c0_239, %c0_240] : memref<16x4xf32, #tpu.memory_space<vmem>>, vector<11x4xf32>
    %cst_241 = arith.constant dense<0.000000e+00> : vector<8x4xf32>
    %515 = tpu.matmul %513, %514, %cst_241 {dimension_numbers = #tpu.dot_dimension_numbers<[1], [0], [0], [1], [0, 0, 1, 1], [], []>} : vector<8x11xf32>, vector<11x4xf32>, vector<8x4xf32> -> vector<8x4xf32>
    %516 = arith.addf %512, %515 : vector<8x4xf32>
    %cst_242 = arith.constant 2.000000e-01 : f32
    %517 = vector.broadcast %cst_242 : f32 to vector<8x4xf32>
    %518 = arith.mulf %517, %516 : vector<8x4xf32>
    %519 = arith.maximumf %516, %518 : vector<8x4xf32>
    %c320 = arith.constant 320 : index
    %c0_243 = arith.constant 0 : index
    %520 = vector.load %arg3[%c320, %c0_243] : memref<352x32xf32, #tpu.memory_space<vmem>>, vector<8x8xf32>
    %cst_244 = arith.constant dense<0.000000e+00> : vector<8x4xf32>
    %521 = tpu.matmul %520, %519, %cst_244 {dimension_numbers = #tpu.dot_dimension_numbers<[1], [0], [0], [1], [0, 0, 1, 1], [], []>} : vector<8x8xf32>, vector<8x4xf32>, vector<8x4xf32> -> vector<8x4xf32>
    %cst_245 = arith.constant dense<0.000000e+00> : vector<8xf32>
    %522 = vector.multi_reduction <add>, %521, %cst_245 [1] : vector<8x4xf32> to vector<8xf32>
    %523 = vector.shape_cast %522 : vector<8xf32> to vector<8x1xf32>
    %cst_246 = arith.constant 4.000000e+00 : f32
    %524 = vector.broadcast %cst_246 : f32 to vector<8x1xf32>
    %525 = arith.divf %523, %524 : vector<8x1xf32>
    %526 = arith.mulf %521, %521 : vector<8x4xf32>
    %cst_247 = arith.constant dense<0.000000e+00> : vector<8xf32>
    %527 = vector.multi_reduction <add>, %526, %cst_247 [1] : vector<8x4xf32> to vector<8xf32>
    %528 = vector.shape_cast %527 : vector<8xf32> to vector<8x1xf32>
    %cst_248 = arith.constant 4.000000e+00 : f32
    %529 = vector.broadcast %cst_248 : f32 to vector<8x1xf32>
    %530 = arith.divf %528, %529 : vector<8x1xf32>
    %531 = arith.mulf %525, %525 : vector<8x1xf32>
    %532 = arith.subf %530, %531 : vector<8x1xf32>
    %c80_249 = arith.constant 80 : index
    %c0_250 = arith.constant 0 : index
    %533 = vector.load %arg4[%c80_249, %c0_250] : memref<88x16xf32, #tpu.memory_space<vmem>>, vector<8x1xf32>
    %cst_251 = arith.constant 8.000000e-01 : f32
    %534 = vector.broadcast %cst_251 : f32 to vector<8x1xf32>
    %535 = arith.addf %532, %534 : vector<8x1xf32>
    %536 = math.rsqrt %535 : vector<8x1xf32>
    %537 = arith.mulf %533, %536 : vector<8x1xf32>
    %c80_252 = arith.constant 80 : index
    %c4_253 = arith.constant 4 : index
    %538 = vector.load %arg4[%c80_252, %c4_253] : memref<88x16xf32, #tpu.memory_space<vmem>>, vector<8x1xf32>
    %539 = arith.mulf %525, %537 : vector<8x1xf32>
    %540 = arith.subf %538, %539 : vector<8x1xf32>
    %541 = vector.broadcast %537 : vector<8x1xf32> to vector<8x4xf32>
    %542 = arith.mulf %521, %541 : vector<8x4xf32>
    %543 = vector.broadcast %540 : vector<8x1xf32> to vector<8x4xf32>
    %544 = arith.addf %542, %543 : vector<8x4xf32>
    %cst_254 = arith.constant 2.000000e-01 : f32
    %545 = vector.broadcast %cst_254 : f32 to vector<8x4xf32>
    %546 = arith.mulf %545, %544 : vector<8x4xf32>
    %547 = arith.maximumf %544, %546 : vector<8x4xf32>
    %c328 = arith.constant 328 : index
    %c0_255 = arith.constant 0 : index
    %548 = vector.load %arg3[%c328, %c0_255] : memref<352x32xf32, #tpu.memory_space<vmem>>, vector<8x8xf32>
    %cst_256 = arith.constant dense<0.000000e+00> : vector<8x4xf32>
    %549 = tpu.matmul %548, %547, %cst_256 {dimension_numbers = #tpu.dot_dimension_numbers<[1], [0], [0], [1], [0, 0, 1, 1], [], []>} : vector<8x8xf32>, vector<8x4xf32>, vector<8x4xf32> -> vector<8x4xf32>
    %cst_257 = arith.constant dense<0.000000e+00> : vector<8xf32>
    %550 = vector.multi_reduction <add>, %549, %cst_257 [1] : vector<8x4xf32> to vector<8xf32>
    %551 = vector.shape_cast %550 : vector<8xf32> to vector<8x1xf32>
    %cst_258 = arith.constant 4.000000e+00 : f32
    %552 = vector.broadcast %cst_258 : f32 to vector<8x1xf32>
    %553 = arith.divf %551, %552 : vector<8x1xf32>
    %554 = arith.mulf %549, %549 : vector<8x4xf32>
    %cst_259 = arith.constant dense<0.000000e+00> : vector<8xf32>
    %555 = vector.multi_reduction <add>, %554, %cst_259 [1] : vector<8x4xf32> to vector<8xf32>
    %556 = vector.shape_cast %555 : vector<8xf32> to vector<8x1xf32>
    %cst_260 = arith.constant 4.000000e+00 : f32
    %557 = vector.broadcast %cst_260 : f32 to vector<8x1xf32>
    %558 = arith.divf %556, %557 : vector<8x1xf32>
    %559 = arith.mulf %553, %553 : vector<8x1xf32>
    %560 = arith.subf %558, %559 : vector<8x1xf32>
    %c80_261 = arith.constant 80 : index
    %c1_262 = arith.constant 1 : index
    %561 = vector.load %arg4[%c80_261, %c1_262] : memref<88x16xf32, #tpu.memory_space<vmem>>, vector<8x1xf32>
    %cst_263 = arith.constant 8.000000e-01 : f32
    %562 = vector.broadcast %cst_263 : f32 to vector<8x1xf32>
    %563 = arith.addf %560, %562 : vector<8x1xf32>
    %564 = math.rsqrt %563 : vector<8x1xf32>
    %565 = arith.mulf %561, %564 : vector<8x1xf32>
    %c80_264 = arith.constant 80 : index
    %c5_265 = arith.constant 5 : index
    %566 = vector.load %arg4[%c80_264, %c5_265] : memref<88x16xf32, #tpu.memory_space<vmem>>, vector<8x1xf32>
    %567 = arith.mulf %553, %565 : vector<8x1xf32>
    %568 = arith.subf %566, %567 : vector<8x1xf32>
    %569 = vector.broadcast %565 : vector<8x1xf32> to vector<8x4xf32>
    %570 = arith.mulf %549, %569 : vector<8x4xf32>
    %571 = vector.broadcast %568 : vector<8x1xf32> to vector<8x4xf32>
    %572 = arith.addf %570, %571 : vector<8x4xf32>
    %cst_266 = arith.constant 2.000000e-01 : f32
    %573 = vector.broadcast %cst_266 : f32 to vector<8x4xf32>
    %574 = arith.mulf %573, %572 : vector<8x4xf32>
    %575 = arith.maximumf %572, %574 : vector<8x4xf32>
    %c336 = arith.constant 336 : index
    %c0_267 = arith.constant 0 : index
    %576 = vector.load %arg3[%c336, %c0_267] : memref<352x32xf32, #tpu.memory_space<vmem>>, vector<8x8xf32>
    %cst_268 = arith.constant dense<0.000000e+00> : vector<8x4xf32>
    %577 = tpu.matmul %576, %575, %cst_268 {dimension_numbers = #tpu.dot_dimension_numbers<[1], [0], [0], [1], [0, 0, 1, 1], [], []>} : vector<8x8xf32>, vector<8x4xf32>, vector<8x4xf32> -> vector<8x4xf32>
    %cst_269 = arith.constant dense<0.000000e+00> : vector<8xf32>
    %578 = vector.multi_reduction <add>, %577, %cst_269 [1] : vector<8x4xf32> to vector<8xf32>
    %579 = vector.shape_cast %578 : vector<8xf32> to vector<8x1xf32>
    %cst_270 = arith.constant 4.000000e+00 : f32
    %580 = vector.broadcast %cst_270 : f32 to vector<8x1xf32>
    %581 = arith.divf %579, %580 : vector<8x1xf32>
    %582 = arith.mulf %577, %577 : vector<8x4xf32>
    %cst_271 = arith.constant dense<0.000000e+00> : vector<8xf32>
    %583 = vector.multi_reduction <add>, %582, %cst_271 [1] : vector<8x4xf32> to vector<8xf32>
    %584 = vector.shape_cast %583 : vector<8xf32> to vector<8x1xf32>
    %cst_272 = arith.constant 4.000000e+00 : f32
    %585 = vector.broadcast %cst_272 : f32 to vector<8x1xf32>
    %586 = arith.divf %584, %585 : vector<8x1xf32>
    %587 = arith.mulf %581, %581 : vector<8x1xf32>
    %588 = arith.subf %586, %587 : vector<8x1xf32>
    %c80_273 = arith.constant 80 : index
    %c2_274 = arith.constant 2 : index
    %589 = vector.load %arg4[%c80_273, %c2_274] : memref<88x16xf32, #tpu.memory_space<vmem>>, vector<8x1xf32>
    %cst_275 = arith.constant 8.000000e-01 : f32
    %590 = vector.broadcast %cst_275 : f32 to vector<8x1xf32>
    %591 = arith.addf %588, %590 : vector<8x1xf32>
    %592 = math.rsqrt %591 : vector<8x1xf32>
    %593 = arith.mulf %589, %592 : vector<8x1xf32>
    %c80_276 = arith.constant 80 : index
    %c6_277 = arith.constant 6 : index
    %594 = vector.load %arg4[%c80_276, %c6_277] : memref<88x16xf32, #tpu.memory_space<vmem>>, vector<8x1xf32>
    %595 = arith.mulf %581, %593 : vector<8x1xf32>
    %596 = arith.subf %594, %595 : vector<8x1xf32>
    %597 = vector.broadcast %593 : vector<8x1xf32> to vector<8x4xf32>
    %598 = arith.mulf %577, %597 : vector<8x4xf32>
    %599 = vector.broadcast %596 : vector<8x1xf32> to vector<8x4xf32>
    %600 = arith.addf %598, %599 : vector<8x4xf32>
    %cst_278 = arith.constant 2.000000e-01 : f32
    %601 = vector.broadcast %cst_278 : f32 to vector<8x4xf32>
    %602 = arith.mulf %601, %600 : vector<8x4xf32>
    %603 = arith.maximumf %600, %602 : vector<8x4xf32>
    %c344 = arith.constant 344 : index
    %c0_279 = arith.constant 0 : index
    %604 = vector.load %arg3[%c344, %c0_279] : memref<352x32xf32, #tpu.memory_space<vmem>>, vector<8x8xf32>
    %cst_280 = arith.constant dense<0.000000e+00> : vector<8x4xf32>
    %605 = tpu.matmul %604, %603, %cst_280 {dimension_numbers = #tpu.dot_dimension_numbers<[1], [0], [0], [1], [0, 0, 1, 1], [], []>} : vector<8x8xf32>, vector<8x4xf32>, vector<8x4xf32> -> vector<8x4xf32>
    %cst_281 = arith.constant dense<0.000000e+00> : vector<8xf32>
    %606 = vector.multi_reduction <add>, %605, %cst_281 [1] : vector<8x4xf32> to vector<8xf32>
    %607 = vector.shape_cast %606 : vector<8xf32> to vector<8x1xf32>
    %cst_282 = arith.constant 4.000000e+00 : f32
    %608 = vector.broadcast %cst_282 : f32 to vector<8x1xf32>
    %609 = arith.divf %607, %608 : vector<8x1xf32>
    %610 = arith.mulf %605, %605 : vector<8x4xf32>
    %cst_283 = arith.constant dense<0.000000e+00> : vector<8xf32>
    %611 = vector.multi_reduction <add>, %610, %cst_283 [1] : vector<8x4xf32> to vector<8xf32>
    %612 = vector.shape_cast %611 : vector<8xf32> to vector<8x1xf32>
    %cst_284 = arith.constant 4.000000e+00 : f32
    %613 = vector.broadcast %cst_284 : f32 to vector<8x1xf32>
    %614 = arith.divf %612, %613 : vector<8x1xf32>
    %615 = arith.mulf %609, %609 : vector<8x1xf32>
    %616 = arith.subf %614, %615 : vector<8x1xf32>
    %c80_285 = arith.constant 80 : index
    %c3_286 = arith.constant 3 : index
    %617 = vector.load %arg4[%c80_285, %c3_286] : memref<88x16xf32, #tpu.memory_space<vmem>>, vector<8x1xf32>
    %cst_287 = arith.constant 8.000000e-01 : f32
    %618 = vector.broadcast %cst_287 : f32 to vector<8x1xf32>
    %619 = arith.addf %616, %618 : vector<8x1xf32>
    %620 = math.rsqrt %619 : vector<8x1xf32>
    %621 = arith.mulf %617, %620 : vector<8x1xf32>
    %c80_288 = arith.constant 80 : index
    %c7_289 = arith.constant 7 : index
    %622 = vector.load %arg4[%c80_288, %c7_289] : memref<88x16xf32, #tpu.memory_space<vmem>>, vector<8x1xf32>
    %623 = arith.mulf %609, %621 : vector<8x1xf32>
    %624 = arith.subf %622, %623 : vector<8x1xf32>
    %625 = vector.broadcast %621 : vector<8x1xf32> to vector<8x4xf32>
    %626 = arith.mulf %605, %625 : vector<8x4xf32>
    %627 = vector.broadcast %624 : vector<8x1xf32> to vector<8x4xf32>
    %628 = arith.addf %626, %627 : vector<8x4xf32>
    %cst_290 = arith.constant 2.000000e-01 : f32
    %629 = vector.broadcast %cst_290 : f32 to vector<8x4xf32>
    %630 = arith.mulf %629, %628 : vector<8x4xf32>
    %631 = arith.maximumf %628, %630 : vector<8x4xf32>
    %c80_291 = arith.constant 80 : index
    %c8_292 = arith.constant 8 : index
    %632 = vector.load %arg4[%c80_291, %c8_292] : memref<88x16xf32, #tpu.memory_space<vmem>>, vector<8x1xf32>
    %cst_293 = arith.constant dense<0.000000e+00> : vector<1x4xf32>
    %633 = tpu.matmul %632, %631, %cst_293 {dimension_numbers = #tpu.dot_dimension_numbers<[0], [0], [1], [1], [0, 1, 1, 1], [], []>} : vector<8x1xf32>, vector<8x4xf32>, vector<1x4xf32> -> vector<1x4xf32>
    %c10 = arith.constant 10 : index
    %c0_294 = arith.constant 0 : index
    %634 = vector.load %arg5[%c10, %c0_294] : memref<16x1xf32, #tpu.memory_space<vmem>>, vector<1x1xf32>
    %635 = vector.broadcast %634 : vector<1x1xf32> to vector<1x4xf32>
    %636 = arith.addf %633, %635 : vector<1x4xf32>
    %637 = math.tanh %636 : vector<1x4xf32>
    %638 = vector.extract_strided_slice %129 {offsets = [1, 0], sizes = [1, 4], strides = [1, 1]} : vector<4x4xf32> to vector<1x4xf32>
    %c0_295 = arith.constant 0 : index
    %c0_296 = arith.constant 0 : index
    %639 = vector.load %arg6[%c0_295, %c0_296] : memref<11x4xf32, #tpu.memory_space<vmem>>, vector<1x4xf32>
    tpu.vector_store %arg6[%c0_295, %c0_296], %638 {strides = array<i32>} : memref<11x4xf32, #tpu.memory_space<vmem>>, vector<1x4xf32>,
    %640 = vector.extract_strided_slice %510 {offsets = [2, 0], sizes = [1, 4], strides = [1, 1]} : vector<4x4xf32> to vector<1x4xf32>
    %c1_297 = arith.constant 1 : index
    %c0_298 = arith.constant 0 : index
    %641 = vector.load %arg6[%c1_297, %c0_298] : memref<11x4xf32, #tpu.memory_space<vmem>>, vector<1x4xf32>
    tpu.vector_store %arg6[%c1_297, %c0_298], %640 {strides = array<i32>} : memref<11x4xf32, #tpu.memory_space<vmem>>, vector<1x4xf32>,
    %c2_299 = arith.constant 2 : index
    %c0_300 = arith.constant 0 : index
    %642 = vector.load %arg6[%c2_299, %c0_300] : memref<11x4xf32, #tpu.memory_space<vmem>>, vector<1x4xf32>
    tpu.vector_store %arg6[%c2_299, %c0_300], %383 {strides = array<i32>} : memref<11x4xf32, #tpu.memory_space<vmem>>, vector<1x4xf32>,
    %c3_301 = arith.constant 3 : index
    %c0_302 = arith.constant 0 : index
    %643 = vector.load %arg6[%c3_301, %c0_302] : memref<11x4xf32, #tpu.memory_space<vmem>>, vector<1x4xf32>
    tpu.vector_store %arg6[%c3_301, %c0_302], %256 {strides = array<i32>} : memref<11x4xf32, #tpu.memory_space<vmem>>, vector<1x4xf32>,
    %644 = vector.extract_strided_slice %510 {offsets = [0, 0], sizes = [1, 4], strides = [1, 1]} : vector<4x4xf32> to vector<1x4xf32>
    %c4_303 = arith.constant 4 : index
    %c0_304 = arith.constant 0 : index
    %645 = vector.load %arg6[%c4_303, %c0_304] : memref<11x4xf32, #tpu.memory_space<vmem>>, vector<1x4xf32>
    tpu.vector_store %arg6[%c4_303, %c0_304], %644 {strides = array<i32>} : memref<11x4xf32, #tpu.memory_space<vmem>>, vector<1x4xf32>,
    %646 = vector.extract_strided_slice %510 {offsets = [3, 0], sizes = [1, 4], strides = [1, 1]} : vector<4x4xf32> to vector<1x4xf32>
    %c5_305 = arith.constant 5 : index
    %c0_306 = arith.constant 0 : index
    %647 = vector.load %arg6[%c5_305, %c0_306] : memref<11x4xf32, #tpu.memory_space<vmem>>, vector<1x4xf32>
    tpu.vector_store %arg6[%c5_305, %c0_306], %646 {strides = array<i32>} : memref<11x4xf32, #tpu.memory_space<vmem>>, vector<1x4xf32>,
    %648 = vector.extract_strided_slice %129 {offsets = [2, 0], sizes = [1, 4], strides = [1, 1]} : vector<4x4xf32> to vector<1x4xf32>
    %c6_307 = arith.constant 6 : index
    %c0_308 = arith.constant 0 : index
    %649 = vector.load %arg6[%c6_307, %c0_308] : memref<11x4xf32, #tpu.memory_space<vmem>>, vector<1x4xf32>
    tpu.vector_store %arg6[%c6_307, %c0_308], %648 {strides = array<i32>} : memref<11x4xf32, #tpu.memory_space<vmem>>, vector<1x4xf32>,
    %650 = vector.extract_strided_slice %129 {offsets = [0, 0], sizes = [1, 4], strides = [1, 1]} : vector<4x4xf32> to vector<1x4xf32>
    %c7_309 = arith.constant 7 : index
    %c0_310 = arith.constant 0 : index
    %651 = vector.load %arg6[%c7_309, %c0_310] : memref<11x4xf32, #tpu.memory_space<vmem>>, vector<1x4xf32>
    tpu.vector_store %arg6[%c7_309, %c0_310], %650 {strides = array<i32>} : memref<11x4xf32, #tpu.memory_space<vmem>>, vector<1x4xf32>,
    %652 = vector.extract_strided_slice %510 {offsets = [1, 0], sizes = [1, 4], strides = [1, 1]} : vector<4x4xf32> to vector<1x4xf32>
    %c8_311 = arith.constant 8 : index
    %c0_312 = arith.constant 0 : index
    %653 = vector.load %arg6[%c8_311, %c0_312] : memref<11x4xf32, #tpu.memory_space<vmem>>, vector<1x4xf32>
    tpu.vector_store %arg6[%c8_311, %c0_312], %652 {strides = array<i32>} : memref<11x4xf32, #tpu.memory_space<vmem>>, vector<1x4xf32>,
    %654 = vector.extract_strided_slice %129 {offsets = [3, 0], sizes = [1, 4], strides = [1, 1]} : vector<4x4xf32> to vector<1x4xf32>
    %c9_313 = arith.constant 9 : index
    %c0_314 = arith.constant 0 : index
    %655 = vector.load %arg6[%c9_313, %c0_314] : memref<11x4xf32, #tpu.memory_space<vmem>>, vector<1x4xf32>
    tpu.vector_store %arg6[%c9_313, %c0_314], %654 {strides = array<i32>} : memref<11x4xf32, #tpu.memory_space<vmem>>, vector<1x4xf32>,
    %c10_315 = arith.constant 10 : index
    %c0_316 = arith.constant 0 : index
    %656 = vector.load %arg6[%c10_315, %c0_316] : memref<11x4xf32, #tpu.memory_space<vmem>>, vector<1x4xf32>
    tpu.vector_store %arg6[%c10_315, %c0_316], %637 {strides = array<i32>} : memref<11x4xf32, #tpu.memory_space<vmem>>, vector<1x4xf32>,
    return
  }
}

</mosaic_0001>

<llo_original>
// kernel: cfgan_forward.1
$region0: #{cfgan_forward.1}
  #allocation0 [shape = 'u32[]', space=smem, size = 0x4, offset = 0x4, fixed_abs, tag = 'smem constant byte address 0x4 - core index']
  #allocation1 [shape = 'u32[144,128]{1,0:T(1,128)}', space=vmem, size = 0x12000, scoped, tag = 'internal scratch']
  #allocation2 [shape = 'f32[16,4]{1,0:T(8,128)}', space=vmem, size = 0x2000, scoped, tag = 'scratch operand']
  %s0 = inlined_call_operand.vmem [shape: f32[88,4], index: 0, kind: input, shape index: {}]
  %s1 = inlined_call_operand.vmem [shape: f32[88,88], index: 1, kind: input, shape index: {}]
  %s2 = inlined_call_operand.vmem [shape: f32[88,16], index: 2, kind: input, shape index: {}]
  %s3 = inlined_call_operand.vmem [shape: f32[352,32], index: 3, kind: input, shape index: {}]
  %s4 = inlined_call_operand.vmem [shape: f32[88,16], index: 4, kind: input, shape index: {}]
  %s5 = inlined_call_operand.vmem [shape: f32[16,1], index: 5, kind: input, shape index: {}]
  %s6 = inlined_call_operand.vmem [shape: f32[11,4], index: 6, kind: output, shape index: {}]
  %s7 = sld [smem:[#allocation0]]
  $region34: #{cfgan_forward.1} parent=0
    _
  %s9 = ssub.s32 1, %s7
  %s10 = scalar_select 0, %s9, %s7
  // Predicated region
  $region2: #{cfgan_forward.1} parent=0 // pred_check
    _
  $region3: #{cfgan_forward.1} parent=0 // pred_check_branch
    %12 = sbr.rel (0) target = $region5
  $region4: #{cfgan_forward.1} parent=0 // pred_region
    _
  $region5: #{cfgan_forward.1} parent=0 // pred_fallthru
    _
  // Predicated region
  $region6: #{cfgan_forward.1} parent=0 // pred_check
    _
  $region7: #{cfgan_forward.1} parent=0 // pred_check_branch
    %14 = sbr.rel (0) target = $region9
  $region8: #{cfgan_forward.1} parent=0 // pred_region
    _
  $region9: #{cfgan_forward.1} parent=0 // pred_fallthru
    _
  // Predicated region
  $region10: #{cfgan_forward.1} parent=0 // pred_check
    _
  $region11: #{cfgan_forward.1} parent=0 // pred_check_branch
    %16 = sbr.rel (0) target = $region13
  $region12: #{cfgan_forward.1} parent=0 // pred_region
    _
  $region13: #{cfgan_forward.1} parent=0 // pred_fallthru
    _
  // Predicated region
  $region14: #{cfgan_forward.1} parent=0 // pred_check
    _
  $region15: #{cfgan_forward.1} parent=0 // pred_check_branch
    %18 = sbr.rel (0) target = $region17
  $region16: #{cfgan_forward.1} parent=0 // pred_region
    _
  $region17: #{cfgan_forward.1} parent=0 // pred_fallthru
    _
  // Predicated region
  $region18: #{cfgan_forward.1} parent=0 // pred_check
    _
  $region19: #{cfgan_forward.1} parent=0 // pred_check_branch
    %20 = sbr.rel (0) target = $region21
  $region20: #{cfgan_forward.1} parent=0 // pred_region
    _
  $region21: #{cfgan_forward.1} parent=0 // pred_fallthru
    _
  // Predicated region
  $region22: #{cfgan_forward.1} parent=0 // pred_check
    _
  $region23: #{cfgan_forward.1} parent=0 // pred_check_branch
    %22 = sbr.rel (0) target = $region25
  $region24: #{cfgan_forward.1} parent=0 // pred_region
    _
  $region25: #{cfgan_forward.1} parent=0 // pred_fallthru
    _
  %vm23 = vcmask 24576
  %24 = vst.msk [vmem:[#allocation2] sm:$0x1] %vm23, 1.0
  %v25 = vld [vmem:[%s1] sm:$0xff]
  %v26 = vld [vmem:[%s1 + $0x8] sm:$0xff]
  %v27 = vld [vmem:[%s1 + $0x10] sm:$0xff]
  %v28 = vld [vmem:[%s1 + $0x18] sm:$0xff]
  %v29 = vld [vmem:[%s1 + $0x20] sm:$0xff]
  %v30 = vld [vmem:[%s1 + $0x28] sm:$0xff]
  %v31 = vld [vmem:[%s1 + $0x30] sm:$0xff]
  %v32 = vld [vmem:[%s1 + $0x38] sm:$0xff]
  %v33 = vld [vmem:[%s1 + $0x40] sm:$0xff]
  %v34 = vld [vmem:[%s1 + $0x48] sm:$0xff]
  %v35 = vld [vmem:[%s1 + $0x50] sm:$0xff]
  %v36 = vld [vmem:[%s0] sm:$0xff]
  %v37 = vld [vmem:[%s0 + $0x8] sm:$0xff]
  %v38 = vld [vmem:[%s0 + $0x10] sm:$0xff]
  %v39 = vld [vmem:[%s0 + $0x18] sm:$0xff]
  %v40 = vld [vmem:[%s0 + $0x20] sm:$0xff]
  %v41 = vld [vmem:[%s0 + $0x28] sm:$0xff]
  %v42 = vld [vmem:[%s0 + $0x30] sm:$0xff]
  %v43 = vld [vmem:[%s0 + $0x38] sm:$0xff]
  %v44 = vld [vmem:[%s0 + $0x40] sm:$0xff]
  %v45 = vld [vmem:[%s0 + $0x48] sm:$0xff]
  %v46 = vld [vmem:[%s0 + $0x50] sm:$0xff]
  %vm47 = vcmask 719872
  %v49 = vsel %vm47, %v25, 0
  %v52 = vsel %vm47, %v26, 0
  %v55 = vsel %vm47, %v27, 0
  %v58 = vsel %vm47, %v28, 0
  %v61 = vsel %vm47, %v29, 0
  %v64 = vsel %vm47, %v30, 0
  %v67 = vsel %vm47, %v31, 0
  %v70 = vsel %vm47, %v32, 0
  %v73 = vsel %vm47, %v33, 0
  %v76 = vsel %vm47, %v34, 0
  %v79 = vsel %vm47, %v35, 0
  %81 = vmatprep.subr.mxu0 0.0
  %82 = vmatpush1.msra.mxu0 %v36
  %83 = vmatprep.subr.mxu0 0.0
  %84 = vmatpush1.msra.mxu0 %v37
  %85 = vmatprep.subr.mxu0 0.0
  %86 = vmatpush1.msra.mxu0 %v38
  %87 = vmatprep.subr.mxu0 0.0
  %88 = vmatpush1.msra.mxu0 %v39
  %89 = vmatprep.subr.mxu0 0.0
  %90 = vmatpush1.msra.mxu0 %v40
  %91 = vmatprep.subr.mxu0 0.0
  %92 = vmatpush1.msra.mxu0 %v41
  %93 = vmatprep.subr.mxu0 0.0
  %94 = vmatpush1.msra.mxu0 %v42
  %95 = vmatprep.subr.mxu0 0.0
  %96 = vmatpush1.msra.mxu0 %v43
  %97 = vmatprep.subr.mxu0 0.0
  %98 = vmatpush1.msra.mxu0 %v44
  %99 = vmatprep.subr.mxu0 0.0
  %100 = vmatpush1.msra.mxu0 %v45
  %101 = vmatprep.subr.mxu0 0.0
  %102 = vmatpush1.msra.mxu0 %v46
  %103 = vmatprep.subr.mxu0 0.0
  %104 = vmatpush1.msra.mxu0 0.0
  %105 = vmatprep.subr.mxu0 0.0
  %106 = vmatpush1.msra.mxu0 0.0
  %107 = vmatprep.subr.mxu0 0.0
  %108 = vmatpush1.msra.mxu0 0.0
  %109 = vmatprep.subr.mxu0 0.0
  %110 = vmatpush1.msra.mxu0 0.0
  %111 = vmatprep.subr.mxu0 0.0
  %112 = vmatpush1.msra.mxu0 0.0
  %113 = vmatprep.subr.mxu0 0.0
  %114 = vmatpush1.msra.mxu0 0.0
  %115 = vmatprep.subr.mxu0 0.0
  %116 = vmatpush1.msra.mxu0 0.0
  %117 = vmatprep.subr.mxu0 0.0
  %118 = vmatpush1.msra.mxu0 0.0
  %119 = vmatprep.subr.mxu0 0.0
  %120 = vmatpush1.msra.mxu0 0.0
  %121 = vmatprep.subr.mxu0 0.0
  %122 = vmatpush1.msra.mxu0 0.0
  %123 = vmatprep.subr.mxu0 0.0
  %124 = vmatpush1.msra.mxu0 0.0
  %125 = vmatprep.subr.mxu0 0.0
  %126 = vmatpush1.msra.mxu0 0.0
  %127 = vmatprep.subr.mxu0 0.0
  %128 = vmatpush1.msra.mxu0 0.0
  %129 = vmatprep.subr.mxu0 0.0
  %130 = vmatpush1.msra.mxu0 0.0
  %131 = vmatprep.subr.mxu0 0.0
  %132 = vmatpush1.msra.mxu0 0.0
  %133 = vmatprep.subr.mxu0 0.0
  %134 = vmatpush1.msra.mxu0 0.0
  %135 = vmatprep.subr.mxu0 0.0
  %136 = vmatpush1.msra.mxu0 0.0
  %137 = vmatprep.subr.mxu0 0.0
  %138 = vmatpush1.msra.mxu0 0.0
  %139 = vmatprep.subr.mxu0 0.0
  %140 = vmatpush1.msra.mxu0 0.0
  %141 = vmatprep.subr.mxu0 0.0
  %142 = vmatpush1.msra.mxu0 0.0
  %143 = vmatprep.subr.mxu0 0.0
  %144 = vmatpush1.msra.mxu0 0.0
  %145 = vmatprep.mubr.f32.mxu0 0.0
  %146 = vmatmul.mubr.f32.gmra.mrb[0].mxu0 %v49
  %v147 = vpop.f32.mrb[0].mxu0
  %v148 = vadd.f32 0.0, %v147
  %v149 = vpop.f32.mrb[0].mxu0
  %150 = vmatprep.mubr.f32.mxu0 0.0
  %151 = vmatmul.mubr.f32.gmra.mrb[0].mxu0 %v52
  %v152 = vpop.f32.mrb[0].mxu0
  %v153 = vadd.f32 0.0, %v152
  %v154 = vpop.f32.mrb[0].mxu0
  %155 = vmatprep.mubr.f32.mxu0 0.0
  %156 = vmatmul.mubr.f32.gmra.mrb[0].mxu0 %v55
  %v157 = vpop.f32.mrb[0].mxu0
  %v158 = vadd.f32 0.0, %v157
  %v159 = vpop.f32.mrb[0].mxu0
  %160 = vmatprep.mubr.f32.mxu0 0.0
  %161 = vmatmul.mubr.f32.gmra.mrb[0].mxu0 %v58
  %v162 = vpop.f32.mrb[0].mxu0
  %v163 = vadd.f32 0.0, %v162
  %v164 = vpop.f32.mrb[0].mxu0
  %165 = vmatprep.mubr.f32.mxu0 0.0
  %166 = vmatmul.mubr.f32.gmra.mrb[0].mxu0 %v61
  %v167 = vpop.f32.mrb[0].mxu0
  %v168 = vadd.f32 0.0, %v167
  %v169 = vpop.f32.mrb[0].mxu0
  %170 = vmatprep.mubr.f32.mxu0 0.0
  %171 = vmatmul.mubr.f32.gmra.mrb[0].mxu0 %v64
  %v172 = vpop.f32.mrb[0].mxu0
  %v173 = vadd.f32 0.0, %v172
  %v174 = vpop.f32.mrb[0].mxu0
  %175 = vmatprep.mubr.f32.mxu0 0.0
  %176 = vmatmul.mubr.f32.gmra.mrb[0].mxu0 %v67
  %v177 = vpop.f32.mrb[0].mxu0
  %v178 = vadd.f32 0.0, %v177
  %v179 = vpop.f32.mrb[0].mxu0
  %180 = vmatprep.mubr.f32.mxu0 0.0
  %181 = vmatmul.mubr.f32.gmra.mrb[0].mxu0 %v70
  %v182 = vpop.f32.mrb[0].mxu0
  %v183 = vadd.f32 0.0, %v182
  %v184 = vpop.f32.mrb[0].mxu0
  %185 = vmatprep.mubr.f32.mxu0 0.0
  %186 = vmatmul.mubr.f32.gmra.mrb[0].mxu0 %v73
  %v187 = vpop.f32.mrb[0].mxu0
  %v188 = vadd.f32 0.0, %v187
  %v189 = vpop.f32.mrb[0].mxu0
  %190 = vmatprep.mubr.f32.mxu0 0.0
  %191 = vmatmul.mubr.f32.gmra.mrb[0].mxu0 %v76
  %v192 = vpop.f32.mrb[0].mxu0
  %v193 = vadd.f32 0.0, %v192
  %v194 = vpop.f32.mrb[0].mxu0
  %195 = vmatprep.mubr.f32.mxu0 0.0
  %196 = vmatmul.mubr.f32.gmra.mrb[0].mxu0 %v79
  %v197 = vpop.f32.mrb[0].mxu0
  %v198 = vadd.f32 0.0, %v197
  %v199 = vpop.f32.mrb[0].mxu0
  %200 = vdwg.mxu0
  %v201 = vld [vmem:[%s2] sm:$0xff]
  %v202 = vld [vmem:[%s2 + $0x8] sm:$0xff]
  %v203 = vld [vmem:[%s2 + $0x10] sm:$0xff]
  %v204 = vld [vmem:[%s2 + $0x18] sm:$0xff]
  %206 = vset.pattern.permute.xlu0 0
  %207 = vperm.xlu0 %206, %v201
  %v208 = vpop.permute.xlu0 %207
  %211 = vset.pattern.permute.xlu0 0
  %212 = vperm.xlu0 %211, %v202
  %v213 = vpop.permute.xlu0 %212
  %216 = vset.pattern.permute.xlu0 0
  %217 = vperm.xlu0 %216, %v203
  %v218 = vpop.permute.xlu0 %217
  %221 = vset.pattern.permute.xlu0 0
  %222 = vperm.xlu0 %221, %v204
  %v223 = vpop.permute.xlu0 %222
  %v225 = vadd.f32 %v148, %v208
  %v226 = vadd.f32 %v153, %v213
  %v227 = vadd.f32 %v158, %v218
  %v228 = vadd.f32 %v163, %v223
  %v229 = vmul.f32 %v225, 0.2
  %v230 = vmul.f32 %v226, 0.2
  %v231 = vmul.f32 %v227, 0.2
  %v232 = vmul.f32 %v228, 0.2
  %v233 = vmax.f32 %v225, %v229
  %v234 = vmax.f32 %v226, %v230
  %v235 = vmax.f32 %v227, %v231
  %v236 = vmax.f32 %v228, %v232
  %v237 = vld [vmem:[%s3] sm:$0xff]
  %v238 = vld [vmem:[%s3 + $0x8] sm:$0xff]
  %v239 = vld [vmem:[%s3 + $0x10] sm:$0xff]
  %v240 = vld [vmem:[%s3 + $0x18] sm:$0xff]
  %vm241 = vcmask 261120
  %v243 = vsel %vm241, %v237, 0
  %v246 = vsel %vm241, %v238, 0
  %v249 = vsel %vm241, %v239, 0
  %v252 = vsel %vm241, %v240, 0
  %254 = vmatprep.subr.mxu0 0.0
  %255 = vmatpush1.msra.mxu0 %v233
  %256 = vmatprep.subr.mxu0 0.0
  %257 = vmatpush1.msra.mxu0 %v234
  %258 = vmatprep.subr.mxu0 0.0
  %259 = vmatpush1.msra.mxu0 %v235
  %260 = vmatprep.subr.mxu0 0.0
  %261 = vmatpush1.msra.mxu0 %v236
  %262 = vmatprep.subr.mxu0 0.0
  %263 = vmatpush1.msra.mxu0 0.0
  %264 = vmatprep.subr.mxu0 0.0
  %265 = vmatpush1.msra.mxu0 0.0
  %266 = vmatprep.subr.mxu0 0.0
  %267 = vmatpush1.msra.mxu0 0.0
  %268 = vmatprep.subr.mxu0 0.0
  %269 = vmatpush1.msra.mxu0 0.0
  %270 = vmatprep.subr.mxu0 0.0
  %271 = vmatpush1.msra.mxu0 0.0
  %272 = vmatprep.subr.mxu0 0.0
  %273 = vmatpush1.msra.mxu0 0.0
  %274 = vmatprep.subr.mxu0 0.0
  %275 = vmatpush1.msra.mxu0 0.0
  %276 = vmatprep.subr.mxu0 0.0
  %277 = vmatpush1.msra.mxu0 0.0
  %278 = vmatprep.subr.mxu0 0.0
  %279 = vmatpush1.msra.mxu0 0.0
  %280 = vmatprep.subr.mxu0 0.0
  %281 = vmatpush1.msra.mxu0 0.0
  %282 = vmatprep.subr.mxu0 0.0
  %283 = vmatpush1.msra.mxu0 0.0
  %284 = vmatprep.subr.mxu0 0.0
  %285 = vmatpush1.msra.mxu0 0.0
  %286 = vmatprep.subr.mxu0 0.0
  %287 = vmatpush1.msra.mxu0 0.0
  %288 = vmatprep.subr.mxu0 0.0
  %289 = vmatpush1.msra.mxu0 0.0
  %290 = vmatprep.subr.mxu0 0.0
  %291 = vmatpush1.msra.mxu0 0.0
  %292 = vmatprep.subr.mxu0 0.0
  %293 = vmatpush1.msra.mxu0 0.0
  %294 = vmatprep.subr.mxu0 0.0
  %295 = vmatpush1.msra.mxu0 0.0
  %296 = vmatprep.subr.mxu0 0.0
  %297 = vmatpush1.msra.mxu0 0.0
  %298 = vmatprep.subr.mxu0 0.0
  %299 = vmatpush1.msra.mxu0 0.0
  %300 = vmatprep.subr.mxu0 0.0
  %301 = vmatpush1.msra.mxu0 0.0
  %302 = vmatprep.subr.mxu0 0.0
  %303 = vmatpush1.msra.mxu0 0.0
  %304 = vmatprep.subr.mxu0 0.0
  %305 = vmatpush1.msra.mxu0 0.0
  %306 = vmatprep.subr.mxu0 0.0
  %307 = vmatpush1.msra.mxu0 0.0
  %308 = vmatprep.subr.mxu0 0.0
  %309 = vmatpush1.msra.mxu0 0.0
  %310 = vmatprep.subr.mxu0 0.0
  %311 = vmatpush1.msra.mxu0 0.0
  %312 = vmatprep.subr.mxu0 0.0
  %313 = vmatpush1.msra.mxu0 0.0
  %314 = vmatprep.subr.mxu0 0.0
  %315 = vmatpush1.msra.mxu0 0.0
  %316 = vmatprep.subr.mxu0 0.0
  %317 = vmatpush1.msra.mxu0 0.0
  %318 = vmatprep.mubr.f32.mxu0 0.0
  %319 = vmatmul.mubr.f32.gmra.mrb[0].mxu0 %v243
  %v320 = vpop.f32.mrb[0].mxu0
  %v321 = vadd.f32 0.0, %v320
  %v322 = vpop.f32.mrb[0].mxu0
  %323 = vmatprep.mubr.f32.mxu0 0.0
  %324 = vmatmul.mubr.f32.gmra.mrb[0].mxu0 %v246
  %v325 = vpop.f32.mrb[0].mxu0
  %v326 = vadd.f32 0.0, %v325
  %v327 = vpop.f32.mrb[0].mxu0
  %328 = vmatprep.mubr.f32.mxu0 0.0
  %329 = vmatmul.mubr.f32.gmra.mrb[0].mxu0 %v249
  %v330 = vpop.f32.mrb[0].mxu0
  %v331 = vadd.f32 0.0, %v330
  %v332 = vpop.f32.mrb[0].mxu0
  %333 = vmatprep.mubr.f32.mxu0 0.0
  %334 = vmatmul.mubr.f32.gmra.mrb[0].mxu0 %v252
  %v335 = vpop.f32.mrb[0].mxu0
  %v336 = vadd.f32 0.0, %v335
  %v337 = vpop.f32.mrb[0].mxu0
  %338 = vdwg.mxu0
  %vm339 = vcmask 31744
  %v340 = vsel %vm339, %v321, 0.0
  %341 = vadd.xlane.f32.xlu0 %v340
  %v342 = vpop.xlane.xlu0 %341
  %v343 = vsel %vm339, %v326, 0.0
  %344 = vadd.xlane.f32.xlu0 %v343
  %v345 = vpop.xlane.xlu0 %344
  %v346 = vsel %vm339, %v331, 0.0
  %347 = vadd.xlane.f32.xlu0 %v346
  %v348 = vpop.xlane.xlu0 %347
  %v349 = vsel %vm339, %v336, 0.0
  %350 = vadd.xlane.f32.xlu0 %v349
  %v351 = vpop.xlane.xlu0 %350
  %v352 = vrcp.pop 4.0
  %v353 = vmul.f32 %v342, %v352
  %v354 = vmul.f32 %v345, %v352
  %v355 = vmul.f32 %v348, %v352
  %v356 = vmul.f32 %v351, %v352
  %v357 = vmul.f32 %v321, %v321
  %v358 = vmul.f32 %v326, %v326
  %v359 = vmul.f32 %v331, %v331
  %v360 = vmul.f32 %v336, %v336
  %v361 = vsel %vm339, %v357, 0.0
  %362 = vadd.xlane.f32.xlu0 %v361
  %v363 = vpop.xlane.xlu0 %362
  %v364 = vsel %vm339, %v358, 0.0
  %365 = vadd.xlane.f32.xlu0 %v364
  %v366 = vpop.xlane.xlu0 %365
  %v367 = vsel %vm339, %v359, 0.0
  %368 = vadd.xlane.f32.xlu0 %v367
  %v369 = vpop.xlane.xlu0 %368
  %v370 = vsel %vm339, %v360, 0.0
  %371 = vadd.xlane.f32.xlu0 %v370
  %v372 = vpop.xlane.xlu0 %371
  %v373 = vmul.f32 %v363, %v352
  %v374 = vmul.f32 %v366, %v352
  %v375 = vmul.f32 %v369, %v352
  %v376 = vmul.f32 %v372, %v352
  %v377 = vmul.f32 %v353, %v353
  %v378 = vmul.f32 %v354, %v354
  %v379 = vmul.f32 %v355, %v355
  %v380 = vmul.f32 %v356, %v356
  %v381 = vsub.f32 %v373, %v377
  %v382 = vsub.f32 %v374, %v378
  %v383 = vsub.f32 %v375, %v379
  %v384 = vsub.f32 %v376, %v380
  %v385 = vld [vmem:[%s4] sm:$0xff]
  %v386 = vld [vmem:[%s4 + $0x8] sm:$0xff]
  %v387 = vld [vmem:[%s4 + $0x10] sm:$0xff]
  %v388 = vld [vmem:[%s4 + $0x18] sm:$0xff]
  %v389 = vadd.f32 %v381, 0.8
  %v390 = vadd.f32 %v382, 0.8
  %v391 = vadd.f32 %v383, 0.8
  %v392 = vadd.f32 %v384, 0.8
  %v393 = vrsqrt.pop %v389
  %v394 = vrsqrt.pop %v390
  %v395 = vrsqrt.pop %v391
  %v396 = vrsqrt.pop %v392
  %v397 = vmul.f32 %v385, %v393
  %v398 = vmul.f32 %v386, %v394
  %v399 = vmul.f32 %v387, %v395
  %v400 = vmul.f32 %v388, %v396
  %v401 = vmul.f32 %v353, %v397
  %v402 = vmul.f32 %v354, %v398
  %v403 = vmul.f32 %v355, %v399
  %v404 = vmul.f32 %v356, %v400
  %409 = vrot.lane.b32.xlu0 %v401, 4
  %v410 = vpop.permute.xlu0 %409
  %411 = vrot.lane.b32.xlu0 %v402, 4
  %v412 = vpop.permute.xlu0 %411
  %413 = vrot.lane.b32.xlu0 %v403, 4
  %v414 = vpop.permute.xlu0 %413
  %415 = vrot.lane.b32.xlu0 %v404, 4
  %v416 = vpop.permute.xlu0 %415
  %v421 = vsub.f32 %v385, %v410
  %v422 = vsub.f32 %v386, %v412
  %v423 = vsub.f32 %v387, %v414
  %v424 = vsub.f32 %v388, %v416
  %426 = vset.pattern.permute.xlu0 0
  %427 = vperm.xlu0 %426, %v397
  %v428 = vpop.permute.xlu0 %427
  %431 = vset.pattern.permute.xlu0 0
  %432 = vperm.xlu0 %431, %v398
  %v433 = vpop.permute.xlu0 %432
  %436 = vset.pattern.permute.xlu0 0
  %437 = vperm.xlu0 %436, %v399
  %v438 = vpop.permute.xlu0 %437
  %441 = vset.pattern.permute.xlu0 0
  %442 = vperm.xlu0 %441, %v400
  %v443 = vpop.permute.xlu0 %442
  %v445 = vmul.f32 %v321, %v428
  %v446 = vmul.f32 %v326, %v433
  %v447 = vmul.f32 %v331, %v438
  %v448 = vmul.f32 %v336, %v443
  %450 = vset.pattern.permute.xlu0 4
  %451 = vperm.xlu0 %450, %v421
  %v452 = vpop.permute.xlu0 %451
  %455 = vset.pattern.permute.xlu0 4
  %456 = vperm.xlu0 %455, %v422
  %v457 = vpop.permute.xlu0 %456
  %460 = vset.pattern.permute.xlu0 4
  %461 = vperm.xlu0 %460, %v423
  %v462 = vpop.permute.xlu0 %461
  %465 = vset.pattern.permute.xlu0 4
  %466 = vperm.xlu0 %465, %v424
  %v467 = vpop.permute.xlu0 %466
  %v469 = vadd.f32 %v445, %v452
  %v470 = vadd.f32 %v446, %v457
  %v471 = vadd.f32 %v447, %v462
  %v472 = vadd.f32 %v448, %v467
  %v473 = vmul.f32 %v469, 0.2
  %v474 = vmul.f32 %v470, 0.2
  %v475 = vmul.f32 %v471, 0.2
  %v476 = vmul.f32 %v472, 0.2
  %v477 = vmax.f32 %v469, %v473
  %v478 = vmax.f32 %v470, %v474
  %v479 = vmax.f32 %v471, %v475
  %v480 = vmax.f32 %v472, %v476
  %v481 = vld [vmem:[%s3 + $0x20] sm:$0xff]
  %v482 = vld [vmem:[%s3 + $0x28] sm:$0xff]
  %v483 = vld [vmem:[%s3 + $0x30] sm:$0xff]
  %v484 = vld [vmem:[%s3 + $0x38] sm:$0xff]
  %v486 = vsel %vm241, %v481, 0
  %v489 = vsel %vm241, %v482, 0
  %v492 = vsel %vm241, %v483, 0
  %v495 = vsel %vm241, %v484, 0
  %497 = vmatprep.subr.mxu0 0.0
  %498 = vmatpush1.msra.mxu0 %v477
  %499 = vmatprep.subr.mxu0 0.0
  %500 = vmatpush1.msra.mxu0 %v478
  %501 = vmatprep.subr.mxu0 0.0
  %502 = vmatpush1.msra.mxu0 %v479
  %503 = vmatprep.subr.mxu0 0.0
  %504 = vmatpush1.msra.mxu0 %v480
  %505 = vmatprep.subr.mxu0 0.0
  %506 = vmatpush1.msra.mxu0 0.0
  %507 = vmatprep.subr.mxu0 0.0
  %508 = vmatpush1.msra.mxu0 0.0
  %509 = vmatprep.subr.mxu0 0.0
  %510 = vmatpush1.msra.mxu0 0.0
  %511 = vmatprep.subr.mxu0 0.0
  %512 = vmatpush1.msra.mxu0 0.0
  %513 = vmatprep.subr.mxu0 0.0
  %514 = vmatpush1.msra.mxu0 0.0
  %515 = vmatprep.subr.mxu0 0.0
  %516 = vmatpush1.msra.mxu0 0.0
  %517 = vmatprep.subr.mxu0 0.0
  %518 = vmatpush1.msra.mxu0 0.0
  %519 = vmatprep.subr.mxu0 0.0
  %520 = vmatpush1.msra.mxu0 0.0
  %521 = vmatprep.subr.mxu0 0.0
  %522 = vmatpush1.msra.mxu0 0.0
  %523 = vmatprep.subr.mxu0 0.0
  %524 = vmatpush1.msra.mxu0 0.0
  %525 = vmatprep.subr.mxu0 0.0
  %526 = vmatpush1.msra.mxu0 0.0
  %527 = vmatprep.subr.mxu0 0.0
  %528 = vmatpush1.msra.mxu0 0.0
  %529 = vmatprep.subr.mxu0 0.0
  %530 = vmatpush1.msra.mxu0 0.0
  %531 = vmatprep.subr.mxu0 0.0
  %532 = vmatpush1.msra.mxu0 0.0
  %533 = vmatprep.subr.mxu0 0.0
  %534 = vmatpush1.msra.mxu0 0.0
  %535 = vmatprep.subr.mxu0 0.0
  %536 = vmatpush1.msra.mxu0 0.0
  %537 = vmatprep.subr.mxu0 0.0
  %538 = vmatpush1.msra.mxu0 0.0
  %539 = vmatprep.subr.mxu0 0.0
  %540 = vmatpush1.msra.mxu0 0.0
  %541 = vmatprep.subr.mxu0 0.0
  %542 = vmatpush1.msra.mxu0 0.0
  %543 = vmatprep.subr.mxu0 0.0
  %544 = vmatpush1.msra.mxu0 0.0
  %545 = vmatprep.subr.mxu0 0.0
  %546 = vmatpush1.msra.mxu0 0.0
  %547 = vmatprep.subr.mxu0 0.0
  %548 = vmatpush1.msra.mxu0 0.0
  %549 = vmatprep.subr.mxu0 0.0
  %550 = vmatpush1.msra.mxu0 0.0
  %551 = vmatprep.subr.mxu0 0.0
  %552 = vmatpush1.msra.mxu0 0.0
  %553 = vmatprep.subr.mxu0 0.0
  %554 = vmatpush1.msra.mxu0 0.0
  %555 = vmatprep.subr.mxu0 0.0
  %556 = vmatpush1.msra.mxu0 0.0
  %557 = vmatprep.subr.mxu0 0.0
  %558 = vmatpush1.msra.mxu0 0.0
  %559 = vmatprep.subr.mxu0 0.0
  %560 = vmatpush1.msra.mxu0 0.0
  %561 = vmatprep.mubr.f32.mxu0 0.0
  %562 = vmatmul.mubr.f32.gmra.mrb[0].mxu0 %v486
  %v563 = vpop.f32.mrb[0].mxu0
  %v564 = vadd.f32 0.0, %v563
  %v565 = vpop.f32.mrb[0].mxu0
  %566 = vmatprep.mubr.f32.mxu0 0.0
  %567 = vmatmul.mubr.f32.gmra.mrb[0].mxu0 %v489
  %v568 = vpop.f32.mrb[0].mxu0
  %v569 = vadd.f32 0.0, %v568
  %v570 = vpop.f32.mrb[0].mxu0
  %571 = vmatprep.mubr.f32.mxu0 0.0
  %572 = vmatmul.mubr.f32.gmra.mrb[0].mxu0 %v492
  %v573 = vpop.f32.mrb[0].mxu0
  %v574 = vadd.f32 0.0, %v573
  %v575 = vpop.f32.mrb[0].mxu0
  %576 = vmatprep.mubr.f32.mxu0 0.0
  %577 = vmatmul.mubr.f32.gmra.mrb[0].mxu0 %v495
  %v578 = vpop.f32.mrb[0].mxu0
  %v579 = vadd.f32 0.0, %v578
  %v580 = vpop.f32.mrb[0].mxu0
  %581 = vdwg.mxu0
  %v582 = vsel %vm339, %v564, 0.0
  %583 = vadd.xlane.f32.xlu0 %v582
  %v584 = vpop.xlane.xlu0 %583
  %v585 = vsel %vm339, %v569, 0.0
  %586 = vadd.xlane.f32.xlu0 %v585
  %v587 = vpop.xlane.xlu0 %586
  %v588 = vsel %vm339, %v574, 0.0
  %589 = vadd.xlane.f32.xlu0 %v588
  %v590 = vpop.xlane.xlu0 %589
  %v591 = vsel %vm339, %v579, 0.0
  %592 = vadd.xlane.f32.xlu0 %v591
  %v593 = vpop.xlane.xlu0 %592
  %v594 = vmul.f32 %v584, %v352
  %v595 = vmul.f32 %v587, %v352
  %v596 = vmul.f32 %v590, %v352
  %v597 = vmul.f32 %v593, %v352
  %v598 = vmul.f32 %v564, %v564
  %v599 = vmul.f32 %v569, %v569
  %v600 = vmul.f32 %v574, %v574
  %v601 = vmul.f32 %v579, %v579
  %v602 = vsel %vm339, %v598, 0.0
  %603 = vadd.xlane.f32.xlu0 %v602
  %v604 = vpop.xlane.xlu0 %603
  %v605 = vsel %vm339, %v599, 0.0
  %606 = vadd.xlane.f32.xlu0 %v605
  %v607 = vpop.xlane.xlu0 %606
  %v608 = vsel %vm339, %v600, 0.0
  %609 = vadd.xlane.f32.xlu0 %v608
  %v610 = vpop.xlane.xlu0 %609
  %v611 = vsel %vm339, %v601, 0.0
  %612 = vadd.xlane.f32.xlu0 %v611
  %v613 = vpop.xlane.xlu0 %612
  %v614 = vmul.f32 %v604, %v352
  %v615 = vmul.f32 %v607, %v352
  %v616 = vmul.f32 %v610, %v352
  %v617 = vmul.f32 %v613, %v352
  %v618 = vmul.f32 %v594, %v594
  %v619 = vmul.f32 %v595, %v595
  %v620 = vmul.f32 %v596, %v596
  %v621 = vmul.f32 %v597, %v597
  %v622 = vsub.f32 %v614, %v618
  %v623 = vsub.f32 %v615, %v619
  %v624 = vsub.f32 %v616, %v620
  %v625 = vsub.f32 %v617, %v621
  %v626 = vadd.f32 %v622, 0.8
  %v627 = vadd.f32 %v623, 0.8
  %v628 = vadd.f32 %v624, 0.8
  %v629 = vadd.f32 %v625, 0.8
  %v630 = vrsqrt.pop %v626
  %v631 = vrsqrt.pop %v627
  %v632 = vrsqrt.pop %v628
  %v633 = vrsqrt.pop %v629
  %v634 = vmul.f32 %v385, %v630
  %v635 = vmul.f32 %v386, %v631
  %v636 = vmul.f32 %v387, %v632
  %v637 = vmul.f32 %v388, %v633
  %v638 = vmul.f32 %v594, %v634
  %v639 = vmul.f32 %v595, %v635
  %v640 = vmul.f32 %v596, %v636
  %v641 = vmul.f32 %v597, %v637
  %646 = vrot.lane.b32.xlu0 %v638, 4
  %v647 = vpop.permute.xlu0 %646
  %648 = vrot.lane.b32.xlu0 %v639, 4
  %v649 = vpop.permute.xlu0 %648
  %650 = vrot.lane.b32.xlu0 %v640, 4
  %v651 = vpop.permute.xlu0 %650
  %652 = vrot.lane.b32.xlu0 %v641, 4
  %v653 = vpop.permute.xlu0 %652
  %v658 = vsub.f32 %v385, %v647
  %v659 = vsub.f32 %v386, %v649
  %v660 = vsub.f32 %v387, %v651
  %v661 = vsub.f32 %v388, %v653
  %663 = vset.pattern.permute.xlu0 1
  %664 = vperm.xlu0 %663, %v634
  %v665 = vpop.permute.xlu0 %664
  %668 = vset.pattern.permute.xlu0 1
  %669 = vperm.xlu0 %668, %v635
  %v670 = vpop.permute.xlu0 %669
  %673 = vset.pattern.permute.xlu0 1
  %674 = vperm.xlu0 %673, %v636
  %v675 = vpop.permute.xlu0 %674
  %678 = vset.pattern.permute.xlu0 1
  %679 = vperm.xlu0 %678, %v637
  %v680 = vpop.permute.xlu0 %679
  %v682 = vmul.f32 %v564, %v665
  %v683 = vmul.f32 %v569, %v670
  %v684 = vmul.f32 %v574, %v675
  %v685 = vmul.f32 %v579, %v680
  %687 = vset.pattern.permute.xlu0 5
  %688 = vperm.xlu0 %687, %v658
  %v689 = vpop.permute.xlu0 %688
  %692 = vset.pattern.permute.xlu0 5
  %693 = vperm.xlu0 %692, %v659
  %v694 = vpop.permute.xlu0 %693
  %697 = vset.pattern.permute.xlu0 5
  %698 = vperm.xlu0 %697, %v660
  %v699 = vpop.permute.xlu0 %698
  %702 = vset.pattern.permute.xlu0 5
  %703 = vperm.xlu0 %702, %v661
  %v704 = vpop.permute.xlu0 %703
  %v706 = vadd.f32 %v682, %v689
  %v707 = vadd.f32 %v683, %v694
  %v708 = vadd.f32 %v684, %v699
  %v709 = vadd.f32 %v685, %v704
  %v710 = vmul.f32 %v706, 0.2
  %v711 = vmul.f32 %v707, 0.2
  %v712 = vmul.f32 %v708, 0.2
  %v713 = vmul.f32 %v709, 0.2
  %v714 = vmax.f32 %v706, %v710
  %v715 = vmax.f32 %v707, %v711
  %v716 = vmax.f32 %v708, %v712
  %v717 = vmax.f32 %v709, %v713
  %v718 = vld [vmem:[%s3 + $0x40] sm:$0xff]
  %v719 = vld [vmem:[%s3 + $0x48] sm:$0xff]
  %v720 = vld [vmem:[%s3 + $0x50] sm:$0xff]
  %v721 = vld [vmem:[%s3 + $0x58] sm:$0xff]
  %v723 = vsel %vm241, %v718, 0
  %v726 = vsel %vm241, %v719, 0
  %v729 = vsel %vm241, %v720, 0
  %v732 = vsel %vm241, %v721, 0
  %734 = vmatprep.subr.mxu0 0.0
  %735 = vmatpush1.msra.mxu0 %v714
  %736 = vmatprep.subr.mxu0 0.0
  %737 = vmatpush1.msra.mxu0 %v715
  %738 = vmatprep.subr.mxu0 0.0
  %739 = vmatpush1.msra.mxu0 %v716
  %740 = vmatprep.subr.mxu0 0.0
  %741 = vmatpush1.msra.mxu0 %v717
  %742 = vmatprep.subr.mxu0 0.0
  %743 = vmatpush1.msra.mxu0 0.0
  %744 = vmatprep.subr.mxu0 0.0
  %745 = vmatpush1.msra.mxu0 0.0
  %746 = vmatprep.subr.mxu0 0.0
  %747 = vmatpush1.msra.mxu0 0.0
  %748 = vmatprep.subr.mxu0 0.0
  %749 = vmatpush1.msra.mxu0 0.0
  %750 = vmatprep.subr.mxu0 0.0
  %751 = vmatpush1.msra.mxu0 0.0
  %752 = vmatprep.subr.mxu0 0.0
  %753 = vmatpush1.msra.mxu0 0.0
  %754 = vmatprep.subr.mxu0 0.0
  %755 = vmatpush1.msra.mxu0 0.0
  %756 = vmatprep.subr.mxu0 0.0
  %757 = vmatpush1.msra.mxu0 0.0
  %758 = vmatprep.subr.mxu0 0.0
  %759 = vmatpush1.msra.mxu0 0.0
  %760 = vmatprep.subr.mxu0 0.0
  %761 = vmatpush1.msra.mxu0 0.0
  %762 = vmatprep.subr.mxu0 0.0
  %763 = vmatpush1.msra.mxu0 0.0
  %764 = vmatprep.subr.mxu0 0.0
  %765 = vmatpush1.msra.mxu0 0.0
  %766 = vmatprep.subr.mxu0 0.0
  %767 = vmatpush1.msra.mxu0 0.0
  %768 = vmatprep.subr.mxu0 0.0
  %769 = vmatpush1.msra.mxu0 0.0
  %770 = vmatprep.subr.mxu0 0.0
  %771 = vmatpush1.msra.mxu0 0.0
  %772 = vmatprep.subr.mxu0 0.0
  %773 = vmatpush1.msra.mxu0 0.0
  %774 = vmatprep.subr.mxu0 0.0
  %775 = vmatpush1.msra.mxu0 0.0
  %776 = vmatprep.subr.mxu0 0.0
  %777 = vmatpush1.msra.mxu0 0.0
  %778 = vmatprep.subr.mxu0 0.0
  %779 = vmatpush1.msra.mxu0 0.0
  %780 = vmatprep.subr.mxu0 0.0
  %781 = vmatpush1.msra.mxu0 0.0
  %782 = vmatprep.subr.mxu0 0.0
  %783 = vmatpush1.msra.mxu0 0.0
  %784 = vmatprep.subr.mxu0 0.0
  %785 = vmatpush1.msra.mxu0 0.0
  %786 = vmatprep.subr.mxu0 0.0
  %787 = vmatpush1.msra.mxu0 0.0
  %788 = vmatprep.subr.mxu0 0.0
  %789 = vmatpush1.msra.mxu0 0.0
  %790 = vmatprep.subr.mxu0 0.0
  %791 = vmatpush1.msra.mxu0 0.0
  %792 = vmatprep.subr.mxu0 0.0
  %793 = vmatpush1.msra.mxu0 0.0
  %794 = vmatprep.subr.mxu0 0.0
  %795 = vmatpush1.msra.mxu0 0.0
  %796 = vmatprep.subr.mxu0 0.0
  %797 = vmatpush1.msra.mxu0 0.0
  %798 = vmatprep.mubr.f32.mxu0 0.0
  %799 = vmatmul.mubr.f32.gmra.mrb[0].mxu0 %v723
  %v800 = vpop.f32.mrb[0].mxu0
  %v801 = vadd.f32 0.0, %v800
  %v802 = vpop.f32.mrb[0].mxu0
  %803 = vmatprep.mubr.f32.mxu0 0.0
  %804 = vmatmul.mubr.f32.gmra.mrb[0].mxu0 %v726
  %v805 = vpop.f32.mrb[0].mxu0
  %v806 = vadd.f32 0.0, %v805
  %v807 = vpop.f32.mrb[0].mxu0
  %808 = vmatprep.mubr.f32.mxu0 0.0
  %809 = vmatmul.mubr.f32.gmra.mrb[0].mxu0 %v729
  %v810 = vpop.f32.mrb[0].mxu0
  %v811 = vadd.f32 0.0, %v810
  %v812 = vpop.f32.mrb[0].mxu0
  %813 = vmatprep.mubr.f32.mxu0 0.0
  %814 = vmatmul.mubr.f32.gmra.mrb[0].mxu0 %v732
  %v815 = vpop.f32.mrb[0].mxu0
  %v816 = vadd.f32 0.0, %v815
  %v817 = vpop.f32.mrb[0].mxu0
  %818 = vdwg.mxu0
  %v819 = vsel %vm339, %v801, 0.0
  %820 = vadd.xlane.f32.xlu0 %v819
  %v821 = vpop.xlane.xlu0 %820
  %v822 = vsel %vm339, %v806, 0.0
  %823 = vadd.xlane.f32.xlu0 %v822
  %v824 = vpop.xlane.xlu0 %823
  %v825 = vsel %vm339, %v811, 0.0
  %826 = vadd.xlane.f32.xlu0 %v825
  %v827 = vpop.xlane.xlu0 %826
  %v828 = vsel %vm339, %v816, 0.0
  %829 = vadd.xlane.f32.xlu0 %v828
  %v830 = vpop.xlane.xlu0 %829
  %v831 = vmul.f32 %v821, %v352
  %v832 = vmul.f32 %v824, %v352
  %v833 = vmul.f32 %v827, %v352
  %v834 = vmul.f32 %v830, %v352
  %v835 = vmul.f32 %v801, %v801
  %v836 = vmul.f32 %v806, %v806
  %v837 = vmul.f32 %v811, %v811
  %v838 = vmul.f32 %v816, %v816
  %v839 = vsel %vm339, %v835, 0.0
  %840 = vadd.xlane.f32.xlu0 %v839
  %v841 = vpop.xlane.xlu0 %840
  %v842 = vsel %vm339, %v836, 0.0
  %843 = vadd.xlane.f32.xlu0 %v842
  %v844 = vpop.xlane.xlu0 %843
  %v845 = vsel %vm339, %v837, 0.0
  %846 = vadd.xlane.f32.xlu0 %v845
  %v847 = vpop.xlane.xlu0 %846
  %v848 = vsel %vm339, %v838, 0.0
  %849 = vadd.xlane.f32.xlu0 %v848
  %v850 = vpop.xlane.xlu0 %849
  %v851 = vmul.f32 %v841, %v352
  %v852 = vmul.f32 %v844, %v352
  %v853 = vmul.f32 %v847, %v352
  %v854 = vmul.f32 %v850, %v352
  %v855 = vmul.f32 %v831, %v831
  %v856 = vmul.f32 %v832, %v832
  %v857 = vmul.f32 %v833, %v833
  %v858 = vmul.f32 %v834, %v834
  %v859 = vsub.f32 %v851, %v855
  %v860 = vsub.f32 %v852, %v856
  %v861 = vsub.f32 %v853, %v857
  %v862 = vsub.f32 %v854, %v858
  %v863 = vadd.f32 %v859, 0.8
  %v864 = vadd.f32 %v860, 0.8
  %v865 = vadd.f32 %v861, 0.8
  %v866 = vadd.f32 %v862, 0.8
  %v867 = vrsqrt.pop %v863
  %v868 = vrsqrt.pop %v864
  %v869 = vrsqrt.pop %v865
  %v870 = vrsqrt.pop %v866
  %v871 = vmul.f32 %v385, %v867
  %v872 = vmul.f32 %v386, %v868
  %v873 = vmul.f32 %v387, %v869
  %v874 = vmul.f32 %v388, %v870
  %v875 = vmul.f32 %v831, %v871
  %v876 = vmul.f32 %v832, %v872
  %v877 = vmul.f32 %v833, %v873
  %v878 = vmul.f32 %v834, %v874
  %883 = vrot.lane.b32.xlu0 %v875, 4
  %v884 = vpop.permute.xlu0 %883
  %885 = vrot.lane.b32.xlu0 %v876, 4
  %v886 = vpop.permute.xlu0 %885
  %887 = vrot.lane.b32.xlu0 %v877, 4
  %v888 = vpop.permute.xlu0 %887
  %889 = vrot.lane.b32.xlu0 %v878, 4
  %v890 = vpop.permute.xlu0 %889
  %v895 = vsub.f32 %v385, %v884
  %v896 = vsub.f32 %v386, %v886
  %v897 = vsub.f32 %v387, %v888
  %v898 = vsub.f32 %v388, %v890
  %900 = vset.pattern.permute.xlu0 2
  %901 = vperm.xlu0 %900, %v871
  %v902 = vpop.permute.xlu0 %901
  %905 = vset.pattern.permute.xlu0 2
  %906 = vperm.xlu0 %905, %v872
  %v907 = vpop.permute.xlu0 %906
  %910 = vset.pattern.permute.xlu0 2
  %911 = vperm.xlu0 %910, %v873
  %v912 = vpop.permute.xlu0 %911
  %915 = vset.pattern.permute.xlu0 2
  %916 = vperm.xlu0 %915, %v874
  %v917 = vpop.permute.xlu0 %916
  %v919 = vmul.f32 %v801, %v902
  %v920 = vmul.f32 %v806, %v907
  %v921 = vmul.f32 %v811, %v912
  %v922 = vmul.f32 %v816, %v917
  %924 = vset.pattern.permute.xlu0 6
  %925 = vperm.xlu0 %924, %v895
  %v926 = vpop.permute.xlu0 %925
  %929 = vset.pattern.permute.xlu0 6
  %930 = vperm.xlu0 %929, %v896
  %v931 = vpop.permute.xlu0 %930
  %934 = vset.pattern.permute.xlu0 6
  %935 = vperm.xlu0 %934, %v897
  %v936 = vpop.permute.xlu0 %935
  %939 = vset.pattern.permute.xlu0 6
  %940 = vperm.xlu0 %939, %v898
  %v941 = vpop.permute.xlu0 %940
  %v943 = vadd.f32 %v919, %v926
  %v944 = vadd.f32 %v920, %v931
  %v945 = vadd.f32 %v921, %v936
  %v946 = vadd.f32 %v922, %v941
  %v947 = vmul.f32 %v943, 0.2
  %v948 = vmul.f32 %v944, 0.2
  %v949 = vmul.f32 %v945, 0.2
  %v950 = vmul.f32 %v946, 0.2
  %v951 = vmax.f32 %v943, %v947
  %v952 = vmax.f32 %v944, %v948
  %v953 = vmax.f32 %v945, %v949
  %v954 = vmax.f32 %v946, %v950
  %v955 = vld [vmem:[%s3 + $0x60] sm:$0xff]
  %v956 = vld [vmem:[%s3 + $0x68] sm:$0xff]
  %v957 = vld [vmem:[%s3 + $0x70] sm:$0xff]
  %v958 = vld [vmem:[%s3 + $0x78] sm:$0xff]
  %v960 = vsel %vm241, %v955, 0
  %v963 = vsel %vm241, %v956, 0
  %v966 = vsel %vm241, %v957, 0
  %v969 = vsel %vm241, %v958, 0
  %971 = vmatprep.subr.mxu0 0.0
  %972 = vmatpush1.msra.mxu0 %v951
  %973 = vmatprep.subr.mxu0 0.0
  %974 = vmatpush1.msra.mxu0 %v952
  %975 = vmatprep.subr.mxu0 0.0
  %976 = vmatpush1.msra.mxu0 %v953
  %977 = vmatprep.subr.mxu0 0.0
  %978 = vmatpush1.msra.mxu0 %v954
  %979 = vmatprep.subr.mxu0 0.0
  %980 = vmatpush1.msra.mxu0 0.0
  %981 = vmatprep.subr.mxu0 0.0
  %982 = vmatpush1.msra.mxu0 0.0
  %983 = vmatprep.subr.mxu0 0.0
  %984 = vmatpush1.msra.mxu0 0.0
  %985 = vmatprep.subr.mxu0 0.0
  %986 = vmatpush1.msra.mxu0 0.0
  %987 = vmatprep.subr.mxu0 0.0
  %988 = vmatpush1.msra.mxu0 0.0
  %989 = vmatprep.subr.mxu0 0.0
  %990 = vmatpush1.msra.mxu0 0.0
  %991 = vmatprep.subr.mxu0 0.0
  %992 = vmatpush1.msra.mxu0 0.0
  %993 = vmatprep.subr.mxu0 0.0
  %994 = vmatpush1.msra.mxu0 0.0
  %995 = vmatprep.subr.mxu0 0.0
  %996 = vmatpush1.msra.mxu0 0.0
  %997 = vmatprep.subr.mxu0 0.0
  %998 = vmatpush1.msra.mxu0 0.0
  %999 = vmatprep.subr.mxu0 0.0
  %1000 = vmatpush1.msra.mxu0 0.0
  %1001 = vmatprep.subr.mxu0 0.0
  %1002 = vmatpush1.msra.mxu0 0.0
  %1003 = vmatprep.subr.mxu0 0.0
  %1004 = vmatpush1.msra.mxu0 0.0
  %1005 = vmatprep.subr.mxu0 0.0
  %1006 = vmatpush1.msra.mxu0 0.0
  %1007 = vmatprep.subr.mxu0 0.0
  %1008 = vmatpush1.msra.mxu0 0.0
  %1009 = vmatprep.subr.mxu0 0.0
  %1010 = vmatpush1.msra.mxu0 0.0
  %1011 = vmatprep.subr.mxu0 0.0
  %1012 = vmatpush1.msra.mxu0 0.0
  %1013 = vmatprep.subr.mxu0 0.0
  %1014 = vmatpush1.msra.mxu0 0.0
  %1015 = vmatprep.subr.mxu0 0.0
  %1016 = vmatpush1.msra.mxu0 0.0
  %1017 = vmatprep.subr.mxu0 0.0
  %1018 = vmatpush1.msra.mxu0 0.0
  %1019 = vmatprep.subr.mxu0 0.0
  %1020 = vmatpush1.msra.mxu0 0.0
  %1021 = vmatprep.subr.mxu0 0.0
  %1022 = vmatpush1.msra.mxu0 0.0
  %1023 = vmatprep.subr.mxu0 0.0
  %1024 = vmatpush1.msra.mxu0 0.0
  %1025 = vmatprep.subr.mxu0 0.0
  %1026 = vmatpush1.msra.mxu0 0.0
  %1027 = vmatprep.subr.mxu0 0.0
  %1028 = vmatpush1.msra.mxu0 0.0
  %1029 = vmatprep.subr.mxu0 0.0
  %1030 = vmatpush1.msra.mxu0 0.0
  %1031 = vmatprep.subr.mxu0 0.0
  %1032 = vmatpush1.msra.mxu0 0.0
  %1033 = vmatprep.subr.mxu0 0.0
  %1034 = vmatpush1.msra.mxu0 0.0
  %1035 = vmatprep.mubr.f32.mxu0 0.0
  %1036 = vmatmul.mubr.f32.gmra.mrb[0].mxu0 %v960
  %v1037 = vpop.f32.mrb[0].mxu0
  %v1038 = vadd.f32 0.0, %v1037
  %v1039 = vpop.f32.mrb[0].mxu0
  %1040 = vmatprep.mubr.f32.mxu0 0.0
  %1041 = vmatmul.mubr.f32.gmra.mrb[0].mxu0 %v963
  %v1042 = vpop.f32.mrb[0].mxu0
  %v1043 = vadd.f32 0.0, %v1042
  %v1044 = vpop.f32.mrb[0].mxu0
  %1045 = vmatprep.mubr.f32.mxu0 0.0
  %1046 = vmatmul.mubr.f32.gmra.mrb[0].mxu0 %v966
  %v1047 = vpop.f32.mrb[0].mxu0
  %v1048 = vadd.f32 0.0, %v1047
  %v1049 = vpop.f32.mrb[0].mxu0
  %1050 = vmatprep.mubr.f32.mxu0 0.0
  %1051 = vmatmul.mubr.f32.gmra.mrb[0].mxu0 %v969
  %v1052 = vpop.f32.mrb[0].mxu0
  %v1053 = vadd.f32 0.0, %v1052
  %v1054 = vpop.f32.mrb[0].mxu0
  %1055 = vdwg.mxu0
  %v1056 = vsel %vm339, %v1038, 0.0
  %1057 = vadd.xlane.f32.xlu0 %v1056
  %v1058 = vpop.xlane.xlu0 %1057
  %v1059 = vsel %vm339, %v1043, 0.0
  %1060 = vadd.xlane.f32.xlu0 %v1059
  %v1061 = vpop.xlane.xlu0 %1060
  %v1062 = vsel %vm339, %v1048, 0.0
  %1063 = vadd.xlane.f32.xlu0 %v1062
  %v1064 = vpop.xlane.xlu0 %1063
  %v1065 = vsel %vm339, %v1053, 0.0
  %1066 = vadd.xlane.f32.xlu0 %v1065
  %v1067 = vpop.xlane.xlu0 %1066
  %v1068 = vmul.f32 %v1058, %v352
  %v1069 = vmul.f32 %v1061, %v352
  %v1070 = vmul.f32 %v1064, %v352
  %v1071 = vmul.f32 %v1067, %v352
  %v1072 = vmul.f32 %v1038, %v1038
  %v1073 = vmul.f32 %v1043, %v1043
  %v1074 = vmul.f32 %v1048, %v1048
  %v1075 = vmul.f32 %v1053, %v1053
  %v1076 = vsel %vm339, %v1072, 0.0
  %1077 = vadd.xlane.f32.xlu0 %v1076
  %v1078 = vpop.xlane.xlu0 %1077
  %v1079 = vsel %vm339, %v1073, 0.0
  %1080 = vadd.xlane.f32.xlu0 %v1079
  %v1081 = vpop.xlane.xlu0 %1080
  %v1082 = vsel %vm339, %v1074, 0.0
  %1083 = vadd.xlane.f32.xlu0 %v1082
  %v1084 = vpop.xlane.xlu0 %1083
  %v1085 = vsel %vm339, %v1075, 0.0
  %1086 = vadd.xlane.f32.xlu0 %v1085
  %v1087 = vpop.xlane.xlu0 %1086
  %v1088 = vmul.f32 %v1078, %v352
  %v1089 = vmul.f32 %v1081, %v352
  %v1090 = vmul.f32 %v1084, %v352
  %v1091 = vmul.f32 %v1087, %v352
  %v1092 = vmul.f32 %v1068, %v1068
  %v1093 = vmul.f32 %v1069, %v1069
  %v1094 = vmul.f32 %v1070, %v1070
  %v1095 = vmul.f32 %v1071, %v1071
  %v1096 = vsub.f32 %v1088, %v1092
  %v1097 = vsub.f32 %v1089, %v1093
  %v1098 = vsub.f32 %v1090, %v1094
  %v1099 = vsub.f32 %v1091, %v1095
  %v1100 = vadd.f32 %v1096, 0.8
  %v1101 = vadd.f32 %v1097, 0.8
  %v1102 = vadd.f32 %v1098, 0.8
  %v1103 = vadd.f32 %v1099, 0.8
  %v1104 = vrsqrt.pop %v1100
  %v1105 = vrsqrt.pop %v1101
  %v1106 = vrsqrt.pop %v1102
  %v1107 = vrsqrt.pop %v1103
  %v1108 = vmul.f32 %v385, %v1104
  %v1109 = vmul.f32 %v386, %v1105
  %v1110 = vmul.f32 %v387, %v1106
  %v1111 = vmul.f32 %v388, %v1107
  %v1112 = vmul.f32 %v1068, %v1108
  %v1113 = vmul.f32 %v1069, %v1109
  %v1114 = vmul.f32 %v1070, %v1110
  %v1115 = vmul.f32 %v1071, %v1111
  %1120 = vrot.lane.b32.xlu0 %v1112, 4
  %v1121 = vpop.permute.xlu0 %1120
  %1122 = vrot.lane.b32.xlu0 %v1113, 4
  %v1123 = vpop.permute.xlu0 %1122
  %1124 = vrot.lane.b32.xlu0 %v1114, 4
  %v1125 = vpop.permute.xlu0 %1124
  %1126 = vrot.lane.b32.xlu0 %v1115, 4
  %v1127 = vpop.permute.xlu0 %1126
  %v1132 = vsub.f32 %v385, %v1121
  %v1133 = vsub.f32 %v386, %v1123
  %v1134 = vsub.f32 %v387, %v1125
  %v1135 = vsub.f32 %v388, %v1127
  %1137 = vset.pattern.permute.xlu0 3
  %1138 = vperm.xlu0 %1137, %v1108
  %v1139 = vpop.permute.xlu0 %1138
  %1142 = vset.pattern.permute.xlu0 3
  %1143 = vperm.xlu0 %1142, %v1109
  %v1144 = vpop.permute.xlu0 %1143
  %1147 = vset.pattern.permute.xlu0 3
  %1148 = vperm.xlu0 %1147, %v1110
  %v1149 = vpop.permute.xlu0 %1148
  %1152 = vset.pattern.permute.xlu0 3
  %1153 = vperm.xlu0 %1152, %v1111
  %v1154 = vpop.permute.xlu0 %1153
  %v1156 = vmul.f32 %v1038, %v1139
  %v1157 = vmul.f32 %v1043, %v1144
  %v1158 = vmul.f32 %v1048, %v1149
  %v1159 = vmul.f32 %v1053, %v1154
  %1161 = vset.pattern.permute.xlu0 7
  %1162 = vperm.xlu0 %1161, %v1132
  %v1163 = vpop.permute.xlu0 %1162
  %1166 = vset.pattern.permute.xlu0 7
  %1167 = vperm.xlu0 %1166, %v1133
  %v1168 = vpop.permute.xlu0 %1167
  %1171 = vset.pattern.permute.xlu0 7
  %1172 = vperm.xlu0 %1171, %v1134
  %v1173 = vpop.permute.xlu0 %1172
  %1176 = vset.pattern.permute.xlu0 7
  %1177 = vperm.xlu0 %1176, %v1135
  %v1178 = vpop.permute.xlu0 %1177
  %v1180 = vadd.f32 %v1156, %v1163
  %v1181 = vadd.f32 %v1157, %v1168
  %v1182 = vadd.f32 %v1158, %v1173
  %v1183 = vadd.f32 %v1159, %v1178
  %v1184 = vmul.f32 %v1180, 0.2
  %v1185 = vmul.f32 %v1181, 0.2
  %v1186 = vmul.f32 %v1182, 0.2
  %v1187 = vmul.f32 %v1183, 0.2
  %v1188 = vmax.f32 %v1180, %v1184
  %v1189 = vmax.f32 %v1181, %v1185
  %v1190 = vmax.f32 %v1182, %v1186
  %v1191 = vmax.f32 %v1183, %v1187
  %v1192 = vld [vmem:[%s5] sm:$0xf]
  %1194 = vset.pattern.permute.xlu0 0
  %1195 = vperm.xlu0 %1194, %v1192
  %v1196 = vpop.permute.xlu0 %1195
  %1202 = vrot.lane.b32.xlu0 %v385, 120
  %v1203 = vpop.permute.xlu0 %1202
  %1204 = vrot.lane.b32.xlu0 %v386, 120
  %v1205 = vpop.permute.xlu0 %1204
  %1206 = vrot.lane.b32.xlu0 %v387, 120
  %v1207 = vpop.permute.xlu0 %1206
  %1208 = vrot.lane.b32.xlu0 %v388, 120
  %v1209 = vpop.permute.xlu0 %1208
  %1214 = vxpose.xlu0.b32.start [1/16] %v1203, 128
  %1215 = vxpose.xlu0.b32.cont [2/16] %v1205, 128
  %1216 = vxpose.xlu0.b32.cont [3/16] %v1207, 128
  %1217 = vxpose.xlu0.b32.cont [4/16] %v1209, 128
  %1218 = vxpose.xlu0.b32.cont [5/16] 0.0, 128
  %1219 = vxpose.xlu0.b32.cont [6/16] 0.0, 128
  %1220 = vxpose.xlu0.b32.cont [7/16] 0.0, 128
  %1221 = vxpose.xlu0.b32.cont [8/16] 0.0, 128
  %1222 = vxpose.xlu0.b32.cont [9/16] 0.0, 128
  %1223 = vxpose.xlu0.b32.cont [10/16] 0.0, 128
  %1224 = vxpose.xlu0.b32.cont [11/16] 0.0, 128
  %1225 = vxpose.xlu0.b32.cont [12/16] 0.0, 128
  %1226 = vxpose.xlu0.b32.cont [13/16] 0.0, 128
  %1227 = vxpose.xlu0.b32.cont [14/16] 0.0, 128
  %1228 = vxpose.xlu0.b32.cont [15/16] 0.0, 128
  %1229 = vxpose.xlu0.b32.end [16/16] 0.0, 128
  %v1230 = vpop.trf.xlu0
  %v1231 = vpop.trf.xlu0
  %v1232 = vpop.trf.xlu0
  %v1233 = vpop.trf.xlu0
  %v1234 = vpop.trf.xlu0
  %v1235 = vpop.trf.xlu0
  %v1236 = vpop.trf.xlu0
  %v1237 = vpop.trf.xlu0
  %v1238 = vpop.trf.xlu0
  %v1239 = vpop.trf.xlu0
  %v1240 = vpop.trf.xlu0
  %v1241 = vpop.trf.xlu0
  %v1242 = vpop.trf.xlu0
  %v1243 = vpop.trf.xlu0
  %v1244 = vpop.trf.xlu0
  %v1245 = vpop.trf.xlu0
  %v1247 = vsel %vm241, %v1230, 0
  %1249 = vmatprep.subr.mxu0 0.0
  %1250 = vmatpush1.msra.mxu0 %v1188
  %1251 = vmatprep.subr.mxu0 0.0
  %1252 = vmatpush1.msra.mxu0 %v1189
  %1253 = vmatprep.subr.mxu0 0.0
  %1254 = vmatpush1.msra.mxu0 %v1190
  %1255 = vmatprep.subr.mxu0 0.0
  %1256 = vmatpush1.msra.mxu0 %v1191
  %1257 = vmatprep.subr.mxu0 0.0
  %1258 = vmatpush1.msra.mxu0 0.0
  %1259 = vmatprep.subr.mxu0 0.0
  %1260 = vmatpush1.msra.mxu0 0.0
  %1261 = vmatprep.subr.mxu0 0.0
  %1262 = vmatpush1.msra.mxu0 0.0
  %1263 = vmatprep.subr.mxu0 0.0
  %1264 = vmatpush1.msra.mxu0 0.0
  %1265 = vmatprep.subr.mxu0 0.0
  %1266 = vmatpush1.msra.mxu0 0.0
  %1267 = vmatprep.subr.mxu0 0.0
  %1268 = vmatpush1.msra.mxu0 0.0
  %1269 = vmatprep.subr.mxu0 0.0
  %1270 = vmatpush1.msra.mxu0 0.0
  %1271 = vmatprep.subr.mxu0 0.0
  %1272 = vmatpush1.msra.mxu0 0.0
  %1273 = vmatprep.subr.mxu0 0.0
  %1274 = vmatpush1.msra.mxu0 0.0
  %1275 = vmatprep.subr.mxu0 0.0
  %1276 = vmatpush1.msra.mxu0 0.0
  %1277 = vmatprep.subr.mxu0 0.0
  %1278 = vmatpush1.msra.mxu0 0.0
  %1279 = vmatprep.subr.mxu0 0.0
  %1280 = vmatpush1.msra.mxu0 0.0
  %1281 = vmatprep.subr.mxu0 0.0
  %1282 = vmatpush1.msra.mxu0 0.0
  %1283 = vmatprep.subr.mxu0 0.0
  %1284 = vmatpush1.msra.mxu0 0.0
  %1285 = vmatprep.subr.mxu0 0.0
  %1286 = vmatpush1.msra.mxu0 0.0
  %1287 = vmatprep.subr.mxu0 0.0
  %1288 = vmatpush1.msra.mxu0 0.0
  %1289 = vmatprep.subr.mxu0 0.0
  %1290 = vmatpush1.msra.mxu0 0.0
  %1291 = vmatprep.subr.mxu0 0.0
  %1292 = vmatpush1.msra.mxu0 0.0
  %1293 = vmatprep.subr.mxu0 0.0
  %1294 = vmatpush1.msra.mxu0 0.0
  %1295 = vmatprep.subr.mxu0 0.0
  %1296 = vmatpush1.msra.mxu0 0.0
  %1297 = vmatprep.subr.mxu0 0.0
  %1298 = vmatpush1.msra.mxu0 0.0
  %1299 = vmatprep.subr.mxu0 0.0
  %1300 = vmatpush1.msra.mxu0 0.0
  %1301 = vmatprep.subr.mxu0 0.0
  %1302 = vmatpush1.msra.mxu0 0.0
  %1303 = vmatprep.subr.mxu0 0.0
  %1304 = vmatpush1.msra.mxu0 0.0
  %1305 = vmatprep.subr.mxu0 0.0
  %1306 = vmatpush1.msra.mxu0 0.0
  %1307 = vmatprep.subr.mxu0 0.0
  %1308 = vmatpush1.msra.mxu0 0.0
  %1309 = vmatprep.subr.mxu0 0.0
  %1310 = vmatpush1.msra.mxu0 0.0
  %1311 = vmatprep.subr.mxu0 0.0
  %1312 = vmatpush1.msra.mxu0 0.0
  %1313 = vmatprep.mubr.f32.mxu0 0.0
  %1314 = vmatmul.mubr.f32.gmra.mrb[0].mxu0 %v1247
  %v1315 = vpop.f32.mrb[0].mxu0
  %v1316 = vadd.f32 %v1196, %v1315
  %v1317 = vpop.f32.mrb[0].mxu0
  %1318 = vdwg.mxu0
  %v1319 = vtanh.pop %v1316
  %vm1320 = vcmask 27648
  %1321 = vst.msk [vmem:[#allocation2 + $0x1] sm:$0xf] %vm1320, %v1319
  %v1322 = vld [vmem:[%s2 + $0x40] sm:$0xff]
  %v1323 = vld [vmem:[#allocation2] sm:$0x1f]
  %vm1324 = vcmask 39936
  %v1326 = vsel %vm1324, %v1322, 0
  %vm1328 = vcmask 1044480
  %v1330 = vsel %vm1328, %v1323, 0
  %1332 = vmatprep.subr.mxu0 0.0
  %1333 = vmatpush1.msra.mxu0 %v1330
  %1334 = vmatprep.subr.mxu0 0.0
  %1335 = vmatpush1.msra.mxu0 0.0
  %1336 = vmatprep.subr.mxu0 0.0
  %1337 = vmatpush1.msra.mxu0 0.0
  %1338 = vmatprep.subr.mxu0 0.0
  %1339 = vmatpush1.msra.mxu0 0.0
  %1340 = vmatprep.subr.mxu0 0.0
  %1341 = vmatpush1.msra.mxu0 0.0
  %1342 = vmatprep.subr.mxu0 0.0
  %1343 = vmatpush1.msra.mxu0 0.0
  %1344 = vmatprep.subr.mxu0 0.0
  %1345 = vmatpush1.msra.mxu0 0.0
  %1346 = vmatprep.subr.mxu0 0.0
  %1347 = vmatpush1.msra.mxu0 0.0
  %1348 = vmatprep.subr.mxu0 0.0
  %1349 = vmatpush1.msra.mxu0 0.0
  %1350 = vmatprep.subr.mxu0 0.0
  %1351 = vmatpush1.msra.mxu0 0.0
  %1352 = vmatprep.subr.mxu0 0.0
  %1353 = vmatpush1.msra.mxu0 0.0
  %1354 = vmatprep.subr.mxu0 0.0
  %1355 = vmatpush1.msra.mxu0 0.0
  %1356 = vmatprep.subr.mxu0 0.0
  %1357 = vmatpush1.msra.mxu0 0.0
  %1358 = vmatprep.subr.mxu0 0.0
  %1359 = vmatpush1.msra.mxu0 0.0
  %1360 = vmatprep.subr.mxu0 0.0
  %1361 = vmatpush1.msra.mxu0 0.0
  %1362 = vmatprep.subr.mxu0 0.0
  %1363 = vmatpush1.msra.mxu0 0.0
  %1364 = vmatprep.subr.mxu0 0.0
  %1365 = vmatpush1.msra.mxu0 0.0
  %1366 = vmatprep.subr.mxu0 0.0
  %1367 = vmatpush1.msra.mxu0 0.0
  %1368 = vmatprep.subr.mxu0 0.0
  %1369 = vmatpush1.msra.mxu0 0.0
  %1370 = vmatprep.subr.mxu0 0.0
  %1371 = vmatpush1.msra.mxu0 0.0
  %1372 = vmatprep.subr.mxu0 0.0
  %1373 = vmatpush1.msra.mxu0 0.0
  %1374 = vmatprep.subr.mxu0 0.0
  %1375 = vmatpush1.msra.mxu0 0.0
  %1376 = vmatprep.subr.mxu0 0.0
  %1377 = vmatpush1.msra.mxu0 0.0
  %1378 = vmatprep.subr.mxu0 0.0
  %1379 = vmatpush1.msra.mxu0 0.0
  %1380 = vmatprep.subr.mxu0 0.0
  %1381 = vmatpush1.msra.mxu0 0.0
  %1382 = vmatprep.subr.mxu0 0.0
  %1383 = vmatpush1.msra.mxu0 0.0
  %1384 = vmatprep.subr.mxu0 0.0
  %1385 = vmatpush1.msra.mxu0 0.0
  %1386 = vmatprep.subr.mxu0 0.0
  %1387 = vmatpush1.msra.mxu0 0.0
  %1388 = vmatprep.subr.mxu0 0.0
  %1389 = vmatpush1.msra.mxu0 0.0
  %1390 = vmatprep.subr.mxu0 0.0
  %1391 = vmatpush1.msra.mxu0 0.0
  %1392 = vmatprep.subr.mxu0 0.0
  %1393 = vmatpush1.msra.mxu0 0.0
  %1394 = vmatprep.subr.mxu0 0.0
  %1395 = vmatpush1.msra.mxu0 0.0
  %1396 = vmatprep.mubr.f32.mxu0 0.0
  %1397 = vmatmul.mubr.f32.gmra.mrb[0].mxu0 %v1326
  %v1398 = vpop.f32.mrb[0].mxu0
  %v1399 = vadd.f32 0.0, %v1398
  %v1400 = vpop.f32.mrb[0].mxu0
  %1401 = vdwg.mxu0
  %v1402 = vadd.f32 %v188, %v1399
  %v1403 = vmul.f32 %v1402, 0.2
  %v1404 = vmax.f32 %v1402, %v1403
  %v1405 = vld [vmem:[%s3 + $0x100] sm:$0xff]
  %vm1406 = vcmask 64512
  %v1408 = vsel %vm1406, %v1405, 0
  %1410 = vmatprep.subr.mxu0 0.0
  %1411 = vmatpush1.msra.mxu0 %v1404
  %1412 = vmatprep.subr.mxu0 0.0
  %1413 = vmatpush1.msra.mxu0 0.0
  %1414 = vmatprep.subr.mxu0 0.0
  %1415 = vmatpush1.msra.mxu0 0.0
  %1416 = vmatprep.subr.mxu0 0.0
  %1417 = vmatpush1.msra.mxu0 0.0
  %1418 = vmatprep.subr.mxu0 0.0
  %1419 = vmatpush1.msra.mxu0 0.0
  %1420 = vmatprep.subr.mxu0 0.0
  %1421 = vmatpush1.msra.mxu0 0.0
  %1422 = vmatprep.subr.mxu0 0.0
  %1423 = vmatpush1.msra.mxu0 0.0
  %1424 = vmatprep.subr.mxu0 0.0
  %1425 = vmatpush1.msra.mxu0 0.0
  %1426 = vmatprep.subr.mxu0 0.0
  %1427 = vmatpush1.msra.mxu0 0.0
  %1428 = vmatprep.subr.mxu0 0.0
  %1429 = vmatpush1.msra.mxu0 0.0
  %1430 = vmatprep.subr.mxu0 0.0
  %1431 = vmatpush1.msra.mxu0 0.0
  %1432 = vmatprep.subr.mxu0 0.0
  %1433 = vmatpush1.msra.mxu0 0.0
  %1434 = vmatprep.subr.mxu0 0.0
  %1435 = vmatpush1.msra.mxu0 0.0
  %1436 = vmatprep.subr.mxu0 0.0
  %1437 = vmatpush1.msra.mxu0 0.0
  %1438 = vmatprep.subr.mxu0 0.0
  %1439 = vmatpush1.msra.mxu0 0.0
  %1440 = vmatprep.subr.mxu0 0.0
  %1441 = vmatpush1.msra.mxu0 0.0
  %1442 = vmatprep.subr.mxu0 0.0
  %1443 = vmatpush1.msra.mxu0 0.0
  %1444 = vmatprep.subr.mxu0 0.0
  %1445 = vmatpush1.msra.mxu0 0.0
  %1446 = vmatprep.subr.mxu0 0.0
  %1447 = vmatpush1.msra.mxu0 0.0
  %1448 = vmatprep.subr.mxu0 0.0
  %1449 = vmatpush1.msra.mxu0 0.0
  %1450 = vmatprep.subr.mxu0 0.0
  %1451 = vmatpush1.msra.mxu0 0.0
  %1452 = vmatprep.subr.mxu0 0.0
  %1453 = vmatpush1.msra.mxu0 0.0
  %1454 = vmatprep.subr.mxu0 0.0
  %1455 = vmatpush1.msra.mxu0 0.0
  %1456 = vmatprep.subr.mxu0 0.0
  %1457 = vmatpush1.msra.mxu0 0.0
  %1458 = vmatprep.subr.mxu0 0.0
  %1459 = vmatpush1.msra.mxu0 0.0
  %1460 = vmatprep.subr.mxu0 0.0
  %1461 = vmatpush1.msra.mxu0 0.0
  %1462 = vmatprep.subr.mxu0 0.0
  %1463 = vmatpush1.msra.mxu0 0.0
  %1464 = vmatprep.subr.mxu0 0.0
  %1465 = vmatpush1.msra.mxu0 0.0
  %1466 = vmatprep.subr.mxu0 0.0
  %1467 = vmatpush1.msra.mxu0 0.0
  %1468 = vmatprep.subr.mxu0 0.0
  %1469 = vmatpush1.msra.mxu0 0.0
  %1470 = vmatprep.subr.mxu0 0.0
  %1471 = vmatpush1.msra.mxu0 0.0
  %1472 = vmatprep.subr.mxu0 0.0
  %1473 = vmatpush1.msra.mxu0 0.0
  %1474 = vmatprep.mubr.f32.mxu0 0.0
  %1475 = vmatmul.mubr.f32.gmra.mrb[0].mxu0 %v1408
  %v1476 = vpop.f32.mrb[0].mxu0
  %v1477 = vadd.f32 0.0, %v1476
  %v1478 = vpop.f32.mrb[0].mxu0
  %1479 = vdwg.mxu0
  %v1480 = vsel %vm339, %v1477, 0.0
  %1481 = vadd.xlane.f32.xlu0 %v1480
  %v1482 = vpop.xlane.xlu0 %1481
  %v1483 = vmul.f32 %v1482, %v352
  %v1484 = vmul.f32 %v1477, %v1477
  %v1485 = vsel %vm339, %v1484, 0.0
  %1486 = vadd.xlane.f32.xlu0 %v1485
  %v1487 = vpop.xlane.xlu0 %1486
  %v1488 = vmul.f32 %v1487, %v352
  %v1489 = vmul.f32 %v1483, %v1483
  %v1490 = vsub.f32 %v1488, %v1489
  %v1491 = vld [vmem:[%s4 + $0x40] sm:$0xff]
  %v1492 = vadd.f32 %v1490, 0.8
  %v1493 = vrsqrt.pop %v1492
  %v1494 = vmul.f32 %v1491, %v1493
  %v1495 = vmul.f32 %v1483, %v1494
  %1497 = vrot.lane.b32.xlu0 %v1495, 4
  %v1498 = vpop.permute.xlu0 %1497
  %v1500 = vsub.f32 %v1491, %v1498
  %1502 = vset.pattern.permute.xlu0 0
  %1503 = vperm.xlu0 %1502, %v1494
  %v1504 = vpop.permute.xlu0 %1503
  %v1506 = vmul.f32 %v1477, %v1504
  %1508 = vset.pattern.permute.xlu0 4
  %1509 = vperm.xlu0 %1508, %v1500
  %v1510 = vpop.permute.xlu0 %1509
  %v1512 = vadd.f32 %v1506, %v1510
  %v1513 = vmul.f32 %v1512, 0.2
  %v1514 = vmax.f32 %v1512, %v1513
  %v1515 = vld [vmem:[%s3 + $0x108] sm:$0xff]
  %v1517 = vsel %vm1406, %v1515, 0
  %1519 = vmatprep.subr.mxu0 0.0
  %1520 = vmatpush1.msra.mxu0 %v1514
  %1521 = vmatprep.subr.mxu0 0.0
  %1522 = vmatpush1.msra.mxu0 0.0
  %1523 = vmatprep.subr.mxu0 0.0
  %1524 = vmatpush1.msra.mxu0 0.0
  %1525 = vmatprep.subr.mxu0 0.0
  %1526 = vmatpush1.msra.mxu0 0.0
  %1527 = vmatprep.subr.mxu0 0.0
  %1528 = vmatpush1.msra.mxu0 0.0
  %1529 = vmatprep.subr.mxu0 0.0
  %1530 = vmatpush1.msra.mxu0 0.0
  %1531 = vmatprep.subr.mxu0 0.0
  %1532 = vmatpush1.msra.mxu0 0.0
  %1533 = vmatprep.subr.mxu0 0.0
  %1534 = vmatpush1.msra.mxu0 0.0
  %1535 = vmatprep.subr.mxu0 0.0
  %1536 = vmatpush1.msra.mxu0 0.0
  %1537 = vmatprep.subr.mxu0 0.0
  %1538 = vmatpush1.msra.mxu0 0.0
  %1539 = vmatprep.subr.mxu0 0.0
  %1540 = vmatpush1.msra.mxu0 0.0
  %1541 = vmatprep.subr.mxu0 0.0
  %1542 = vmatpush1.msra.mxu0 0.0
  %1543 = vmatprep.subr.mxu0 0.0
  %1544 = vmatpush1.msra.mxu0 0.0
  %1545 = vmatprep.subr.mxu0 0.0
  %1546 = vmatpush1.msra.mxu0 0.0
  %1547 = vmatprep.subr.mxu0 0.0
  %1548 = vmatpush1.msra.mxu0 0.0
  %1549 = vmatprep.subr.mxu0 0.0
  %1550 = vmatpush1.msra.mxu0 0.0
  %1551 = vmatprep.subr.mxu0 0.0
  %1552 = vmatpush1.msra.mxu0 0.0
  %1553 = vmatprep.subr.mxu0 0.0
  %1554 = vmatpush1.msra.mxu0 0.0
  %1555 = vmatprep.subr.mxu0 0.0
  %1556 = vmatpush1.msra.mxu0 0.0
  %1557 = vmatprep.subr.mxu0 0.0
  %1558 = vmatpush1.msra.mxu0 0.0
  %1559 = vmatprep.subr.mxu0 0.0
  %1560 = vmatpush1.msra.mxu0 0.0
  %1561 = vmatprep.subr.mxu0 0.0
  %1562 = vmatpush1.msra.mxu0 0.0
  %1563 = vmatprep.subr.mxu0 0.0
  %1564 = vmatpush1.msra.mxu0 0.0
  %1565 = vmatprep.subr.mxu0 0.0
  %1566 = vmatpush1.msra.mxu0 0.0
  %1567 = vmatprep.subr.mxu0 0.0
  %1568 = vmatpush1.msra.mxu0 0.0
  %1569 = vmatprep.subr.mxu0 0.0
  %1570 = vmatpush1.msra.mxu0 0.0
  %1571 = vmatprep.subr.mxu0 0.0
  %1572 = vmatpush1.msra.mxu0 0.0
  %1573 = vmatprep.subr.mxu0 0.0
  %1574 = vmatpush1.msra.mxu0 0.0
  %1575 = vmatprep.subr.mxu0 0.0
  %1576 = vmatpush1.msra.mxu0 0.0
  %1577 = vmatprep.subr.mxu0 0.0
  %1578 = vmatpush1.msra.mxu0 0.0
  %1579 = vmatprep.subr.mxu0 0.0
  %1580 = vmatpush1.msra.mxu0 0.0
  %1581 = vmatprep.subr.mxu0 0.0
  %1582 = vmatpush1.msra.mxu0 0.0
  %1583 = vmatprep.mubr.f32.mxu0 0.0
  %1584 = vmatmul.mubr.f32.gmra.mrb[0].mxu0 %v1517
  %v1585 = vpop.f32.mrb[0].mxu0
  %v1586 = vadd.f32 0.0, %v1585
  %v1587 = vpop.f32.mrb[0].mxu0
  %1588 = vdwg.mxu0
  %v1589 = vsel %vm339, %v1586, 0.0
  %1590 = vadd.xlane.f32.xlu0 %v1589
  %v1591 = vpop.xlane.xlu0 %1590
  %v1592 = vmul.f32 %v1591, %v352
  %v1593 = vmul.f32 %v1586, %v1586
  %v1594 = vsel %vm339, %v1593, 0.0
  %1595 = vadd.xlane.f32.xlu0 %v1594
  %v1596 = vpop.xlane.xlu0 %1595
  %v1597 = vmul.f32 %v1596, %v352
  %v1598 = vmul.f32 %v1592, %v1592
  %v1599 = vsub.f32 %v1597, %v1598
  %v1600 = vadd.f32 %v1599, 0.8
  %v1601 = vrsqrt.pop %v1600
  %v1602 = vmul.f32 %v1491, %v1601
  %v1603 = vmul.f32 %v1592, %v1602
  %1605 = vrot.lane.b32.xlu0 %v1603, 4
  %v1606 = vpop.permute.xlu0 %1605
  %v1608 = vsub.f32 %v1491, %v1606
  %1610 = vset.pattern.permute.xlu0 1
  %1611 = vperm.xlu0 %1610, %v1602
  %v1612 = vpop.permute.xlu0 %1611
  %v1614 = vmul.f32 %v1586, %v1612
  %1616 = vset.pattern.permute.xlu0 5
  %1617 = vperm.xlu0 %1616, %v1608
  %v1618 = vpop.permute.xlu0 %1617
  %v1620 = vadd.f32 %v1614, %v1618
  %v1621 = vmul.f32 %v1620, 0.2
  %v1622 = vmax.f32 %v1620, %v1621
  %v1623 = vld [vmem:[%s3 + $0x110] sm:$0xff]
  %v1625 = vsel %vm1406, %v1623, 0
  %1627 = vmatprep.subr.mxu0 0.0
  %1628 = vmatpush1.msra.mxu0 %v1622
  %1629 = vmatprep.subr.mxu0 0.0
  %1630 = vmatpush1.msra.mxu0 0.0
  %1631 = vmatprep.subr.mxu0 0.0
  %1632 = vmatpush1.msra.mxu0 0.0
  %1633 = vmatprep.subr.mxu0 0.0
  %1634 = vmatpush1.msra.mxu0 0.0
  %1635 = vmatprep.subr.mxu0 0.0
  %1636 = vmatpush1.msra.mxu0 0.0
  %1637 = vmatprep.subr.mxu0 0.0
  %1638 = vmatpush1.msra.mxu0 0.0
  %1639 = vmatprep.subr.mxu0 0.0
  %1640 = vmatpush1.msra.mxu0 0.0
  %1641 = vmatprep.subr.mxu0 0.0
  %1642 = vmatpush1.msra.mxu0 0.0
  %1643 = vmatprep.subr.mxu0 0.0
  %1644 = vmatpush1.msra.mxu0 0.0
  %1645 = vmatprep.subr.mxu0 0.0
  %1646 = vmatpush1.msra.mxu0 0.0
  %1647 = vmatprep.subr.mxu0 0.0
  %1648 = vmatpush1.msra.mxu0 0.0
  %1649 = vmatprep.subr.mxu0 0.0
  %1650 = vmatpush1.msra.mxu0 0.0
  %1651 = vmatprep.subr.mxu0 0.0
  %1652 = vmatpush1.msra.mxu0 0.0
  %1653 = vmatprep.subr.mxu0 0.0
  %1654 = vmatpush1.msra.mxu0 0.0
  %1655 = vmatprep.subr.mxu0 0.0
  %1656 = vmatpush1.msra.mxu0 0.0
  %1657 = vmatprep.subr.mxu0 0.0
  %1658 = vmatpush1.msra.mxu0 0.0
  %1659 = vmatprep.subr.mxu0 0.0
  %1660 = vmatpush1.msra.mxu0 0.0
  %1661 = vmatprep.subr.mxu0 0.0
  %1662 = vmatpush1.msra.mxu0 0.0
  %1663 = vmatprep.subr.mxu0 0.0
  %1664 = vmatpush1.msra.mxu0 0.0
  %1665 = vmatprep.subr.mxu0 0.0
  %1666 = vmatpush1.msra.mxu0 0.0
  %1667 = vmatprep.subr.mxu0 0.0
  %1668 = vmatpush1.msra.mxu0 0.0
  %1669 = vmatprep.subr.mxu0 0.0
  %1670 = vmatpush1.msra.mxu0 0.0
  %1671 = vmatprep.subr.mxu0 0.0
  %1672 = vmatpush1.msra.mxu0 0.0
  %1673 = vmatprep.subr.mxu0 0.0
  %1674 = vmatpush1.msra.mxu0 0.0
  %1675 = vmatprep.subr.mxu0 0.0
  %1676 = vmatpush1.msra.mxu0 0.0
  %1677 = vmatprep.subr.mxu0 0.0
  %1678 = vmatpush1.msra.mxu0 0.0
  %1679 = vmatprep.subr.mxu0 0.0
  %1680 = vmatpush1.msra.mxu0 0.0
  %1681 = vmatprep.subr.mxu0 0.0
  %1682 = vmatpush1.msra.mxu0 0.0
  %1683 = vmatprep.subr.mxu0 0.0
  %1684 = vmatpush1.msra.mxu0 0.0
  %1685 = vmatprep.subr.mxu0 0.0
  %1686 = vmatpush1.msra.mxu0 0.0
  %1687 = vmatprep.subr.mxu0 0.0
  %1688 = vmatpush1.msra.mxu0 0.0
  %1689 = vmatprep.subr.mxu0 0.0
  %1690 = vmatpush1.msra.mxu0 0.0
  %1691 = vmatprep.mubr.f32.mxu0 0.0
  %1692 = vmatmul.mubr.f32.gmra.mrb[0].mxu0 %v1625
  %v1693 = vpop.f32.mrb[0].mxu0
  %v1694 = vadd.f32 0.0, %v1693
  %v1695 = vpop.f32.mrb[0].mxu0
  %1696 = vdwg.mxu0
  %v1697 = vsel %vm339, %v1694, 0.0
  %1698 = vadd.xlane.f32.xlu0 %v1697
  %v1699 = vpop.xlane.xlu0 %1698
  %v1700 = vmul.f32 %v1699, %v352
  %v1701 = vmul.f32 %v1694, %v1694
  %v1702 = vsel %vm339, %v1701, 0.0
  %1703 = vadd.xlane.f32.xlu0 %v1702
  %v1704 = vpop.xlane.xlu0 %1703
  %v1705 = vmul.f32 %v1704, %v352
  %v1706 = vmul.f32 %v1700, %v1700
  %v1707 = vsub.f32 %v1705, %v1706
  %v1708 = vadd.f32 %v1707, 0.8
  %v1709 = vrsqrt.pop %v1708
  %v1710 = vmul.f32 %v1491, %v1709
  %v1711 = vmul.f32 %v1700, %v1710
  %1713 = vrot.lane.b32.xlu0 %v1711, 4
  %v1714 = vpop.permute.xlu0 %1713
  %v1716 = vsub.f32 %v1491, %v1714
  %1718 = vset.pattern.permute.xlu0 2
  %1719 = vperm.xlu0 %1718, %v1710
  %v1720 = vpop.permute.xlu0 %1719
  %v1722 = vmul.f32 %v1694, %v1720
  %1724 = vset.pattern.permute.xlu0 6
  %1725 = vperm.xlu0 %1724, %v1716
  %v1726 = vpop.permute.xlu0 %1725
  %v1728 = vadd.f32 %v1722, %v1726
  %v1729 = vmul.f32 %v1728, 0.2
  %v1730 = vmax.f32 %v1728, %v1729
  %v1731 = vld [vmem:[%s3 + $0x118] sm:$0xff]
  %v1733 = vsel %vm1406, %v1731, 0
  %1735 = vmatprep.subr.mxu0 0.0
  %1736 = vmatpush1.msra.mxu0 %v1730
  %1737 = vmatprep.subr.mxu0 0.0
  %1738 = vmatpush1.msra.mxu0 0.0
  %1739 = vmatprep.subr.mxu0 0.0
  %1740 = vmatpush1.msra.mxu0 0.0
  %1741 = vmatprep.subr.mxu0 0.0
  %1742 = vmatpush1.msra.mxu0 0.0
  %1743 = vmatprep.subr.mxu0 0.0
  %1744 = vmatpush1.msra.mxu0 0.0
  %1745 = vmatprep.subr.mxu0 0.0
  %1746 = vmatpush1.msra.mxu0 0.0
  %1747 = vmatprep.subr.mxu0 0.0
  %1748 = vmatpush1.msra.mxu0 0.0
  %1749 = vmatprep.subr.mxu0 0.0
  %1750 = vmatpush1.msra.mxu0 0.0
  %1751 = vmatprep.subr.mxu0 0.0
  %1752 = vmatpush1.msra.mxu0 0.0
  %1753 = vmatprep.subr.mxu0 0.0
  %1754 = vmatpush1.msra.mxu0 0.0
  %1755 = vmatprep.subr.mxu0 0.0
  %1756 = vmatpush1.msra.mxu0 0.0
  %1757 = vmatprep.subr.mxu0 0.0
  %1758 = vmatpush1.msra.mxu0 0.0
  %1759 = vmatprep.subr.mxu0 0.0
  %1760 = vmatpush1.msra.mxu0 0.0
  %1761 = vmatprep.subr.mxu0 0.0
  %1762 = vmatpush1.msra.mxu0 0.0
  %1763 = vmatprep.subr.mxu0 0.0
  %1764 = vmatpush1.msra.mxu0 0.0
  %1765 = vmatprep.subr.mxu0 0.0
  %1766 = vmatpush1.msra.mxu0 0.0
  %1767 = vmatprep.subr.mxu0 0.0
  %1768 = vmatpush1.msra.mxu0 0.0
  %1769 = vmatprep.subr.mxu0 0.0
  %1770 = vmatpush1.msra.mxu0 0.0
  %1771 = vmatprep.subr.mxu0 0.0
  %1772 = vmatpush1.msra.mxu0 0.0
  %1773 = vmatprep.subr.mxu0 0.0
  %1774 = vmatpush1.msra.mxu0 0.0
  %1775 = vmatprep.subr.mxu0 0.0
  %1776 = vmatpush1.msra.mxu0 0.0
  %1777 = vmatprep.subr.mxu0 0.0
  %1778 = vmatpush1.msra.mxu0 0.0
  %1779 = vmatprep.subr.mxu0 0.0
  %1780 = vmatpush1.msra.mxu0 0.0
  %1781 = vmatprep.subr.mxu0 0.0
  %1782 = vmatpush1.msra.mxu0 0.0
  %1783 = vmatprep.subr.mxu0 0.0
  %1784 = vmatpush1.msra.mxu0 0.0
  %1785 = vmatprep.subr.mxu0 0.0
  %1786 = vmatpush1.msra.mxu0 0.0
  %1787 = vmatprep.subr.mxu0 0.0
  %1788 = vmatpush1.msra.mxu0 0.0
  %1789 = vmatprep.subr.mxu0 0.0
  %1790 = vmatpush1.msra.mxu0 0.0
  %1791 = vmatprep.subr.mxu0 0.0
  %1792 = vmatpush1.msra.mxu0 0.0
  %1793 = vmatprep.subr.mxu0 0.0
  %1794 = vmatpush1.msra.mxu0 0.0
  %1795 = vmatprep.subr.mxu0 0.0
  %1796 = vmatpush1.msra.mxu0 0.0
  %1797 = vmatprep.subr.mxu0 0.0
  %1798 = vmatpush1.msra.mxu0 0.0
  %1799 = vmatprep.mubr.f32.mxu0 0.0
  %1800 = vmatmul.mubr.f32.gmra.mrb[0].mxu0 %v1733
  %v1801 = vpop.f32.mrb[0].mxu0
  %v1802 = vadd.f32 0.0, %v1801
  %v1803 = vpop.f32.mrb[0].mxu0
  %1804 = vdwg.mxu0
  %v1805 = vsel %vm339, %v1802, 0.0
  %1806 = vadd.xlane.f32.xlu0 %v1805
  %v1807 = vpop.xlane.xlu0 %1806
  %v1808 = vmul.f32 %v1807, %v352
  %v1809 = vmul.f32 %v1802, %v1802
  %v1810 = vsel %vm339, %v1809, 0.0
  %1811 = vadd.xlane.f32.xlu0 %v1810
  %v1812 = vpop.xlane.xlu0 %1811
  %v1813 = vmul.f32 %v1812, %v352
  %v1814 = vmul.f32 %v1808, %v1808
  %v1815 = vsub.f32 %v1813, %v1814
  %v1816 = vadd.f32 %v1815, 0.8
  %v1817 = vrsqrt.pop %v1816
  %v1818 = vmul.f32 %v1491, %v1817
  %v1819 = vmul.f32 %v1808, %v1818
  %1821 = vrot.lane.b32.xlu0 %v1819, 4
  %v1822 = vpop.permute.xlu0 %1821
  %v1824 = vsub.f32 %v1491, %v1822
  %1826 = vset.pattern.permute.xlu0 3
  %1827 = vperm.xlu0 %1826, %v1818
  %v1828 = vpop.permute.xlu0 %1827
  %v1830 = vmul.f32 %v1802, %v1828
  %1832 = vset.pattern.permute.xlu0 7
  %1833 = vperm.xlu0 %1832, %v1824
  %v1834 = vpop.permute.xlu0 %1833
  %v1836 = vadd.f32 %v1830, %v1834
  %v1837 = vmul.f32 %v1836, 0.2
  %v1838 = vmax.f32 %v1836, %v1837
  %v1839 = vld [vmem:[%s5 + $0x8] sm:$0x1]
  %1841 = vset.pattern.permute.xlu0 0
  %1842 = vperm.xlu0 %1841, %v1839
  %v1843 = vpop.permute.xlu0 %1842
  %1846 = vrot.lane.b32.xlu0 %v1491, 120
  %v1847 = vpop.permute.xlu0 %1846
  %1849 = vxpose.xlu0.b32.start [1/16] %v1847, 128
  %1850 = vxpose.xlu0.b32.cont [2/16] 0.0, 128
  %1851 = vxpose.xlu0.b32.cont [3/16] 0.0, 128
  %1852 = vxpose.xlu0.b32.cont [4/16] 0.0, 128
  %1853 = vxpose.xlu0.b32.cont [5/16] 0.0, 128
  %1854 = vxpose.xlu0.b32.cont [6/16] 0.0, 128
  %1855 = vxpose.xlu0.b32.cont [7/16] 0.0, 128
  %1856 = vxpose.xlu0.b32.cont [8/16] 0.0, 128
  %1857 = vxpose.xlu0.b32.cont [9/16] 0.0, 128
  %1858 = vxpose.xlu0.b32.cont [10/16] 0.0, 128
  %1859 = vxpose.xlu0.b32.cont [11/16] 0.0, 128
  %1860 = vxpose.xlu0.b32.cont [12/16] 0.0, 128
  %1861 = vxpose.xlu0.b32.cont [13/16] 0.0, 128
  %1862 = vxpose.xlu0.b32.cont [14/16] 0.0, 128
  %1863 = vxpose.xlu0.b32.cont [15/16] 0.0, 128
  %1864 = vxpose.xlu0.b32.end [16/16] 0.0, 128
  %v1865 = vpop.trf.xlu0
  %v1866 = vpop.trf.xlu0
  %v1867 = vpop.trf.xlu0
  %v1868 = vpop.trf.xlu0
  %v1869 = vpop.trf.xlu0
  %v1870 = vpop.trf.xlu0
  %v1871 = vpop.trf.xlu0
  %v1872 = vpop.trf.xlu0
  %v1873 = vpop.trf.xlu0
  %v1874 = vpop.trf.xlu0
  %v1875 = vpop.trf.xlu0
  %v1876 = vpop.trf.xlu0
  %v1877 = vpop.trf.xlu0
  %v1878 = vpop.trf.xlu0
  %v1879 = vpop.trf.xlu0
  %v1880 = vpop.trf.xlu0
  %v1882 = vsel %vm1406, %v1865, 0
  %1884 = vmatprep.subr.mxu0 0.0
  %1885 = vmatpush1.msra.mxu0 %v1838
  %1886 = vmatprep.subr.mxu0 0.0
  %1887 = vmatpush1.msra.mxu0 0.0
  %1888 = vmatprep.subr.mxu0 0.0
  %1889 = vmatpush1.msra.mxu0 0.0
  %1890 = vmatprep.subr.mxu0 0.0
  %1891 = vmatpush1.msra.mxu0 0.0
  %1892 = vmatprep.subr.mxu0 0.0
  %1893 = vmatpush1.msra.mxu0 0.0
  %1894 = vmatprep.subr.mxu0 0.0
  %1895 = vmatpush1.msra.mxu0 0.0
  %1896 = vmatprep.subr.mxu0 0.0
  %1897 = vmatpush1.msra.mxu0 0.0
  %1898 = vmatprep.subr.mxu0 0.0
  %1899 = vmatpush1.msra.mxu0 0.0
  %1900 = vmatprep.subr.mxu0 0.0
  %1901 = vmatpush1.msra.mxu0 0.0
  %1902 = vmatprep.subr.mxu0 0.0
  %1903 = vmatpush1.msra.mxu0 0.0
  %1904 = vmatprep.subr.mxu0 0.0
  %1905 = vmatpush1.msra.mxu0 0.0
  %1906 = vmatprep.subr.mxu0 0.0
  %1907 = vmatpush1.msra.mxu0 0.0
  %1908 = vmatprep.subr.mxu0 0.0
  %1909 = vmatpush1.msra.mxu0 0.0
  %1910 = vmatprep.subr.mxu0 0.0
  %1911 = vmatpush1.msra.mxu0 0.0
  %1912 = vmatprep.subr.mxu0 0.0
  %1913 = vmatpush1.msra.mxu0 0.0
  %1914 = vmatprep.subr.mxu0 0.0
  %1915 = vmatpush1.msra.mxu0 0.0
  %1916 = vmatprep.subr.mxu0 0.0
  %1917 = vmatpush1.msra.mxu0 0.0
  %1918 = vmatprep.subr.mxu0 0.0
  %1919 = vmatpush1.msra.mxu0 0.0
  %1920 = vmatprep.subr.mxu0 0.0
  %1921 = vmatpush1.msra.mxu0 0.0
  %1922 = vmatprep.subr.mxu0 0.0
  %1923 = vmatpush1.msra.mxu0 0.0
  %1924 = vmatprep.subr.mxu0 0.0
  %1925 = vmatpush1.msra.mxu0 0.0
  %1926 = vmatprep.subr.mxu0 0.0
  %1927 = vmatpush1.msra.mxu0 0.0
  %1928 = vmatprep.subr.mxu0 0.0
  %1929 = vmatpush1.msra.mxu0 0.0
  %1930 = vmatprep.subr.mxu0 0.0
  %1931 = vmatpush1.msra.mxu0 0.0
  %1932 = vmatprep.subr.mxu0 0.0
  %1933 = vmatpush1.msra.mxu0 0.0
  %1934 = vmatprep.subr.mxu0 0.0
  %1935 = vmatpush1.msra.mxu0 0.0
  %1936 = vmatprep.subr.mxu0 0.0
  %1937 = vmatpush1.msra.mxu0 0.0
  %1938 = vmatprep.subr.mxu0 0.0
  %1939 = vmatpush1.msra.mxu0 0.0
  %1940 = vmatprep.subr.mxu0 0.0
  %1941 = vmatpush1.msra.mxu0 0.0
  %1942 = vmatprep.subr.mxu0 0.0
  %1943 = vmatpush1.msra.mxu0 0.0
  %1944 = vmatprep.subr.mxu0 0.0
  %1945 = vmatpush1.msra.mxu0 0.0
  %1946 = vmatprep.subr.mxu0 0.0
  %1947 = vmatpush1.msra.mxu0 0.0
  %1948 = vmatprep.mubr.f32.mxu0 0.0
  %1949 = vmatmul.mubr.f32.gmra.mrb[0].mxu0 %v1882
  %v1950 = vpop.f32.mrb[0].mxu0
  %v1951 = vadd.f32 %v1843, %v1950
  %v1952 = vpop.f32.mrb[0].mxu0
  %1953 = vdwg.mxu0
  %v1954 = vtanh.pop %v1951
  %1955 = vst.msk [vmem:[#allocation2 + $0x5] sm:$0x1] %vm23, %v1954
  %v1956 = vld [vmem:[%s2 + $0x48] sm:$0xff]
  %v1957 = vld [vmem:[#allocation2] sm:$0x3f]
  %vm1958 = vcmask 48128
  %v1960 = vsel %vm1958, %v1956, 0
  %vm1962 = vcmask 1045504
  %v1964 = vsel %vm1962, %v1957, 0
  %1966 = vmatprep.subr.mxu0 0.0
  %1967 = vmatpush1.msra.mxu0 %v1964
  %1968 = vmatprep.subr.mxu0 0.0
  %1969 = vmatpush1.msra.mxu0 0.0
  %1970 = vmatprep.subr.mxu0 0.0
  %1971 = vmatpush1.msra.mxu0 0.0
  %1972 = vmatprep.subr.mxu0 0.0
  %1973 = vmatpush1.msra.mxu0 0.0
  %1974 = vmatprep.subr.mxu0 0.0
  %1975 = vmatpush1.msra.mxu0 0.0
  %1976 = vmatprep.subr.mxu0 0.0
  %1977 = vmatpush1.msra.mxu0 0.0
  %1978 = vmatprep.subr.mxu0 0.0
  %1979 = vmatpush1.msra.mxu0 0.0
  %1980 = vmatprep.subr.mxu0 0.0
  %1981 = vmatpush1.msra.mxu0 0.0
  %1982 = vmatprep.subr.mxu0 0.0
  %1983 = vmatpush1.msra.mxu0 0.0
  %1984 = vmatprep.subr.mxu0 0.0
  %1985 = vmatpush1.msra.mxu0 0.0
  %1986 = vmatprep.subr.mxu0 0.0
  %1987 = vmatpush1.msra.mxu0 0.0
  %1988 = vmatprep.subr.mxu0 0.0
  %1989 = vmatpush1.msra.mxu0 0.0
  %1990 = vmatprep.subr.mxu0 0.0
  %1991 = vmatpush1.msra.mxu0 0.0
  %1992 = vmatprep.subr.mxu0 0.0
  %1993 = vmatpush1.msra.mxu0 0.0
  %1994 = vmatprep.subr.mxu0 0.0
  %1995 = vmatpush1.msra.mxu0 0.0
  %1996 = vmatprep.subr.mxu0 0.0
  %1997 = vmatpush1.msra.mxu0 0.0
  %1998 = vmatprep.subr.mxu0 0.0
  %1999 = vmatpush1.msra.mxu0 0.0
  %2000 = vmatprep.subr.mxu0 0.0
  %2001 = vmatpush1.msra.mxu0 0.0
  %2002 = vmatprep.subr.mxu0 0.0
  %2003 = vmatpush1.msra.mxu0 0.0
  %2004 = vmatprep.subr.mxu0 0.0
  %2005 = vmatpush1.msra.mxu0 0.0
  %2006 = vmatprep.subr.mxu0 0.0
  %2007 = vmatpush1.msra.mxu0 0.0
  %2008 = vmatprep.subr.mxu0 0.0
  %2009 = vmatpush1.msra.mxu0 0.0
  %2010 = vmatprep.subr.mxu0 0.0
  %2011 = vmatpush1.msra.mxu0 0.0
  %2012 = vmatprep.subr.mxu0 0.0
  %2013 = vmatpush1.msra.mxu0 0.0
  %2014 = vmatprep.subr.mxu0 0.0
  %2015 = vmatpush1.msra.mxu0 0.0
  %2016 = vmatprep.subr.mxu0 0.0
  %2017 = vmatpush1.msra.mxu0 0.0
  %2018 = vmatprep.subr.mxu0 0.0
  %2019 = vmatpush1.msra.mxu0 0.0
  %2020 = vmatprep.subr.mxu0 0.0
  %2021 = vmatpush1.msra.mxu0 0.0
  %2022 = vmatprep.subr.mxu0 0.0
  %2023 = vmatpush1.msra.mxu0 0.0
  %2024 = vmatprep.subr.mxu0 0.0
  %2025 = vmatpush1.msra.mxu0 0.0
  %2026 = vmatprep.subr.mxu0 0.0
  %2027 = vmatpush1.msra.mxu0 0.0
  %2028 = vmatprep.subr.mxu0 0.0
  %2029 = vmatpush1.msra.mxu0 0.0
  %2030 = vmatprep.mubr.f32.mxu0 0.0
  %2031 = vmatmul.mubr.f32.gmra.mrb[0].mxu0 %v1960
  %v2032 = vpop.f32.mrb[0].mxu0
  %v2033 = vadd.f32 0.0, %v2032
  %v2034 = vpop.f32.mrb[0].mxu0
  %2035 = vdwg.mxu0
  %v2036 = vadd.f32 %v193, %v2033
  %v2037 = vmul.f32 %v2036, 0.2
  %v2038 = vmax.f32 %v2036, %v2037
  %v2039 = vld [vmem:[%s3 + $0x120] sm:$0xff]
  %v2041 = vsel %vm1406, %v2039, 0
  %2043 = vmatprep.subr.mxu0 0.0
  %2044 = vmatpush1.msra.mxu0 %v2038
  %2045 = vmatprep.subr.mxu0 0.0
  %2046 = vmatpush1.msra.mxu0 0.0
  %2047 = vmatprep.subr.mxu0 0.0
  %2048 = vmatpush1.msra.mxu0 0.0
  %2049 = vmatprep.subr.mxu0 0.0
  %2050 = vmatpush1.msra.mxu0 0.0
  %2051 = vmatprep.subr.mxu0 0.0
  %2052 = vmatpush1.msra.mxu0 0.0
  %2053 = vmatprep.subr.mxu0 0.0
  %2054 = vmatpush1.msra.mxu0 0.0
  %2055 = vmatprep.subr.mxu0 0.0
  %2056 = vmatpush1.msra.mxu0 0.0
  %2057 = vmatprep.subr.mxu0 0.0
  %2058 = vmatpush1.msra.mxu0 0.0
  %2059 = vmatprep.subr.mxu0 0.0
  %2060 = vmatpush1.msra.mxu0 0.0
  %2061 = vmatprep.subr.mxu0 0.0
  %2062 = vmatpush1.msra.mxu0 0.0
  %2063 = vmatprep.subr.mxu0 0.0
  %2064 = vmatpush1.msra.mxu0 0.0
  %2065 = vmatprep.subr.mxu0 0.0
  %2066 = vmatpush1.msra.mxu0 0.0
  %2067 = vmatprep.subr.mxu0 0.0
  %2068 = vmatpush1.msra.mxu0 0.0
  %2069 = vmatprep.subr.mxu0 0.0
  %2070 = vmatpush1.msra.mxu0 0.0
  %2071 = vmatprep.subr.mxu0 0.0
  %2072 = vmatpush1.msra.mxu0 0.0
  %2073 = vmatprep.subr.mxu0 0.0
  %2074 = vmatpush1.msra.mxu0 0.0
  %2075 = vmatprep.subr.mxu0 0.0
  %2076 = vmatpush1.msra.mxu0 0.0
  %2077 = vmatprep.subr.mxu0 0.0
  %2078 = vmatpush1.msra.mxu0 0.0
  %2079 = vmatprep.subr.mxu0 0.0
  %2080 = vmatpush1.msra.mxu0 0.0
  %2081 = vmatprep.subr.mxu0 0.0
  %2082 = vmatpush1.msra.mxu0 0.0
  %2083 = vmatprep.subr.mxu0 0.0
  %2084 = vmatpush1.msra.mxu0 0.0
  %2085 = vmatprep.subr.mxu0 0.0
  %2086 = vmatpush1.msra.mxu0 0.0
  %2087 = vmatprep.subr.mxu0 0.0
  %2088 = vmatpush1.msra.mxu0 0.0
  %2089 = vmatprep.subr.mxu0 0.0
  %2090 = vmatpush1.msra.mxu0 0.0
  %2091 = vmatprep.subr.mxu0 0.0
  %2092 = vmatpush1.msra.mxu0 0.0
  %2093 = vmatprep.subr.mxu0 0.0
  %2094 = vmatpush1.msra.mxu0 0.0
  %2095 = vmatprep.subr.mxu0 0.0
  %2096 = vmatpush1.msra.mxu0 0.0
  %2097 = vmatprep.subr.mxu0 0.0
  %2098 = vmatpush1.msra.mxu0 0.0
  %2099 = vmatprep.subr.mxu0 0.0
  %2100 = vmatpush1.msra.mxu0 0.0
  %2101 = vmatprep.subr.mxu0 0.0
  %2102 = vmatpush1.msra.mxu0 0.0
  %2103 = vmatprep.subr.mxu0 0.0
  %2104 = vmatpush1.msra.mxu0 0.0
  %2105 = vmatprep.subr.mxu0 0.0
  %2106 = vmatpush1.msra.mxu0 0.0
  %2107 = vmatprep.mubr.f32.mxu0 0.0
  %2108 = vmatmul.mubr.f32.gmra.mrb[0].mxu0 %v2041
  %v2109 = vpop.f32.mrb[0].mxu0
  %v2110 = vadd.f32 0.0, %v2109
  %v2111 = vpop.f32.mrb[0].mxu0
  %2112 = vdwg.mxu0
  %v2113 = vsel %vm339, %v2110, 0.0
  %2114 = vadd.xlane.f32.xlu0 %v2113
  %v2115 = vpop.xlane.xlu0 %2114
  %v2116 = vmul.f32 %v2115, %v352
  %v2117 = vmul.f32 %v2110, %v2110
  %v2118 = vsel %vm339, %v2117, 0.0
  %2119 = vadd.xlane.f32.xlu0 %v2118
  %v2120 = vpop.xlane.xlu0 %2119
  %v2121 = vmul.f32 %v2120, %v352
  %v2122 = vmul.f32 %v2116, %v2116
  %v2123 = vsub.f32 %v2121, %v2122
  %v2124 = vld [vmem:[%s4 + $0x48] sm:$0xff]
  %v2125 = vadd.f32 %v2123, 0.8
  %v2126 = vrsqrt.pop %v2125
  %v2127 = vmul.f32 %v2124, %v2126
  %v2128 = vmul.f32 %v2116, %v2127
  %2130 = vrot.lane.b32.xlu0 %v2128, 4
  %v2131 = vpop.permute.xlu0 %2130
  %v2133 = vsub.f32 %v2124, %v2131
  %2135 = vset.pattern.permute.xlu0 0
  %2136 = vperm.xlu0 %2135, %v2127
  %v2137 = vpop.permute.xlu0 %2136
  %v2139 = vmul.f32 %v2110, %v2137
  %2141 = vset.pattern.permute.xlu0 4
  %2142 = vperm.xlu0 %2141, %v2133
  %v2143 = vpop.permute.xlu0 %2142
  %v2145 = vadd.f32 %v2139, %v2143
  %v2146 = vmul.f32 %v2145, 0.2
  %v2147 = vmax.f32 %v2145, %v2146
  %v2148 = vld [vmem:[%s3 + $0x128] sm:$0xff]
  %v2150 = vsel %vm1406, %v2148, 0
  %2152 = vmatprep.subr.mxu0 0.0
  %2153 = vmatpush1.msra.mxu0 %v2147
  %2154 = vmatprep.subr.mxu0 0.0
  %2155 = vmatpush1.msra.mxu0 0.0
  %2156 = vmatprep.subr.mxu0 0.0
  %2157 = vmatpush1.msra.mxu0 0.0
  %2158 = vmatprep.subr.mxu0 0.0
  %2159 = vmatpush1.msra.mxu0 0.0
  %2160 = vmatprep.subr.mxu0 0.0
  %2161 = vmatpush1.msra.mxu0 0.0
  %2162 = vmatprep.subr.mxu0 0.0
  %2163 = vmatpush1.msra.mxu0 0.0
  %2164 = vmatprep.subr.mxu0 0.0
  %2165 = vmatpush1.msra.mxu0 0.0
  %2166 = vmatprep.subr.mxu0 0.0
  %2167 = vmatpush1.msra.mxu0 0.0
  %2168 = vmatprep.subr.mxu0 0.0
  %2169 = vmatpush1.msra.mxu0 0.0
  %2170 = vmatprep.subr.mxu0 0.0
  %2171 = vmatpush1.msra.mxu0 0.0
  %2172 = vmatprep.subr.mxu0 0.0
  %2173 = vmatpush1.msra.mxu0 0.0
  %2174 = vmatprep.subr.mxu0 0.0
  %2175 = vmatpush1.msra.mxu0 0.0
  %2176 = vmatprep.subr.mxu0 0.0
  %2177 = vmatpush1.msra.mxu0 0.0
  %2178 = vmatprep.subr.mxu0 0.0
  %2179 = vmatpush1.msra.mxu0 0.0
  %2180 = vmatprep.subr.mxu0 0.0
  %2181 = vmatpush1.msra.mxu0 0.0
  %2182 = vmatprep.subr.mxu0 0.0
  %2183 = vmatpush1.msra.mxu0 0.0
  %2184 = vmatprep.subr.mxu0 0.0
  %2185 = vmatpush1.msra.mxu0 0.0
  %2186 = vmatprep.subr.mxu0 0.0
  %2187 = vmatpush1.msra.mxu0 0.0
  %2188 = vmatprep.subr.mxu0 0.0
  %2189 = vmatpush1.msra.mxu0 0.0
  %2190 = vmatprep.subr.mxu0 0.0
  %2191 = vmatpush1.msra.mxu0 0.0
  %2192 = vmatprep.subr.mxu0 0.0
  %2193 = vmatpush1.msra.mxu0 0.0
  %2194 = vmatprep.subr.mxu0 0.0
  %2195 = vmatpush1.msra.mxu0 0.0
  %2196 = vmatprep.subr.mxu0 0.0
  %2197 = vmatpush1.msra.mxu0 0.0
  %2198 = vmatprep.subr.mxu0 0.0
  %2199 = vmatpush1.msra.mxu0 0.0
  %2200 = vmatprep.subr.mxu0 0.0
  %2201 = vmatpush1.msra.mxu0 0.0
  %2202 = vmatprep.subr.mxu0 0.0
  %2203 = vmatpush1.msra.mxu0 0.0
  %2204 = vmatprep.subr.mxu0 0.0
  %2205 = vmatpush1.msra.mxu0 0.0
  %2206 = vmatprep.subr.mxu0 0.0
  %2207 = vmatpush1.msra.mxu0 0.0
  %2208 = vmatprep.subr.mxu0 0.0
  %2209 = vmatpush1.msra.mxu0 0.0
  %2210 = vmatprep.subr.mxu0 0.0
  %2211 = vmatpush1.msra.mxu0 0.0
  %2212 = vmatprep.subr.mxu0 0.0
  %2213 = vmatpush1.msra.mxu0 0.0
  %2214 = vmatprep.subr.mxu0 0.0
  %2215 = vmatpush1.msra.mxu0 0.0
  %2216 = vmatprep.mubr.f32.mxu0 0.0
  %2217 = vmatmul.mubr.f32.gmra.mrb[0].mxu0 %v2150
  %v2218 = vpop.f32.mrb[0].mxu0
  %v2219 = vadd.f32 0.0, %v2218
  %v2220 = vpop.f32.mrb[0].mxu0
  %2221 = vdwg.mxu0
  %v2222 = vsel %vm339, %v2219, 0.0
  %2223 = vadd.xlane.f32.xlu0 %v2222
  %v2224 = vpop.xlane.xlu0 %2223
  %v2225 = vmul.f32 %v2224, %v352
  %v2226 = vmul.f32 %v2219, %v2219
  %v2227 = vsel %vm339, %v2226, 0.0
  %2228 = vadd.xlane.f32.xlu0 %v2227
  %v2229 = vpop.xlane.xlu0 %2228
  %v2230 = vmul.f32 %v2229, %v352
  %v2231 = vmul.f32 %v2225, %v2225
  %v2232 = vsub.f32 %v2230, %v2231
  %v2233 = vadd.f32 %v2232, 0.8
  %v2234 = vrsqrt.pop %v2233
  %v2235 = vmul.f32 %v2124, %v2234
  %v2236 = vmul.f32 %v2225, %v2235
  %2238 = vrot.lane.b32.xlu0 %v2236, 4
  %v2239 = vpop.permute.xlu0 %2238
  %v2241 = vsub.f32 %v2124, %v2239
  %2243 = vset.pattern.permute.xlu0 1
  %2244 = vperm.xlu0 %2243, %v2235
  %v2245 = vpop.permute.xlu0 %2244
  %v2247 = vmul.f32 %v2219, %v2245
  %2249 = vset.pattern.permute.xlu0 5
  %2250 = vperm.xlu0 %2249, %v2241
  %v2251 = vpop.permute.xlu0 %2250
  %v2253 = vadd.f32 %v2247, %v2251
  %v2254 = vmul.f32 %v2253, 0.2
  %v2255 = vmax.f32 %v2253, %v2254
  %v2256 = vld [vmem:[%s3 + $0x130] sm:$0xff]
  %v2258 = vsel %vm1406, %v2256, 0
  %2260 = vmatprep.subr.mxu0 0.0
  %2261 = vmatpush1.msra.mxu0 %v2255
  %2262 = vmatprep.subr.mxu0 0.0
  %2263 = vmatpush1.msra.mxu0 0.0
  %2264 = vmatprep.subr.mxu0 0.0
  %2265 = vmatpush1.msra.mxu0 0.0
  %2266 = vmatprep.subr.mxu0 0.0
  %2267 = vmatpush1.msra.mxu0 0.0
  %2268 = vmatprep.subr.mxu0 0.0
  %2269 = vmatpush1.msra.mxu0 0.0
  %2270 = vmatprep.subr.mxu0 0.0
  %2271 = vmatpush1.msra.mxu0 0.0
  %2272 = vmatprep.subr.mxu0 0.0
  %2273 = vmatpush1.msra.mxu0 0.0
  %2274 = vmatprep.subr.mxu0 0.0
  %2275 = vmatpush1.msra.mxu0 0.0
  %2276 = vmatprep.subr.mxu0 0.0
  %2277 = vmatpush1.msra.mxu0 0.0
  %2278 = vmatprep.subr.mxu0 0.0
  %2279 = vmatpush1.msra.mxu0 0.0
  %2280 = vmatprep.subr.mxu0 0.0
  %2281 = vmatpush1.msra.mxu0 0.0
  %2282 = vmatprep.subr.mxu0 0.0
  %2283 = vmatpush1.msra.mxu0 0.0
  %2284 = vmatprep.subr.mxu0 0.0
  %2285 = vmatpush1.msra.mxu0 0.0
  %2286 = vmatprep.subr.mxu0 0.0
  %2287 = vmatpush1.msra.mxu0 0.0
  %2288 = vmatprep.subr.mxu0 0.0
  %2289 = vmatpush1.msra.mxu0 0.0
  %2290 = vmatprep.subr.mxu0 0.0
  %2291 = vmatpush1.msra.mxu0 0.0
  %2292 = vmatprep.subr.mxu0 0.0
  %2293 = vmatpush1.msra.mxu0 0.0
  %2294 = vmatprep.subr.mxu0 0.0
  %2295 = vmatpush1.msra.mxu0 0.0
  %2296 = vmatprep.subr.mxu0 0.0
  %2297 = vmatpush1.msra.mxu0 0.0
  %2298 = vmatprep.subr.mxu0 0.0
  %2299 = vmatpush1.msra.mxu0 0.0
  %2300 = vmatprep.subr.mxu0 0.0
  %2301 = vmatpush1.msra.mxu0 0.0
  %2302 = vmatprep.subr.mxu0 0.0
  %2303 = vmatpush1.msra.mxu0 0.0
  %2304 = vmatprep.subr.mxu0 0.0
  %2305 = vmatpush1.msra.mxu0 0.0
  %2306 = vmatprep.subr.mxu0 0.0
  %2307 = vmatpush1.msra.mxu0 0.0
  %2308 = vmatprep.subr.mxu0 0.0
  %2309 = vmatpush1.msra.mxu0 0.0
  %2310 = vmatprep.subr.mxu0 0.0
  %2311 = vmatpush1.msra.mxu0 0.0
  %2312 = vmatprep.subr.mxu0 0.0
  %2313 = vmatpush1.msra.mxu0 0.0
  %2314 = vmatprep.subr.mxu0 0.0
  %2315 = vmatpush1.msra.mxu0 0.0
  %2316 = vmatprep.subr.mxu0 0.0
  %2317 = vmatpush1.msra.mxu0 0.0
  %2318 = vmatprep.subr.mxu0 0.0
  %2319 = vmatpush1.msra.mxu0 0.0
  %2320 = vmatprep.subr.mxu0 0.0
  %2321 = vmatpush1.msra.mxu0 0.0
  %2322 = vmatprep.subr.mxu0 0.0
  %2323 = vmatpush1.msra.mxu0 0.0
  %2324 = vmatprep.mubr.f32.mxu0 0.0
  %2325 = vmatmul.mubr.f32.gmra.mrb[0].mxu0 %v2258
  %v2326 = vpop.f32.mrb[0].mxu0
  %v2327 = vadd.f32 0.0, %v2326
  %v2328 = vpop.f32.mrb[0].mxu0
  %2329 = vdwg.mxu0
  %v2330 = vsel %vm339, %v2327, 0.0
  %2331 = vadd.xlane.f32.xlu0 %v2330
  %v2332 = vpop.xlane.xlu0 %2331
  %v2333 = vmul.f32 %v2332, %v352
  %v2334 = vmul.f32 %v2327, %v2327
  %v2335 = vsel %vm339, %v2334, 0.0
  %2336 = vadd.xlane.f32.xlu0 %v2335
  %v2337 = vpop.xlane.xlu0 %2336
  %v2338 = vmul.f32 %v2337, %v352
  %v2339 = vmul.f32 %v2333, %v2333
  %v2340 = vsub.f32 %v2338, %v2339
  %v2341 = vadd.f32 %v2340, 0.8
  %v2342 = vrsqrt.pop %v2341
  %v2343 = vmul.f32 %v2124, %v2342
  %v2344 = vmul.f32 %v2333, %v2343
  %2346 = vrot.lane.b32.xlu0 %v2344, 4
  %v2347 = vpop.permute.xlu0 %2346
  %v2349 = vsub.f32 %v2124, %v2347
  %2351 = vset.pattern.permute.xlu0 2
  %2352 = vperm.xlu0 %2351, %v2343
  %v2353 = vpop.permute.xlu0 %2352
  %v2355 = vmul.f32 %v2327, %v2353
  %2357 = vset.pattern.permute.xlu0 6
  %2358 = vperm.xlu0 %2357, %v2349
  %v2359 = vpop.permute.xlu0 %2358
  %v2361 = vadd.f32 %v2355, %v2359
  %v2362 = vmul.f32 %v2361, 0.2
  %v2363 = vmax.f32 %v2361, %v2362
  %v2364 = vld [vmem:[%s3 + $0x138] sm:$0xff]
  %v2366 = vsel %vm1406, %v2364, 0
  %2368 = vmatprep.subr.mxu0 0.0
  %2369 = vmatpush1.msra.mxu0 %v2363
  %2370 = vmatprep.subr.mxu0 0.0
  %2371 = vmatpush1.msra.mxu0 0.0
  %2372 = vmatprep.subr.mxu0 0.0
  %2373 = vmatpush1.msra.mxu0 0.0
  %2374 = vmatprep.subr.mxu0 0.0
  %2375 = vmatpush1.msra.mxu0 0.0
  %2376 = vmatprep.subr.mxu0 0.0
  %2377 = vmatpush1.msra.mxu0 0.0
  %2378 = vmatprep.subr.mxu0 0.0
  %2379 = vmatpush1.msra.mxu0 0.0
  %2380 = vmatprep.subr.mxu0 0.0
  %2381 = vmatpush1.msra.mxu0 0.0
  %2382 = vmatprep.subr.mxu0 0.0
  %2383 = vmatpush1.msra.mxu0 0.0
  %2384 = vmatprep.subr.mxu0 0.0
  %2385 = vmatpush1.msra.mxu0 0.0
  %2386 = vmatprep.subr.mxu0 0.0
  %2387 = vmatpush1.msra.mxu0 0.0
  %2388 = vmatprep.subr.mxu0 0.0
  %2389 = vmatpush1.msra.mxu0 0.0
  %2390 = vmatprep.subr.mxu0 0.0
  %2391 = vmatpush1.msra.mxu0 0.0
  %2392 = vmatprep.subr.mxu0 0.0
  %2393 = vmatpush1.msra.mxu0 0.0
  %2394 = vmatprep.subr.mxu0 0.0
  %2395 = vmatpush1.msra.mxu0 0.0
  %2396 = vmatprep.subr.mxu0 0.0
  %2397 = vmatpush1.msra.mxu0 0.0
  %2398 = vmatprep.subr.mxu0 0.0
  %2399 = vmatpush1.msra.mxu0 0.0
  %2400 = vmatprep.subr.mxu0 0.0
  %2401 = vmatpush1.msra.mxu0 0.0
  %2402 = vmatprep.subr.mxu0 0.0
  %2403 = vmatpush1.msra.mxu0 0.0
  %2404 = vmatprep.subr.mxu0 0.0
  %2405 = vmatpush1.msra.mxu0 0.0
  %2406 = vmatprep.subr.mxu0 0.0
  %2407 = vmatpush1.msra.mxu0 0.0
  %2408 = vmatprep.subr.mxu0 0.0
  %2409 = vmatpush1.msra.mxu0 0.0
  %2410 = vmatprep.subr.mxu0 0.0
  %2411 = vmatpush1.msra.mxu0 0.0
  %2412 = vmatprep.subr.mxu0 0.0
  %2413 = vmatpush1.msra.mxu0 0.0
  %2414 = vmatprep.subr.mxu0 0.0
  %2415 = vmatpush1.msra.mxu0 0.0
  %2416 = vmatprep.subr.mxu0 0.0
  %2417 = vmatpush1.msra.mxu0 0.0
  %2418 = vmatprep.subr.mxu0 0.0
  %2419 = vmatpush1.msra.mxu0 0.0
  %2420 = vmatprep.subr.mxu0 0.0
  %2421 = vmatpush1.msra.mxu0 0.0
  %2422 = vmatprep.subr.mxu0 0.0
  %2423 = vmatpush1.msra.mxu0 0.0
  %2424 = vmatprep.subr.mxu0 0.0
  %2425 = vmatpush1.msra.mxu0 0.0
  %2426 = vmatprep.subr.mxu0 0.0
  %2427 = vmatpush1.msra.mxu0 0.0
  %2428 = vmatprep.subr.mxu0 0.0
  %2429 = vmatpush1.msra.mxu0 0.0
  %2430 = vmatprep.subr.mxu0 0.0
  %2431 = vmatpush1.msra.mxu0 0.0
  %2432 = vmatprep.mubr.f32.mxu0 0.0
  %2433 = vmatmul.mubr.f32.gmra.mrb[0].mxu0 %v2366
  %v2434 = vpop.f32.mrb[0].mxu0
  %v2435 = vadd.f32 0.0, %v2434
  %v2436 = vpop.f32.mrb[0].mxu0
  %2437 = vdwg.mxu0
  %v2438 = vsel %vm339, %v2435, 0.0
  %2439 = vadd.xlane.f32.xlu0 %v2438
  %v2440 = vpop.xlane.xlu0 %2439
  %v2441 = vmul.f32 %v2440, %v352
  %v2442 = vmul.f32 %v2435, %v2435
  %v2443 = vsel %vm339, %v2442, 0.0
  %2444 = vadd.xlane.f32.xlu0 %v2443
  %v2445 = vpop.xlane.xlu0 %2444
  %v2446 = vmul.f32 %v2445, %v352
  %v2447 = vmul.f32 %v2441, %v2441
  %v2448 = vsub.f32 %v2446, %v2447
  %v2449 = vadd.f32 %v2448, 0.8
  %v2450 = vrsqrt.pop %v2449
  %v2451 = vmul.f32 %v2124, %v2450
  %v2452 = vmul.f32 %v2441, %v2451
  %2454 = vrot.lane.b32.xlu0 %v2452, 4
  %v2455 = vpop.permute.xlu0 %2454
  %v2457 = vsub.f32 %v2124, %v2455
  %2459 = vset.pattern.permute.xlu0 3
  %2460 = vperm.xlu0 %2459, %v2451
  %v2461 = vpop.permute.xlu0 %2460
  %v2463 = vmul.f32 %v2435, %v2461
  %2465 = vset.pattern.permute.xlu0 7
  %2466 = vperm.xlu0 %2465, %v2457
  %v2467 = vpop.permute.xlu0 %2466
  %v2469 = vadd.f32 %v2463, %v2467
  %v2470 = vmul.f32 %v2469, 0.2
  %v2471 = vmax.f32 %v2469, %v2470
  %v2472 = vld [vmem:[%s5 + $0x9] sm:$0x1]
  %2474 = vset.pattern.permute.xlu0 0
  %2475 = vperm.xlu0 %2474, %v2472
  %v2476 = vpop.permute.xlu0 %2475
  %2479 = vrot.lane.b32.xlu0 %v2124, 120
  %v2480 = vpop.permute.xlu0 %2479
  %2482 = vxpose.xlu0.b32.start [1/16] %v2480, 128
  %2483 = vxpose.xlu0.b32.cont [2/16] 0.0, 128
  %2484 = vxpose.xlu0.b32.cont [3/16] 0.0, 128
  %2485 = vxpose.xlu0.b32.cont [4/16] 0.0, 128
  %2486 = vxpose.xlu0.b32.cont [5/16] 0.0, 128
  %2487 = vxpose.xlu0.b32.cont [6/16] 0.0, 128
  %2488 = vxpose.xlu0.b32.cont [7/16] 0.0, 128
  %2489 = vxpose.xlu0.b32.cont [8/16] 0.0, 128
  %2490 = vxpose.xlu0.b32.cont [9/16] 0.0, 128
  %2491 = vxpose.xlu0.b32.cont [10/16] 0.0, 128
  %2492 = vxpose.xlu0.b32.cont [11/16] 0.0, 128
  %2493 = vxpose.xlu0.b32.cont [12/16] 0.0, 128
  %2494 = vxpose.xlu0.b32.cont [13/16] 0.0, 128
  %2495 = vxpose.xlu0.b32.cont [14/16] 0.0, 128
  %2496 = vxpose.xlu0.b32.cont [15/16] 0.0, 128
  %2497 = vxpose.xlu0.b32.end [16/16] 0.0, 128
  %v2498 = vpop.trf.xlu0
  %v2499 = vpop.trf.xlu0
  %v2500 = vpop.trf.xlu0
  %v2501 = vpop.trf.xlu0
  %v2502 = vpop.trf.xlu0
  %v2503 = vpop.trf.xlu0
  %v2504 = vpop.trf.xlu0
  %v2505 = vpop.trf.xlu0
  %v2506 = vpop.trf.xlu0
  %v2507 = vpop.trf.xlu0
  %v2508 = vpop.trf.xlu0
  %v2509 = vpop.trf.xlu0
  %v2510 = vpop.trf.xlu0
  %v2511 = vpop.trf.xlu0
  %v2512 = vpop.trf.xlu0
  %v2513 = vpop.trf.xlu0
  %v2515 = vsel %vm1406, %v2498, 0
  %2517 = vmatprep.subr.mxu0 0.0
  %2518 = vmatpush1.msra.mxu0 %v2471
  %2519 = vmatprep.subr.mxu0 0.0
  %2520 = vmatpush1.msra.mxu0 0.0
  %2521 = vmatprep.subr.mxu0 0.0
  %2522 = vmatpush1.msra.mxu0 0.0
  %2523 = vmatprep.subr.mxu0 0.0
  %2524 = vmatpush1.msra.mxu0 0.0
  %2525 = vmatprep.subr.mxu0 0.0
  %2526 = vmatpush1.msra.mxu0 0.0
  %2527 = vmatprep.subr.mxu0 0.0
  %2528 = vmatpush1.msra.mxu0 0.0
  %2529 = vmatprep.subr.mxu0 0.0
  %2530 = vmatpush1.msra.mxu0 0.0
  %2531 = vmatprep.subr.mxu0 0.0
  %2532 = vmatpush1.msra.mxu0 0.0
  %2533 = vmatprep.subr.mxu0 0.0
  %2534 = vmatpush1.msra.mxu0 0.0
  %2535 = vmatprep.subr.mxu0 0.0
  %2536 = vmatpush1.msra.mxu0 0.0
  %2537 = vmatprep.subr.mxu0 0.0
  %2538 = vmatpush1.msra.mxu0 0.0
  %2539 = vmatprep.subr.mxu0 0.0
  %2540 = vmatpush1.msra.mxu0 0.0
  %2541 = vmatprep.subr.mxu0 0.0
  %2542 = vmatpush1.msra.mxu0 0.0
  %2543 = vmatprep.subr.mxu0 0.0
  %2544 = vmatpush1.msra.mxu0 0.0
  %2545 = vmatprep.subr.mxu0 0.0
  %2546 = vmatpush1.msra.mxu0 0.0
  %2547 = vmatprep.subr.mxu0 0.0
  %2548 = vmatpush1.msra.mxu0 0.0
  %2549 = vmatprep.subr.mxu0 0.0
  %2550 = vmatpush1.msra.mxu0 0.0
  %2551 = vmatprep.subr.mxu0 0.0
  %2552 = vmatpush1.msra.mxu0 0.0
  %2553 = vmatprep.subr.mxu0 0.0
  %2554 = vmatpush1.msra.mxu0 0.0
  %2555 = vmatprep.subr.mxu0 0.0
  %2556 = vmatpush1.msra.mxu0 0.0
  %2557 = vmatprep.subr.mxu0 0.0
  %2558 = vmatpush1.msra.mxu0 0.0
  %2559 = vmatprep.subr.mxu0 0.0
  %2560 = vmatpush1.msra.mxu0 0.0
  %2561 = vmatprep.subr.mxu0 0.0
  %2562 = vmatpush1.msra.mxu0 0.0
  %2563 = vmatprep.subr.mxu0 0.0
  %2564 = vmatpush1.msra.mxu0 0.0
  %2565 = vmatprep.subr.mxu0 0.0
  %2566 = vmatpush1.msra.mxu0 0.0
  %2567 = vmatprep.subr.mxu0 0.0
  %2568 = vmatpush1.msra.mxu0 0.0
  %2569 = vmatprep.subr.mxu0 0.0
  %2570 = vmatpush1.msra.mxu0 0.0
  %2571 = vmatprep.subr.mxu0 0.0
  %2572 = vmatpush1.msra.mxu0 0.0
  %2573 = vmatprep.subr.mxu0 0.0
  %2574 = vmatpush1.msra.mxu0 0.0
  %2575 = vmatprep.subr.mxu0 0.0
  %2576 = vmatpush1.msra.mxu0 0.0
  %2577 = vmatprep.subr.mxu0 0.0
  %2578 = vmatpush1.msra.mxu0 0.0
  %2579 = vmatprep.subr.mxu0 0.0
  %2580 = vmatpush1.msra.mxu0 0.0
  %2581 = vmatprep.mubr.f32.mxu0 0.0
  %2582 = vmatmul.mubr.f32.gmra.mrb[0].mxu0 %v2515
  %v2583 = vpop.f32.mrb[0].mxu0
  %v2584 = vadd.f32 %v2476, %v2583
  %v2585 = vpop.f32.mrb[0].mxu0
  %2586 = vdwg.mxu0
  %v2587 = vtanh.pop %v2584
  %2588 = vst.msk [vmem:[#allocation2 + $0x6] sm:$0x1] %vm23, %v2587
  %v2589 = vld [vmem:[%s2 + $0x20] sm:$0xff]
  %v2590 = vld [vmem:[%s2 + $0x28] sm:$0xff]
  %v2591 = vld [vmem:[%s2 + $0x30] sm:$0xff]
  %v2592 = vld [vmem:[%s2 + $0x38] sm:$0xff]
  %v2593 = vld [vmem:[#allocation2] sm:$0x7f]
  %vm2594 = vcmask 56320
  %v2596 = vsel %vm2594, %v2589, 0
  %v2599 = vsel %vm2594, %v2590, 0
  %v2602 = vsel %vm2594, %v2591, 0
  %v2605 = vsel %vm2594, %v2592, 0
  %vm2607 = vcmask 1046528
  %v2609 = vsel %vm2607, %v2593, 0
  %2611 = vmatprep.subr.mxu0 0.0
  %2612 = vmatpush1.msra.mxu0 %v2609
  %2613 = vmatprep.subr.mxu0 0.0
  %2614 = vmatpush1.msra.mxu0 0.0
  %2615 = vmatprep.subr.mxu0 0.0
  %2616 = vmatpush1.msra.mxu0 0.0
  %2617 = vmatprep.subr.mxu0 0.0
  %2618 = vmatpush1.msra.mxu0 0.0
  %2619 = vmatprep.subr.mxu0 0.0
  %2620 = vmatpush1.msra.mxu0 0.0
  %2621 = vmatprep.subr.mxu0 0.0
  %2622 = vmatpush1.msra.mxu0 0.0
  %2623 = vmatprep.subr.mxu0 0.0
  %2624 = vmatpush1.msra.mxu0 0.0
  %2625 = vmatprep.subr.mxu0 0.0
  %2626 = vmatpush1.msra.mxu0 0.0
  %2627 = vmatprep.subr.mxu0 0.0
  %2628 = vmatpush1.msra.mxu0 0.0
  %2629 = vmatprep.subr.mxu0 0.0
  %2630 = vmatpush1.msra.mxu0 0.0
  %2631 = vmatprep.subr.mxu0 0.0
  %2632 = vmatpush1.msra.mxu0 0.0
  %2633 = vmatprep.subr.mxu0 0.0
  %2634 = vmatpush1.msra.mxu0 0.0
  %2635 = vmatprep.subr.mxu0 0.0
  %2636 = vmatpush1.msra.mxu0 0.0
  %2637 = vmatprep.subr.mxu0 0.0
  %2638 = vmatpush1.msra.mxu0 0.0
  %2639 = vmatprep.subr.mxu0 0.0
  %2640 = vmatpush1.msra.mxu0 0.0
  %2641 = vmatprep.subr.mxu0 0.0
  %2642 = vmatpush1.msra.mxu0 0.0
  %2643 = vmatprep.subr.mxu0 0.0
  %2644 = vmatpush1.msra.mxu0 0.0
  %2645 = vmatprep.subr.mxu0 0.0
  %2646 = vmatpush1.msra.mxu0 0.0
  %2647 = vmatprep.subr.mxu0 0.0
  %2648 = vmatpush1.msra.mxu0 0.0
  %2649 = vmatprep.subr.mxu0 0.0
  %2650 = vmatpush1.msra.mxu0 0.0
  %2651 = vmatprep.subr.mxu0 0.0
  %2652 = vmatpush1.msra.mxu0 0.0
  %2653 = vmatprep.subr.mxu0 0.0
  %2654 = vmatpush1.msra.mxu0 0.0
  %2655 = vmatprep.subr.mxu0 0.0
  %2656 = vmatpush1.msra.mxu0 0.0
  %2657 = vmatprep.subr.mxu0 0.0
  %2658 = vmatpush1.msra.mxu0 0.0
  %2659 = vmatprep.subr.mxu0 0.0
  %2660 = vmatpush1.msra.mxu0 0.0
  %2661 = vmatprep.subr.mxu0 0.0
  %2662 = vmatpush1.msra.mxu0 0.0
  %2663 = vmatprep.subr.mxu0 0.0
  %2664 = vmatpush1.msra.mxu0 0.0
  %2665 = vmatprep.subr.mxu0 0.0
  %2666 = vmatpush1.msra.mxu0 0.0
  %2667 = vmatprep.subr.mxu0 0.0
  %2668 = vmatpush1.msra.mxu0 0.0
  %2669 = vmatprep.subr.mxu0 0.0
  %2670 = vmatpush1.msra.mxu0 0.0
  %2671 = vmatprep.subr.mxu0 0.0
  %2672 = vmatpush1.msra.mxu0 0.0
  %2673 = vmatprep.subr.mxu0 0.0
  %2674 = vmatpush1.msra.mxu0 0.0
  %2675 = vmatprep.mubr.f32.mxu0 0.0
  %2676 = vmatmul.mubr.f32.gmra.mrb[0].mxu0 %v2596
  %v2677 = vpop.f32.mrb[0].mxu0
  %v2678 = vadd.f32 0.0, %v2677
  %v2679 = vpop.f32.mrb[0].mxu0
  %2680 = vmatprep.mubr.f32.mxu0 0.0
  %2681 = vmatmul.mubr.f32.gmra.mrb[0].mxu0 %v2599
  %v2682 = vpop.f32.mrb[0].mxu0
  %v2683 = vadd.f32 0.0, %v2682
  %v2684 = vpop.f32.mrb[0].mxu0
  %2685 = vmatprep.mubr.f32.mxu0 0.0
  %2686 = vmatmul.mubr.f32.gmra.mrb[0].mxu0 %v2602
  %v2687 = vpop.f32.mrb[0].mxu0
  %v2688 = vadd.f32 0.0, %v2687
  %v2689 = vpop.f32.mrb[0].mxu0
  %2690 = vmatprep.mubr.f32.mxu0 0.0
  %2691 = vmatmul.mubr.f32.gmra.mrb[0].mxu0 %v2605
  %v2692 = vpop.f32.mrb[0].mxu0
  %v2693 = vadd.f32 0.0, %v2692
  %v2694 = vpop.f32.mrb[0].mxu0
  %2695 = vdwg.mxu0
  %v2696 = vadd.f32 %v168, %v2678
  %v2697 = vadd.f32 %v173, %v2683
  %v2698 = vadd.f32 %v178, %v2688
  %v2699 = vadd.f32 %v183, %v2693
  %v2700 = vmul.f32 %v2696, 0.2
  %v2701 = vmul.f32 %v2697, 0.2
  %v2702 = vmul.f32 %v2698, 0.2
  %v2703 = vmul.f32 %v2699, 0.2
  %v2704 = vmax.f32 %v2696, %v2700
  %v2705 = vmax.f32 %v2697, %v2701
  %v2706 = vmax.f32 %v2698, %v2702
  %v2707 = vmax.f32 %v2699, %v2703
  %v2708 = vld [vmem:[%s3 + $0x80] sm:$0xff]
  %v2709 = vld [vmem:[%s3 + $0x88] sm:$0xff]
  %v2710 = vld [vmem:[%s3 + $0x90] sm:$0xff]
  %v2711 = vld [vmem:[%s3 + $0x98] sm:$0xff]
  %v2713 = vsel %vm241, %v2708, 0
  %v2716 = vsel %vm241, %v2709, 0
  %v2719 = vsel %vm241, %v2710, 0
  %v2722 = vsel %vm241, %v2711, 0
  %2724 = vmatprep.subr.mxu0 0.0
  %2725 = vmatpush1.msra.mxu0 %v2704
  %2726 = vmatprep.subr.mxu0 0.0
  %2727 = vmatpush1.msra.mxu0 %v2705
  %2728 = vmatprep.subr.mxu0 0.0
  %2729 = vmatpush1.msra.mxu0 %v2706
  %2730 = vmatprep.subr.mxu0 0.0
  %2731 = vmatpush1.msra.mxu0 %v2707
  %2732 = vmatprep.subr.mxu0 0.0
  %2733 = vmatpush1.msra.mxu0 0.0
  %2734 = vmatprep.subr.mxu0 0.0
  %2735 = vmatpush1.msra.mxu0 0.0
  %2736 = vmatprep.subr.mxu0 0.0
  %2737 = vmatpush1.msra.mxu0 0.0
  %2738 = vmatprep.subr.mxu0 0.0
  %2739 = vmatpush1.msra.mxu0 0.0
  %2740 = vmatprep.subr.mxu0 0.0
  %2741 = vmatpush1.msra.mxu0 0.0
  %2742 = vmatprep.subr.mxu0 0.0
  %2743 = vmatpush1.msra.mxu0 0.0
  %2744 = vmatprep.subr.mxu0 0.0
  %2745 = vmatpush1.msra.mxu0 0.0
  %2746 = vmatprep.subr.mxu0 0.0
  %2747 = vmatpush1.msra.mxu0 0.0
  %2748 = vmatprep.subr.mxu0 0.0
  %2749 = vmatpush1.msra.mxu0 0.0
  %2750 = vmatprep.subr.mxu0 0.0
  %2751 = vmatpush1.msra.mxu0 0.0
  %2752 = vmatprep.subr.mxu0 0.0
  %2753 = vmatpush1.msra.mxu0 0.0
  %2754 = vmatprep.subr.mxu0 0.0
  %2755 = vmatpush1.msra.mxu0 0.0
  %2756 = vmatprep.subr.mxu0 0.0
  %2757 = vmatpush1.msra.mxu0 0.0
  %2758 = vmatprep.subr.mxu0 0.0
  %2759 = vmatpush1.msra.mxu0 0.0
  %2760 = vmatprep.subr.mxu0 0.0
  %2761 = vmatpush1.msra.mxu0 0.0
  %2762 = vmatprep.subr.mxu0 0.0
  %2763 = vmatpush1.msra.mxu0 0.0
  %2764 = vmatprep.subr.mxu0 0.0
  %2765 = vmatpush1.msra.mxu0 0.0
  %2766 = vmatprep.subr.mxu0 0.0
  %2767 = vmatpush1.msra.mxu0 0.0
  %2768 = vmatprep.subr.mxu0 0.0
  %2769 = vmatpush1.msra.mxu0 0.0
  %2770 = vmatprep.subr.mxu0 0.0
  %2771 = vmatpush1.msra.mxu0 0.0
  %2772 = vmatprep.subr.mxu0 0.0
  %2773 = vmatpush1.msra.mxu0 0.0
  %2774 = vmatprep.subr.mxu0 0.0
  %2775 = vmatpush1.msra.mxu0 0.0
  %2776 = vmatprep.subr.mxu0 0.0
  %2777 = vmatpush1.msra.mxu0 0.0
  %2778 = vmatprep.subr.mxu0 0.0
  %2779 = vmatpush1.msra.mxu0 0.0
  %2780 = vmatprep.subr.mxu0 0.0
  %2781 = vmatpush1.msra.mxu0 0.0
  %2782 = vmatprep.subr.mxu0 0.0
  %2783 = vmatpush1.msra.mxu0 0.0
  %2784 = vmatprep.subr.mxu0 0.0
  %2785 = vmatpush1.msra.mxu0 0.0
  %2786 = vmatprep.subr.mxu0 0.0
  %2787 = vmatpush1.msra.mxu0 0.0
  %2788 = vmatprep.mubr.f32.mxu0 0.0
  %2789 = vmatmul.mubr.f32.gmra.mrb[0].mxu0 %v2713
  %v2790 = vpop.f32.mrb[0].mxu0
  %v2791 = vadd.f32 0.0, %v2790
  %v2792 = vpop.f32.mrb[0].mxu0
  %2793 = vmatprep.mubr.f32.mxu0 0.0
  %2794 = vmatmul.mubr.f32.gmra.mrb[0].mxu0 %v2716
  %v2795 = vpop.f32.mrb[0].mxu0
  %v2796 = vadd.f32 0.0, %v2795
  %v2797 = vpop.f32.mrb[0].mxu0
  %2798 = vmatprep.mubr.f32.mxu0 0.0
  %2799 = vmatmul.mubr.f32.gmra.mrb[0].mxu0 %v2719
  %v2800 = vpop.f32.mrb[0].mxu0
  %v2801 = vadd.f32 0.0, %v2800
  %v2802 = vpop.f32.mrb[0].mxu0
  %2803 = vmatprep.mubr.f32.mxu0 0.0
  %2804 = vmatmul.mubr.f32.gmra.mrb[0].mxu0 %v2722
  %v2805 = vpop.f32.mrb[0].mxu0
  %v2806 = vadd.f32 0.0, %v2805
  %v2807 = vpop.f32.mrb[0].mxu0
  %2808 = vdwg.mxu0
  %v2809 = vsel %vm339, %v2791, 0.0
  %2810 = vadd.xlane.f32.xlu0 %v2809
  %v2811 = vpop.xlane.xlu0 %2810
  %v2812 = vsel %vm339, %v2796, 0.0
  %2813 = vadd.xlane.f32.xlu0 %v2812
  %v2814 = vpop.xlane.xlu0 %2813
  %v2815 = vsel %vm339, %v2801, 0.0
  %2816 = vadd.xlane.f32.xlu0 %v2815
  %v2817 = vpop.xlane.xlu0 %2816
  %v2818 = vsel %vm339, %v2806, 0.0
  %2819 = vadd.xlane.f32.xlu0 %v2818
  %v2820 = vpop.xlane.xlu0 %2819
  %v2821 = vmul.f32 %v2811, %v352
  %v2822 = vmul.f32 %v2814, %v352
  %v2823 = vmul.f32 %v2817, %v352
  %v2824 = vmul.f32 %v2820, %v352
  %v2825 = vmul.f32 %v2791, %v2791
  %v2826 = vmul.f32 %v2796, %v2796
  %v2827 = vmul.f32 %v2801, %v2801
  %v2828 = vmul.f32 %v2806, %v2806
  %v2829 = vsel %vm339, %v2825, 0.0
  %2830 = vadd.xlane.f32.xlu0 %v2829
  %v2831 = vpop.xlane.xlu0 %2830
  %v2832 = vsel %vm339, %v2826, 0.0
  %2833 = vadd.xlane.f32.xlu0 %v2832
  %v2834 = vpop.xlane.xlu0 %2833
  %v2835 = vsel %vm339, %v2827, 0.0
  %2836 = vadd.xlane.f32.xlu0 %v2835
  %v2837 = vpop.xlane.xlu0 %2836
  %v2838 = vsel %vm339, %v2828, 0.0
  %2839 = vadd.xlane.f32.xlu0 %v2838
  %v2840 = vpop.xlane.xlu0 %2839
  %v2841 = vmul.f32 %v2831, %v352
  %v2842 = vmul.f32 %v2834, %v352
  %v2843 = vmul.f32 %v2837, %v352
  %v2844 = vmul.f32 %v2840, %v352
  %v2845 = vmul.f32 %v2821, %v2821
  %v2846 = vmul.f32 %v2822, %v2822
  %v2847 = vmul.f32 %v2823, %v2823
  %v2848 = vmul.f32 %v2824, %v2824
  %v2849 = vsub.f32 %v2841, %v2845
  %v2850 = vsub.f32 %v2842, %v2846
  %v2851 = vsub.f32 %v2843, %v2847
  %v2852 = vsub.f32 %v2844, %v2848
  %v2853 = vld [vmem:[%s4 + $0x20] sm:$0xff]
  %v2854 = vld [vmem:[%s4 + $0x28] sm:$0xff]
  %v2855 = vld [vmem:[%s4 + $0x30] sm:$0xff]
  %v2856 = vld [vmem:[%s4 + $0x38] sm:$0xff]
  %v2857 = vadd.f32 %v2849, 0.8
  %v2858 = vadd.f32 %v2850, 0.8
  %v2859 = vadd.f32 %v2851, 0.8
  %v2860 = vadd.f32 %v2852, 0.8
  %v2861 = vrsqrt.pop %v2857
  %v2862 = vrsqrt.pop %v2858
  %v2863 = vrsqrt.pop %v2859
  %v2864 = vrsqrt.pop %v2860
  %v2865 = vmul.f32 %v2853, %v2861
  %v2866 = vmul.f32 %v2854, %v2862
  %v2867 = vmul.f32 %v2855, %v2863
  %v2868 = vmul.f32 %v2856, %v2864
  %v2869 = vmul.f32 %v2821, %v2865
  %v2870 = vmul.f32 %v2822, %v2866
  %v2871 = vmul.f32 %v2823, %v2867
  %v2872 = vmul.f32 %v2824, %v2868
  %2877 = vrot.lane.b32.xlu0 %v2869, 4
  %v2878 = vpop.permute.xlu0 %2877
  %2879 = vrot.lane.b32.xlu0 %v2870, 4
  %v2880 = vpop.permute.xlu0 %2879
  %2881 = vrot.lane.b32.xlu0 %v2871, 4
  %v2882 = vpop.permute.xlu0 %2881
  %2883 = vrot.lane.b32.xlu0 %v2872, 4
  %v2884 = vpop.permute.xlu0 %2883
  %v2889 = vsub.f32 %v2853, %v2878
  %v2890 = vsub.f32 %v2854, %v2880
  %v2891 = vsub.f32 %v2855, %v2882
  %v2892 = vsub.f32 %v2856, %v2884
  %2894 = vset.pattern.permute.xlu0 0
  %2895 = vperm.xlu0 %2894, %v2865
  %v2896 = vpop.permute.xlu0 %2895
  %2899 = vset.pattern.permute.xlu0 0
  %2900 = vperm.xlu0 %2899, %v2866
  %v2901 = vpop.permute.xlu0 %2900
  %2904 = vset.pattern.permute.xlu0 0
  %2905 = vperm.xlu0 %2904, %v2867
  %v2906 = vpop.permute.xlu0 %2905
  %2909 = vset.pattern.permute.xlu0 0
  %2910 = vperm.xlu0 %2909, %v2868
  %v2911 = vpop.permute.xlu0 %2910
  %v2913 = vmul.f32 %v2791, %v2896
  %v2914 = vmul.f32 %v2796, %v2901
  %v2915 = vmul.f32 %v2801, %v2906
  %v2916 = vmul.f32 %v2806, %v2911
  %2918 = vset.pattern.permute.xlu0 4
  %2919 = vperm.xlu0 %2918, %v2889
  %v2920 = vpop.permute.xlu0 %2919
  %2923 = vset.pattern.permute.xlu0 4
  %2924 = vperm.xlu0 %2923, %v2890
  %v2925 = vpop.permute.xlu0 %2924
  %2928 = vset.pattern.permute.xlu0 4
  %2929 = vperm.xlu0 %2928, %v2891
  %v2930 = vpop.permute.xlu0 %2929
  %2933 = vset.pattern.permute.xlu0 4
  %2934 = vperm.xlu0 %2933, %v2892
  %v2935 = vpop.permute.xlu0 %2934
  %v2937 = vadd.f32 %v2913, %v2920
  %v2938 = vadd.f32 %v2914, %v2925
  %v2939 = vadd.f32 %v2915, %v2930
  %v2940 = vadd.f32 %v2916, %v2935
  %v2941 = vmul.f32 %v2937, 0.2
  %v2942 = vmul.f32 %v2938, 0.2
  %v2943 = vmul.f32 %v2939, 0.2
  %v2944 = vmul.f32 %v2940, 0.2
  %v2945 = vmax.f32 %v2937, %v2941
  %v2946 = vmax.f32 %v2938, %v2942
  %v2947 = vmax.f32 %v2939, %v2943
  %v2948 = vmax.f32 %v2940, %v2944
  %v2949 = vld [vmem:[%s3 + $0xa0] sm:$0xff]
  %v2950 = vld [vmem:[%s3 + $0xa8] sm:$0xff]
  %v2951 = vld [vmem:[%s3 + $0xb0] sm:$0xff]
  %v2952 = vld [vmem:[%s3 + $0xb8] sm:$0xff]
  %v2954 = vsel %vm241, %v2949, 0
  %v2957 = vsel %vm241, %v2950, 0
  %v2960 = vsel %vm241, %v2951, 0
  %v2963 = vsel %vm241, %v2952, 0
  %2965 = vmatprep.subr.mxu0 0.0
  %2966 = vmatpush1.msra.mxu0 %v2945
  %2967 = vmatprep.subr.mxu0 0.0
  %2968 = vmatpush1.msra.mxu0 %v2946
  %2969 = vmatprep.subr.mxu0 0.0
  %2970 = vmatpush1.msra.mxu0 %v2947
  %2971 = vmatprep.subr.mxu0 0.0
  %2972 = vmatpush1.msra.mxu0 %v2948
  %2973 = vmatprep.subr.mxu0 0.0
  %2974 = vmatpush1.msra.mxu0 0.0
  %2975 = vmatprep.subr.mxu0 0.0
  %2976 = vmatpush1.msra.mxu0 0.0
  %2977 = vmatprep.subr.mxu0 0.0
  %2978 = vmatpush1.msra.mxu0 0.0
  %2979 = vmatprep.subr.mxu0 0.0
  %2980 = vmatpush1.msra.mxu0 0.0
  %2981 = vmatprep.subr.mxu0 0.0
  %2982 = vmatpush1.msra.mxu0 0.0
  %2983 = vmatprep.subr.mxu0 0.0
  %2984 = vmatpush1.msra.mxu0 0.0
  %2985 = vmatprep.subr.mxu0 0.0
  %2986 = vmatpush1.msra.mxu0 0.0
  %2987 = vmatprep.subr.mxu0 0.0
  %2988 = vmatpush1.msra.mxu0 0.0
  %2989 = vmatprep.subr.mxu0 0.0
  %2990 = vmatpush1.msra.mxu0 0.0
  %2991 = vmatprep.subr.mxu0 0.0
  %2992 = vmatpush1.msra.mxu0 0.0
  %2993 = vmatprep.subr.mxu0 0.0
  %2994 = vmatpush1.msra.mxu0 0.0
  %2995 = vmatprep.subr.mxu0 0.0
  %2996 = vmatpush1.msra.mxu0 0.0
  %2997 = vmatprep.subr.mxu0 0.0
  %2998 = vmatpush1.msra.mxu0 0.0
  %2999 = vmatprep.subr.mxu0 0.0
  %3000 = vmatpush1.msra.mxu0 0.0
  %3001 = vmatprep.subr.mxu0 0.0
  %3002 = vmatpush1.msra.mxu0 0.0
  %3003 = vmatprep.subr.mxu0 0.0
  %3004 = vmatpush1.msra.mxu0 0.0
  %3005 = vmatprep.subr.mxu0 0.0
  %3006 = vmatpush1.msra.mxu0 0.0
  %3007 = vmatprep.subr.mxu0 0.0
  %3008 = vmatpush1.msra.mxu0 0.0
  %3009 = vmatprep.subr.mxu0 0.0
  %3010 = vmatpush1.msra.mxu0 0.0
  %3011 = vmatprep.subr.mxu0 0.0
  %3012 = vmatpush1.msra.mxu0 0.0
  %3013 = vmatprep.subr.mxu0 0.0
  %3014 = vmatpush1.msra.mxu0 0.0
  %3015 = vmatprep.subr.mxu0 0.0
  %3016 = vmatpush1.msra.mxu0 0.0
  %3017 = vmatprep.subr.mxu0 0.0
  %3018 = vmatpush1.msra.mxu0 0.0
  %3019 = vmatprep.subr.mxu0 0.0
  %3020 = vmatpush1.msra.mxu0 0.0
  %3021 = vmatprep.subr.mxu0 0.0
  %3022 = vmatpush1.msra.mxu0 0.0
  %3023 = vmatprep.subr.mxu0 0.0
  %3024 = vmatpush1.msra.mxu0 0.0
  %3025 = vmatprep.subr.mxu0 0.0
  %3026 = vmatpush1.msra.mxu0 0.0
  %3027 = vmatprep.subr.mxu0 0.0
  %3028 = vmatpush1.msra.mxu0 0.0
  %3029 = vmatprep.mubr.f32.mxu0 0.0
  %3030 = vmatmul.mubr.f32.gmra.mrb[0].mxu0 %v2954
  %v3031 = vpop.f32.mrb[0].mxu0
  %v3032 = vadd.f32 0.0, %v3031
  %v3033 = vpop.f32.mrb[0].mxu0
  %3034 = vmatprep.mubr.f32.mxu0 0.0
  %3035 = vmatmul.mubr.f32.gmra.mrb[0].mxu0 %v2957
  %v3036 = vpop.f32.mrb[0].mxu0
  %v3037 = vadd.f32 0.0, %v3036
  %v3038 = vpop.f32.mrb[0].mxu0
  %3039 = vmatprep.mubr.f32.mxu0 0.0
  %3040 = vmatmul.mubr.f32.gmra.mrb[0].mxu0 %v2960
  %v3041 = vpop.f32.mrb[0].mxu0
  %v3042 = vadd.f32 0.0, %v3041
  %v3043 = vpop.f32.mrb[0].mxu0
  %3044 = vmatprep.mubr.f32.mxu0 0.0
  %3045 = vmatmul.mubr.f32.gmra.mrb[0].mxu0 %v2963
  %v3046 = vpop.f32.mrb[0].mxu0
  %v3047 = vadd.f32 0.0, %v3046
  %v3048 = vpop.f32.mrb[0].mxu0
  %3049 = vdwg.mxu0
  %v3050 = vsel %vm339, %v3032, 0.0
  %3051 = vadd.xlane.f32.xlu0 %v3050
  %v3052 = vpop.xlane.xlu0 %3051
  %v3053 = vsel %vm339, %v3037, 0.0
  %3054 = vadd.xlane.f32.xlu0 %v3053
  %v3055 = vpop.xlane.xlu0 %3054
  %v3056 = vsel %vm339, %v3042, 0.0
  %3057 = vadd.xlane.f32.xlu0 %v3056
  %v3058 = vpop.xlane.xlu0 %3057
  %v3059 = vsel %vm339, %v3047, 0.0
  %3060 = vadd.xlane.f32.xlu0 %v3059
  %v3061 = vpop.xlane.xlu0 %3060
  %v3062 = vmul.f32 %v3052, %v352
  %v3063 = vmul.f32 %v3055, %v352
  %v3064 = vmul.f32 %v3058, %v352
  %v3065 = vmul.f32 %v3061, %v352
  %v3066 = vmul.f32 %v3032, %v3032
  %v3067 = vmul.f32 %v3037, %v3037
  %v3068 = vmul.f32 %v3042, %v3042
  %v3069 = vmul.f32 %v3047, %v3047
  %v3070 = vsel %vm339, %v3066, 0.0
  %3071 = vadd.xlane.f32.xlu0 %v3070
  %v3072 = vpop.xlane.xlu0 %3071
  %v3073 = vsel %vm339, %v3067, 0.0
  %3074 = vadd.xlane.f32.xlu0 %v3073
  %v3075 = vpop.xlane.xlu0 %3074
  %v3076 = vsel %vm339, %v3068, 0.0
  %3077 = vadd.xlane.f32.xlu0 %v3076
  %v3078 = vpop.xlane.xlu0 %3077
  %v3079 = vsel %vm339, %v3069, 0.0
  %3080 = vadd.xlane.f32.xlu0 %v3079
  %v3081 = vpop.xlane.xlu0 %3080
  %v3082 = vmul.f32 %v3072, %v352
  %v3083 = vmul.f32 %v3075, %v352
  %v3084 = vmul.f32 %v3078, %v352
  %v3085 = vmul.f32 %v3081, %v352
  %v3086 = vmul.f32 %v3062, %v3062
  %v3087 = vmul.f32 %v3063, %v3063
  %v3088 = vmul.f32 %v3064, %v3064
  %v3089 = vmul.f32 %v3065, %v3065
  %v3090 = vsub.f32 %v3082, %v3086
  %v3091 = vsub.f32 %v3083, %v3087
  %v3092 = vsub.f32 %v3084, %v3088
  %v3093 = vsub.f32 %v3085, %v3089
  %v3094 = vadd.f32 %v3090, 0.8
  %v3095 = vadd.f32 %v3091, 0.8
  %v3096 = vadd.f32 %v3092, 0.8
  %v3097 = vadd.f32 %v3093, 0.8
  %v3098 = vrsqrt.pop %v3094
  %v3099 = vrsqrt.pop %v3095
  %v3100 = vrsqrt.pop %v3096
  %v3101 = vrsqrt.pop %v3097
  %v3102 = vmul.f32 %v2853, %v3098
  %v3103 = vmul.f32 %v2854, %v3099
  %v3104 = vmul.f32 %v2855, %v3100
  %v3105 = vmul.f32 %v2856, %v3101
  %v3106 = vmul.f32 %v3062, %v3102
  %v3107 = vmul.f32 %v3063, %v3103
  %v3108 = vmul.f32 %v3064, %v3104
  %v3109 = vmul.f32 %v3065, %v3105
  %3114 = vrot.lane.b32.xlu0 %v3106, 4
  %v3115 = vpop.permute.xlu0 %3114
  %3116 = vrot.lane.b32.xlu0 %v3107, 4
  %v3117 = vpop.permute.xlu0 %3116
  %3118 = vrot.lane.b32.xlu0 %v3108, 4
  %v3119 = vpop.permute.xlu0 %3118
  %3120 = vrot.lane.b32.xlu0 %v3109, 4
  %v3121 = vpop.permute.xlu0 %3120
  %v3126 = vsub.f32 %v2853, %v3115
  %v3127 = vsub.f32 %v2854, %v3117
  %v3128 = vsub.f32 %v2855, %v3119
  %v3129 = vsub.f32 %v2856, %v3121
  %3131 = vset.pattern.permute.xlu0 1
  %3132 = vperm.xlu0 %3131, %v3102
  %v3133 = vpop.permute.xlu0 %3132
  %3136 = vset.pattern.permute.xlu0 1
  %3137 = vperm.xlu0 %3136, %v3103
  %v3138 = vpop.permute.xlu0 %3137
  %3141 = vset.pattern.permute.xlu0 1
  %3142 = vperm.xlu0 %3141, %v3104
  %v3143 = vpop.permute.xlu0 %3142
  %3146 = vset.pattern.permute.xlu0 1
  %3147 = vperm.xlu0 %3146, %v3105
  %v3148 = vpop.permute.xlu0 %3147
  %v3150 = vmul.f32 %v3032, %v3133
  %v3151 = vmul.f32 %v3037, %v3138
  %v3152 = vmul.f32 %v3042, %v3143
  %v3153 = vmul.f32 %v3047, %v3148
  %3155 = vset.pattern.permute.xlu0 5
  %3156 = vperm.xlu0 %3155, %v3126
  %v3157 = vpop.permute.xlu0 %3156
  %3160 = vset.pattern.permute.xlu0 5
  %3161 = vperm.xlu0 %3160, %v3127
  %v3162 = vpop.permute.xlu0 %3161
  %3165 = vset.pattern.permute.xlu0 5
  %3166 = vperm.xlu0 %3165, %v3128
  %v3167 = vpop.permute.xlu0 %3166
  %3170 = vset.pattern.permute.xlu0 5
  %3171 = vperm.xlu0 %3170, %v3129
  %v3172 = vpop.permute.xlu0 %3171
  %v3174 = vadd.f32 %v3150, %v3157
  %v3175 = vadd.f32 %v3151, %v3162
  %v3176 = vadd.f32 %v3152, %v3167
  %v3177 = vadd.f32 %v3153, %v3172
  %v3178 = vmul.f32 %v3174, 0.2
  %v3179 = vmul.f32 %v3175, 0.2
  %v3180 = vmul.f32 %v3176, 0.2
  %v3181 = vmul.f32 %v3177, 0.2
  %v3182 = vmax.f32 %v3174, %v3178
  %v3183 = vmax.f32 %v3175, %v3179
  %v3184 = vmax.f32 %v3176, %v3180
  %v3185 = vmax.f32 %v3177, %v3181
  %v3186 = vld [vmem:[%s3 + $0xc0] sm:$0xff]
  %v3187 = vld [vmem:[%s3 + $0xc8] sm:$0xff]
  %v3188 = vld [vmem:[%s3 + $0xd0] sm:$0xff]
  %v3189 = vld [vmem:[%s3 + $0xd8] sm:$0xff]
  %v3191 = vsel %vm241, %v3186, 0
  %v3194 = vsel %vm241, %v3187, 0
  %v3197 = vsel %vm241, %v3188, 0
  %v3200 = vsel %vm241, %v3189, 0
  %3202 = vmatprep.subr.mxu0 0.0
  %3203 = vmatpush1.msra.mxu0 %v3182
  %3204 = vmatprep.subr.mxu0 0.0
  %3205 = vmatpush1.msra.mxu0 %v3183
  %3206 = vmatprep.subr.mxu0 0.0
  %3207 = vmatpush1.msra.mxu0 %v3184
  %3208 = vmatprep.subr.mxu0 0.0
  %3209 = vmatpush1.msra.mxu0 %v3185
  %3210 = vmatprep.subr.mxu0 0.0
  %3211 = vmatpush1.msra.mxu0 0.0
  %3212 = vmatprep.subr.mxu0 0.0
  %3213 = vmatpush1.msra.mxu0 0.0
  %3214 = vmatprep.subr.mxu0 0.0
  %3215 = vmatpush1.msra.mxu0 0.0
  %3216 = vmatprep.subr.mxu0 0.0
  %3217 = vmatpush1.msra.mxu0 0.0
  %3218 = vmatprep.subr.mxu0 0.0
  %3219 = vmatpush1.msra.mxu0 0.0
  %3220 = vmatprep.subr.mxu0 0.0
  %3221 = vmatpush1.msra.mxu0 0.0
  %3222 = vmatprep.subr.mxu0 0.0
  %3223 = vmatpush1.msra.mxu0 0.0
  %3224 = vmatprep.subr.mxu0 0.0
  %3225 = vmatpush1.msra.mxu0 0.0
  %3226 = vmatprep.subr.mxu0 0.0
  %3227 = vmatpush1.msra.mxu0 0.0
  %3228 = vmatprep.subr.mxu0 0.0
  %3229 = vmatpush1.msra.mxu0 0.0
  %3230 = vmatprep.subr.mxu0 0.0
  %3231 = vmatpush1.msra.mxu0 0.0
  %3232 = vmatprep.subr.mxu0 0.0
  %3233 = vmatpush1.msra.mxu0 0.0
  %3234 = vmatprep.subr.mxu0 0.0
  %3235 = vmatpush1.msra.mxu0 0.0
  %3236 = vmatprep.subr.mxu0 0.0
  %3237 = vmatpush1.msra.mxu0 0.0
  %3238 = vmatprep.subr.mxu0 0.0
  %3239 = vmatpush1.msra.mxu0 0.0
  %3240 = vmatprep.subr.mxu0 0.0
  %3241 = vmatpush1.msra.mxu0 0.0
  %3242 = vmatprep.subr.mxu0 0.0
  %3243 = vmatpush1.msra.mxu0 0.0
  %3244 = vmatprep.subr.mxu0 0.0
  %3245 = vmatpush1.msra.mxu0 0.0
  %3246 = vmatprep.subr.mxu0 0.0
  %3247 = vmatpush1.msra.mxu0 0.0
  %3248 = vmatprep.subr.mxu0 0.0
  %3249 = vmatpush1.msra.mxu0 0.0
  %3250 = vmatprep.subr.mxu0 0.0
  %3251 = vmatpush1.msra.mxu0 0.0
  %3252 = vmatprep.subr.mxu0 0.0
  %3253 = vmatpush1.msra.mxu0 0.0
  %3254 = vmatprep.subr.mxu0 0.0
  %3255 = vmatpush1.msra.mxu0 0.0
  %3256 = vmatprep.subr.mxu0 0.0
  %3257 = vmatpush1.msra.mxu0 0.0
  %3258 = vmatprep.subr.mxu0 0.0
  %3259 = vmatpush1.msra.mxu0 0.0
  %3260 = vmatprep.subr.mxu0 0.0
  %3261 = vmatpush1.msra.mxu0 0.0
  %3262 = vmatprep.subr.mxu0 0.0
  %3263 = vmatpush1.msra.mxu0 0.0
  %3264 = vmatprep.subr.mxu0 0.0
  %3265 = vmatpush1.msra.mxu0 0.0
  %3266 = vmatprep.mubr.f32.mxu0 0.0
  %3267 = vmatmul.mubr.f32.gmra.mrb[0].mxu0 %v3191
  %v3268 = vpop.f32.mrb[0].mxu0
  %v3269 = vadd.f32 0.0, %v3268
  %v3270 = vpop.f32.mrb[0].mxu0
  %3271 = vmatprep.mubr.f32.mxu0 0.0
  %3272 = vmatmul.mubr.f32.gmra.mrb[0].mxu0 %v3194
  %v3273 = vpop.f32.mrb[0].mxu0
  %v3274 = vadd.f32 0.0, %v3273
  %v3275 = vpop.f32.mrb[0].mxu0
  %3276 = vmatprep.mubr.f32.mxu0 0.0
  %3277 = vmatmul.mubr.f32.gmra.mrb[0].mxu0 %v3197
  %v3278 = vpop.f32.mrb[0].mxu0
  %v3279 = vadd.f32 0.0, %v3278
  %v3280 = vpop.f32.mrb[0].mxu0
  %3281 = vmatprep.mubr.f32.mxu0 0.0
  %3282 = vmatmul.mubr.f32.gmra.mrb[0].mxu0 %v3200
  %v3283 = vpop.f32.mrb[0].mxu0
  %v3284 = vadd.f32 0.0, %v3283
  %v3285 = vpop.f32.mrb[0].mxu0
  %3286 = vdwg.mxu0
  %v3287 = vsel %vm339, %v3269, 0.0
  %3288 = vadd.xlane.f32.xlu0 %v3287
  %v3289 = vpop.xlane.xlu0 %3288
  %v3290 = vsel %vm339, %v3274, 0.0
  %3291 = vadd.xlane.f32.xlu0 %v3290
  %v3292 = vpop.xlane.xlu0 %3291
  %v3293 = vsel %vm339, %v3279, 0.0
  %3294 = vadd.xlane.f32.xlu0 %v3293
  %v3295 = vpop.xlane.xlu0 %3294
  %v3296 = vsel %vm339, %v3284, 0.0
  %3297 = vadd.xlane.f32.xlu0 %v3296
  %v3298 = vpop.xlane.xlu0 %3297
  %v3299 = vmul.f32 %v3289, %v352
  %v3300 = vmul.f32 %v3292, %v352
  %v3301 = vmul.f32 %v3295, %v352
  %v3302 = vmul.f32 %v3298, %v352
  %v3303 = vmul.f32 %v3269, %v3269
  %v3304 = vmul.f32 %v3274, %v3274
  %v3305 = vmul.f32 %v3279, %v3279
  %v3306 = vmul.f32 %v3284, %v3284
  %v3307 = vsel %vm339, %v3303, 0.0
  %3308 = vadd.xlane.f32.xlu0 %v3307
  %v3309 = vpop.xlane.xlu0 %3308
  %v3310 = vsel %vm339, %v3304, 0.0
  %3311 = vadd.xlane.f32.xlu0 %v3310
  %v3312 = vpop.xlane.xlu0 %3311
  %v3313 = vsel %vm339, %v3305, 0.0
  %3314 = vadd.xlane.f32.xlu0 %v3313
  %v3315 = vpop.xlane.xlu0 %3314
  %v3316 = vsel %vm339, %v3306, 0.0
  %3317 = vadd.xlane.f32.xlu0 %v3316
  %v3318 = vpop.xlane.xlu0 %3317
  %v3319 = vmul.f32 %v3309, %v352
  %v3320 = vmul.f32 %v3312, %v352
  %v3321 = vmul.f32 %v3315, %v352
  %v3322 = vmul.f32 %v3318, %v352
  %v3323 = vmul.f32 %v3299, %v3299
  %v3324 = vmul.f32 %v3300, %v3300
  %v3325 = vmul.f32 %v3301, %v3301
  %v3326 = vmul.f32 %v3302, %v3302
  %v3327 = vsub.f32 %v3319, %v3323
  %v3328 = vsub.f32 %v3320, %v3324
  %v3329 = vsub.f32 %v3321, %v3325
  %v3330 = vsub.f32 %v3322, %v3326
  %v3331 = vadd.f32 %v3327, 0.8
  %v3332 = vadd.f32 %v3328, 0.8
  %v3333 = vadd.f32 %v3329, 0.8
  %v3334 = vadd.f32 %v3330, 0.8
  %v3335 = vrsqrt.pop %v3331
  %v3336 = vrsqrt.pop %v3332
  %v3337 = vrsqrt.pop %v3333
  %v3338 = vrsqrt.pop %v3334
  %v3339 = vmul.f32 %v2853, %v3335
  %v3340 = vmul.f32 %v2854, %v3336
  %v3341 = vmul.f32 %v2855, %v3337
  %v3342 = vmul.f32 %v2856, %v3338
  %v3343 = vmul.f32 %v3299, %v3339
  %v3344 = vmul.f32 %v3300, %v3340
  %v3345 = vmul.f32 %v3301, %v3341
  %v3346 = vmul.f32 %v3302, %v3342
  %3351 = vrot.lane.b32.xlu0 %v3343, 4
  %v3352 = vpop.permute.xlu0 %3351
  %3353 = vrot.lane.b32.xlu0 %v3344, 4
  %v3354 = vpop.permute.xlu0 %3353
  %3355 = vrot.lane.b32.xlu0 %v3345, 4
  %v3356 = vpop.permute.xlu0 %3355
  %3357 = vrot.lane.b32.xlu0 %v3346, 4
  %v3358 = vpop.permute.xlu0 %3357
  %v3363 = vsub.f32 %v2853, %v3352
  %v3364 = vsub.f32 %v2854, %v3354
  %v3365 = vsub.f32 %v2855, %v3356
  %v3366 = vsub.f32 %v2856, %v3358
  %3368 = vset.pattern.permute.xlu0 2
  %3369 = vperm.xlu0 %3368, %v3339
  %v3370 = vpop.permute.xlu0 %3369
  %3373 = vset.pattern.permute.xlu0 2
  %3374 = vperm.xlu0 %3373, %v3340
  %v3375 = vpop.permute.xlu0 %3374
  %3378 = vset.pattern.permute.xlu0 2
  %3379 = vperm.xlu0 %3378, %v3341
  %v3380 = vpop.permute.xlu0 %3379
  %3383 = vset.pattern.permute.xlu0 2
  %3384 = vperm.xlu0 %3383, %v3342
  %v3385 = vpop.permute.xlu0 %3384
  %v3387 = vmul.f32 %v3269, %v3370
  %v3388 = vmul.f32 %v3274, %v3375
  %v3389 = vmul.f32 %v3279, %v3380
  %v3390 = vmul.f32 %v3284, %v3385
  %3392 = vset.pattern.permute.xlu0 6
  %3393 = vperm.xlu0 %3392, %v3363
  %v3394 = vpop.permute.xlu0 %3393
  %3397 = vset.pattern.permute.xlu0 6
  %3398 = vperm.xlu0 %3397, %v3364
  %v3399 = vpop.permute.xlu0 %3398
  %3402 = vset.pattern.permute.xlu0 6
  %3403 = vperm.xlu0 %3402, %v3365
  %v3404 = vpop.permute.xlu0 %3403
  %3407 = vset.pattern.permute.xlu0 6
  %3408 = vperm.xlu0 %3407, %v3366
  %v3409 = vpop.permute.xlu0 %3408
  %v3411 = vadd.f32 %v3387, %v3394
  %v3412 = vadd.f32 %v3388, %v3399
  %v3413 = vadd.f32 %v3389, %v3404
  %v3414 = vadd.f32 %v3390, %v3409
  %v3415 = vmul.f32 %v3411, 0.2
  %v3416 = vmul.f32 %v3412, 0.2
  %v3417 = vmul.f32 %v3413, 0.2
  %v3418 = vmul.f32 %v3414, 0.2
  %v3419 = vmax.f32 %v3411, %v3415
  %v3420 = vmax.f32 %v3412, %v3416
  %v3421 = vmax.f32 %v3413, %v3417
  %v3422 = vmax.f32 %v3414, %v3418
  %v3423 = vld [vmem:[%s3 + $0xe0] sm:$0xff]
  %v3424 = vld [vmem:[%s3 + $0xe8] sm:$0xff]
  %v3425 = vld [vmem:[%s3 + $0xf0] sm:$0xff]
  %v3426 = vld [vmem:[%s3 + $0xf8] sm:$0xff]
  %v3428 = vsel %vm241, %v3423, 0
  %v3431 = vsel %vm241, %v3424, 0
  %v3434 = vsel %vm241, %v3425, 0
  %v3437 = vsel %vm241, %v3426, 0
  %3439 = vmatprep.subr.mxu0 0.0
  %3440 = vmatpush1.msra.mxu0 %v3419
  %3441 = vmatprep.subr.mxu0 0.0
  %3442 = vmatpush1.msra.mxu0 %v3420
  %3443 = vmatprep.subr.mxu0 0.0
  %3444 = vmatpush1.msra.mxu0 %v3421
  %3445 = vmatprep.subr.mxu0 0.0
  %3446 = vmatpush1.msra.mxu0 %v3422
  %3447 = vmatprep.subr.mxu0 0.0
  %3448 = vmatpush1.msra.mxu0 0.0
  %3449 = vmatprep.subr.mxu0 0.0
  %3450 = vmatpush1.msra.mxu0 0.0
  %3451 = vmatprep.subr.mxu0 0.0
  %3452 = vmatpush1.msra.mxu0 0.0
  %3453 = vmatprep.subr.mxu0 0.0
  %3454 = vmatpush1.msra.mxu0 0.0
  %3455 = vmatprep.subr.mxu0 0.0
  %3456 = vmatpush1.msra.mxu0 0.0
  %3457 = vmatprep.subr.mxu0 0.0
  %3458 = vmatpush1.msra.mxu0 0.0
  %3459 = vmatprep.subr.mxu0 0.0
  %3460 = vmatpush1.msra.mxu0 0.0
  %3461 = vmatprep.subr.mxu0 0.0
  %3462 = vmatpush1.msra.mxu0 0.0
  %3463 = vmatprep.subr.mxu0 0.0
  %3464 = vmatpush1.msra.mxu0 0.0
  %3465 = vmatprep.subr.mxu0 0.0
  %3466 = vmatpush1.msra.mxu0 0.0
  %3467 = vmatprep.subr.mxu0 0.0
  %3468 = vmatpush1.msra.mxu0 0.0
  %3469 = vmatprep.subr.mxu0 0.0
  %3470 = vmatpush1.msra.mxu0 0.0
  %3471 = vmatprep.subr.mxu0 0.0
  %3472 = vmatpush1.msra.mxu0 0.0
  %3473 = vmatprep.subr.mxu0 0.0
  %3474 = vmatpush1.msra.mxu0 0.0
  %3475 = vmatprep.subr.mxu0 0.0
  %3476 = vmatpush1.msra.mxu0 0.0
  %3477 = vmatprep.subr.mxu0 0.0
  %3478 = vmatpush1.msra.mxu0 0.0
  %3479 = vmatprep.subr.mxu0 0.0
  %3480 = vmatpush1.msra.mxu0 0.0
  %3481 = vmatprep.subr.mxu0 0.0
  %3482 = vmatpush1.msra.mxu0 0.0
  %3483 = vmatprep.subr.mxu0 0.0
  %3484 = vmatpush1.msra.mxu0 0.0
  %3485 = vmatprep.subr.mxu0 0.0
  %3486 = vmatpush1.msra.mxu0 0.0
  %3487 = vmatprep.subr.mxu0 0.0
  %3488 = vmatpush1.msra.mxu0 0.0
  %3489 = vmatprep.subr.mxu0 0.0
  %3490 = vmatpush1.msra.mxu0 0.0
  %3491 = vmatprep.subr.mxu0 0.0
  %3492 = vmatpush1.msra.mxu0 0.0
  %3493 = vmatprep.subr.mxu0 0.0
  %3494 = vmatpush1.msra.mxu0 0.0
  %3495 = vmatprep.subr.mxu0 0.0
  %3496 = vmatpush1.msra.mxu0 0.0
  %3497 = vmatprep.subr.mxu0 0.0
  %3498 = vmatpush1.msra.mxu0 0.0
  %3499 = vmatprep.subr.mxu0 0.0
  %3500 = vmatpush1.msra.mxu0 0.0
  %3501 = vmatprep.subr.mxu0 0.0
  %3502 = vmatpush1.msra.mxu0 0.0
  %3503 = vmatprep.mubr.f32.mxu0 0.0
  %3504 = vmatmul.mubr.f32.gmra.mrb[0].mxu0 %v3428
  %v3505 = vpop.f32.mrb[0].mxu0
  %v3506 = vadd.f32 0.0, %v3505
  %v3507 = vpop.f32.mrb[0].mxu0
  %3508 = vmatprep.mubr.f32.mxu0 0.0
  %3509 = vmatmul.mubr.f32.gmra.mrb[0].mxu0 %v3431
  %v3510 = vpop.f32.mrb[0].mxu0
  %v3511 = vadd.f32 0.0, %v3510
  %v3512 = vpop.f32.mrb[0].mxu0
  %3513 = vmatprep.mubr.f32.mxu0 0.0
  %3514 = vmatmul.mubr.f32.gmra.mrb[0].mxu0 %v3434
  %v3515 = vpop.f32.mrb[0].mxu0
  %v3516 = vadd.f32 0.0, %v3515
  %v3517 = vpop.f32.mrb[0].mxu0
  %3518 = vmatprep.mubr.f32.mxu0 0.0
  %3519 = vmatmul.mubr.f32.gmra.mrb[0].mxu0 %v3437
  %v3520 = vpop.f32.mrb[0].mxu0
  %v3521 = vadd.f32 0.0, %v3520
  %v3522 = vpop.f32.mrb[0].mxu0
  %3523 = vdwg.mxu0
  %v3524 = vsel %vm339, %v3506, 0.0
  %3525 = vadd.xlane.f32.xlu0 %v3524
  %v3526 = vpop.xlane.xlu0 %3525
  %v3527 = vsel %vm339, %v3511, 0.0
  %3528 = vadd.xlane.f32.xlu0 %v3527
  %v3529 = vpop.xlane.xlu0 %3528
  %v3530 = vsel %vm339, %v3516, 0.0
  %3531 = vadd.xlane.f32.xlu0 %v3530
  %v3532 = vpop.xlane.xlu0 %3531
  %v3533 = vsel %vm339, %v3521, 0.0
  %3534 = vadd.xlane.f32.xlu0 %v3533
  %v3535 = vpop.xlane.xlu0 %3534
  %v3536 = vmul.f32 %v3526, %v352
  %v3537 = vmul.f32 %v3529, %v352
  %v3538 = vmul.f32 %v3532, %v352
  %v3539 = vmul.f32 %v3535, %v352
  %v3540 = vmul.f32 %v3506, %v3506
  %v3541 = vmul.f32 %v3511, %v3511
  %v3542 = vmul.f32 %v3516, %v3516
  %v3543 = vmul.f32 %v3521, %v3521
  %v3544 = vsel %vm339, %v3540, 0.0
  %3545 = vadd.xlane.f32.xlu0 %v3544
  %v3546 = vpop.xlane.xlu0 %3545
  %v3547 = vsel %vm339, %v3541, 0.0
  %3548 = vadd.xlane.f32.xlu0 %v3547
  %v3549 = vpop.xlane.xlu0 %3548
  %v3550 = vsel %vm339, %v3542, 0.0
  %3551 = vadd.xlane.f32.xlu0 %v3550
  %v3552 = vpop.xlane.xlu0 %3551
  %v3553 = vsel %vm339, %v3543, 0.0
  %3554 = vadd.xlane.f32.xlu0 %v3553
  %v3555 = vpop.xlane.xlu0 %3554
  %v3556 = vmul.f32 %v3546, %v352
  %v3557 = vmul.f32 %v3549, %v352
  %v3558 = vmul.f32 %v3552, %v352
  %v3559 = vmul.f32 %v3555, %v352
  %v3560 = vmul.f32 %v3536, %v3536
  %v3561 = vmul.f32 %v3537, %v3537
  %v3562 = vmul.f32 %v3538, %v3538
  %v3563 = vmul.f32 %v3539, %v3539
  %v3564 = vsub.f32 %v3556, %v3560
  %v3565 = vsub.f32 %v3557, %v3561
  %v3566 = vsub.f32 %v3558, %v3562
  %v3567 = vsub.f32 %v3559, %v3563
  %v3568 = vadd.f32 %v3564, 0.8
  %v3569 = vadd.f32 %v3565, 0.8
  %v3570 = vadd.f32 %v3566, 0.8
  %v3571 = vadd.f32 %v3567, 0.8
  %v3572 = vrsqrt.pop %v3568
  %v3573 = vrsqrt.pop %v3569
  %v3574 = vrsqrt.pop %v3570
  %v3575 = vrsqrt.pop %v3571
  %v3576 = vmul.f32 %v2853, %v3572
  %v3577 = vmul.f32 %v2854, %v3573
  %v3578 = vmul.f32 %v2855, %v3574
  %v3579 = vmul.f32 %v2856, %v3575
  %v3580 = vmul.f32 %v3536, %v3576
  %v3581 = vmul.f32 %v3537, %v3577
  %v3582 = vmul.f32 %v3538, %v3578
  %v3583 = vmul.f32 %v3539, %v3579
  %3588 = vrot.lane.b32.xlu0 %v3580, 4
  %v3589 = vpop.permute.xlu0 %3588
  %3590 = vrot.lane.b32.xlu0 %v3581, 4
  %v3591 = vpop.permute.xlu0 %3590
  %3592 = vrot.lane.b32.xlu0 %v3582, 4
  %v3593 = vpop.permute.xlu0 %3592
  %3594 = vrot.lane.b32.xlu0 %v3583, 4
  %v3595 = vpop.permute.xlu0 %3594
  %v3600 = vsub.f32 %v2853, %v3589
  %v3601 = vsub.f32 %v2854, %v3591
  %v3602 = vsub.f32 %v2855, %v3593
  %v3603 = vsub.f32 %v2856, %v3595
  %3605 = vset.pattern.permute.xlu0 3
  %3606 = vperm.xlu0 %3605, %v3576
  %v3607 = vpop.permute.xlu0 %3606
  %3610 = vset.pattern.permute.xlu0 3
  %3611 = vperm.xlu0 %3610, %v3577
  %v3612 = vpop.permute.xlu0 %3611
  %3615 = vset.pattern.permute.xlu0 3
  %3616 = vperm.xlu0 %3615, %v3578
  %v3617 = vpop.permute.xlu0 %3616
  %3620 = vset.pattern.permute.xlu0 3
  %3621 = vperm.xlu0 %3620, %v3579
  %v3622 = vpop.permute.xlu0 %3621
  %v3624 = vmul.f32 %v3506, %v3607
  %v3625 = vmul.f32 %v3511, %v3612
  %v3626 = vmul.f32 %v3516, %v3617
  %v3627 = vmul.f32 %v3521, %v3622
  %3629 = vset.pattern.permute.xlu0 7
  %3630 = vperm.xlu0 %3629, %v3600
  %v3631 = vpop.permute.xlu0 %3630
  %3634 = vset.pattern.permute.xlu0 7
  %3635 = vperm.xlu0 %3634, %v3601
  %v3636 = vpop.permute.xlu0 %3635
  %3639 = vset.pattern.permute.xlu0 7
  %3640 = vperm.xlu0 %3639, %v3602
  %v3641 = vpop.permute.xlu0 %3640
  %3644 = vset.pattern.permute.xlu0 7
  %3645 = vperm.xlu0 %3644, %v3603
  %v3646 = vpop.permute.xlu0 %3645
  %v3648 = vadd.f32 %v3624, %v3631
  %v3649 = vadd.f32 %v3625, %v3636
  %v3650 = vadd.f32 %v3626, %v3641
  %v3651 = vadd.f32 %v3627, %v3646
  %v3652 = vmul.f32 %v3648, 0.2
  %v3653 = vmul.f32 %v3649, 0.2
  %v3654 = vmul.f32 %v3650, 0.2
  %v3655 = vmul.f32 %v3651, 0.2
  %v3656 = vmax.f32 %v3648, %v3652
  %v3657 = vmax.f32 %v3649, %v3653
  %v3658 = vmax.f32 %v3650, %v3654
  %v3659 = vmax.f32 %v3651, %v3655
  %v3660 = vld [vmem:[%s5 + $0x4] sm:$0xf]
  %3662 = vset.pattern.permute.xlu0 0
  %3663 = vperm.xlu0 %3662, %v3660
  %v3664 = vpop.permute.xlu0 %3663
  %3670 = vrot.lane.b32.xlu0 %v2853, 120
  %v3671 = vpop.permute.xlu0 %3670
  %3672 = vrot.lane.b32.xlu0 %v2854, 120
  %v3673 = vpop.permute.xlu0 %3672
  %3674 = vrot.lane.b32.xlu0 %v2855, 120
  %v3675 = vpop.permute.xlu0 %3674
  %3676 = vrot.lane.b32.xlu0 %v2856, 120
  %v3677 = vpop.permute.xlu0 %3676
  %3682 = vxpose.xlu0.b32.start [1/16] %v3671, 128
  %3683 = vxpose.xlu0.b32.cont [2/16] %v3673, 128
  %3684 = vxpose.xlu0.b32.cont [3/16] %v3675, 128
  %3685 = vxpose.xlu0.b32.cont [4/16] %v3677, 128
  %3686 = vxpose.xlu0.b32.cont [5/16] 0.0, 128
  %3687 = vxpose.xlu0.b32.cont [6/16] 0.0, 128
  %3688 = vxpose.xlu0.b32.cont [7/16] 0.0, 128
  %3689 = vxpose.xlu0.b32.cont [8/16] 0.0, 128
  %3690 = vxpose.xlu0.b32.cont [9/16] 0.0, 128
  %3691 = vxpose.xlu0.b32.cont [10/16] 0.0, 128
  %3692 = vxpose.xlu0.b32.cont [11/16] 0.0, 128
  %3693 = vxpose.xlu0.b32.cont [12/16] 0.0, 128
  %3694 = vxpose.xlu0.b32.cont [13/16] 0.0, 128
  %3695 = vxpose.xlu0.b32.cont [14/16] 0.0, 128
  %3696 = vxpose.xlu0.b32.cont [15/16] 0.0, 128
  %3697 = vxpose.xlu0.b32.end [16/16] 0.0, 128
  %v3698 = vpop.trf.xlu0
  %v3699 = vpop.trf.xlu0
  %v3700 = vpop.trf.xlu0
  %v3701 = vpop.trf.xlu0
  %v3702 = vpop.trf.xlu0
  %v3703 = vpop.trf.xlu0
  %v3704 = vpop.trf.xlu0
  %v3705 = vpop.trf.xlu0
  %v3706 = vpop.trf.xlu0
  %v3707 = vpop.trf.xlu0
  %v3708 = vpop.trf.xlu0
  %v3709 = vpop.trf.xlu0
  %v3710 = vpop.trf.xlu0
  %v3711 = vpop.trf.xlu0
  %v3712 = vpop.trf.xlu0
  %v3713 = vpop.trf.xlu0
  %v3715 = vsel %vm241, %v3698, 0
  %3717 = vmatprep.subr.mxu0 0.0
  %3718 = vmatpush1.msra.mxu0 %v3656
  %3719 = vmatprep.subr.mxu0 0.0
  %3720 = vmatpush1.msra.mxu0 %v3657
  %3721 = vmatprep.subr.mxu0 0.0
  %3722 = vmatpush1.msra.mxu0 %v3658
  %3723 = vmatprep.subr.mxu0 0.0
  %3724 = vmatpush1.msra.mxu0 %v3659
  %3725 = vmatprep.subr.mxu0 0.0
  %3726 = vmatpush1.msra.mxu0 0.0
  %3727 = vmatprep.subr.mxu0 0.0
  %3728 = vmatpush1.msra.mxu0 0.0
  %3729 = vmatprep.subr.mxu0 0.0
  %3730 = vmatpush1.msra.mxu0 0.0
  %3731 = vmatprep.subr.mxu0 0.0
  %3732 = vmatpush1.msra.mxu0 0.0
  %3733 = vmatprep.subr.mxu0 0.0
  %3734 = vmatpush1.msra.mxu0 0.0
  %3735 = vmatprep.subr.mxu0 0.0
  %3736 = vmatpush1.msra.mxu0 0.0
  %3737 = vmatprep.subr.mxu0 0.0
  %3738 = vmatpush1.msra.mxu0 0.0
  %3739 = vmatprep.subr.mxu0 0.0
  %3740 = vmatpush1.msra.mxu0 0.0
  %3741 = vmatprep.subr.mxu0 0.0
  %3742 = vmatpush1.msra.mxu0 0.0
  %3743 = vmatprep.subr.mxu0 0.0
  %3744 = vmatpush1.msra.mxu0 0.0
  %3745 = vmatprep.subr.mxu0 0.0
  %3746 = vmatpush1.msra.mxu0 0.0
  %3747 = vmatprep.subr.mxu0 0.0
  %3748 = vmatpush1.msra.mxu0 0.0
  %3749 = vmatprep.subr.mxu0 0.0
  %3750 = vmatpush1.msra.mxu0 0.0
  %3751 = vmatprep.subr.mxu0 0.0
  %3752 = vmatpush1.msra.mxu0 0.0
  %3753 = vmatprep.subr.mxu0 0.0
  %3754 = vmatpush1.msra.mxu0 0.0
  %3755 = vmatprep.subr.mxu0 0.0
  %3756 = vmatpush1.msra.mxu0 0.0
  %3757 = vmatprep.subr.mxu0 0.0
  %3758 = vmatpush1.msra.mxu0 0.0
  %3759 = vmatprep.subr.mxu0 0.0
  %3760 = vmatpush1.msra.mxu0 0.0
  %3761 = vmatprep.subr.mxu0 0.0
  %3762 = vmatpush1.msra.mxu0 0.0
  %3763 = vmatprep.subr.mxu0 0.0
  %3764 = vmatpush1.msra.mxu0 0.0
  %3765 = vmatprep.subr.mxu0 0.0
  %3766 = vmatpush1.msra.mxu0 0.0
  %3767 = vmatprep.subr.mxu0 0.0
  %3768 = vmatpush1.msra.mxu0 0.0
  %3769 = vmatprep.subr.mxu0 0.0
  %3770 = vmatpush1.msra.mxu0 0.0
  %3771 = vmatprep.subr.mxu0 0.0
  %3772 = vmatpush1.msra.mxu0 0.0
  %3773 = vmatprep.subr.mxu0 0.0
  %3774 = vmatpush1.msra.mxu0 0.0
  %3775 = vmatprep.subr.mxu0 0.0
  %3776 = vmatpush1.msra.mxu0 0.0
  %3777 = vmatprep.subr.mxu0 0.0
  %3778 = vmatpush1.msra.mxu0 0.0
  %3779 = vmatprep.subr.mxu0 0.0
  %3780 = vmatpush1.msra.mxu0 0.0
  %3781 = vmatprep.mubr.f32.mxu0 0.0
  %3782 = vmatmul.mubr.f32.gmra.mrb[0].mxu0 %v3715
  %v3783 = vpop.f32.mrb[0].mxu0
  %v3784 = vadd.f32 %v3664, %v3783
  %v3785 = vpop.f32.mrb[0].mxu0
  %3786 = vdwg.mxu0
  %v3787 = vtanh.pop %v3784
  %3788 = vst.msk [vmem:[#allocation2 + $0x7] sm:$0xf] %vm1320, %v3787
  %v3789 = vld [vmem:[%s2 + $0x50] sm:$0xff]
  %v3790 = vld [vmem:[#allocation2] sm:$0xff]
  %v3791 = vld [vmem:[#allocation2 + $0x8] sm:$0x7]
  %vm3792 = vcmask 89088
  %v3794 = vsel %vm3792, %v3789, 0
  %vm3796 = vcmask 1042432
  %v3798 = vsel %vm3796, %v3791, 0
  %3800 = vmatprep.subr.mxu0 0.0
  %3801 = vmatpush1.msra.mxu0 %v3790
  %3802 = vmatprep.subr.mxu0 0.0
  %3803 = vmatpush1.msra.mxu0 %v3798
  %3804 = vmatprep.subr.mxu0 0.0
  %3805 = vmatpush1.msra.mxu0 0.0
  %3806 = vmatprep.subr.mxu0 0.0
  %3807 = vmatpush1.msra.mxu0 0.0
  %3808 = vmatprep.subr.mxu0 0.0
  %3809 = vmatpush1.msra.mxu0 0.0
  %3810 = vmatprep.subr.mxu0 0.0
  %3811 = vmatpush1.msra.mxu0 0.0
  %3812 = vmatprep.subr.mxu0 0.0
  %3813 = vmatpush1.msra.mxu0 0.0
  %3814 = vmatprep.subr.mxu0 0.0
  %3815 = vmatpush1.msra.mxu0 0.0
  %3816 = vmatprep.subr.mxu0 0.0
  %3817 = vmatpush1.msra.mxu0 0.0
  %3818 = vmatprep.subr.mxu0 0.0
  %3819 = vmatpush1.msra.mxu0 0.0
  %3820 = vmatprep.subr.mxu0 0.0
  %3821 = vmatpush1.msra.mxu0 0.0
  %3822 = vmatprep.subr.mxu0 0.0
  %3823 = vmatpush1.msra.mxu0 0.0
  %3824 = vmatprep.subr.mxu0 0.0
  %3825 = vmatpush1.msra.mxu0 0.0
  %3826 = vmatprep.subr.mxu0 0.0
  %3827 = vmatpush1.msra.mxu0 0.0
  %3828 = vmatprep.subr.mxu0 0.0
  %3829 = vmatpush1.msra.mxu0 0.0
  %3830 = vmatprep.subr.mxu0 0.0
  %3831 = vmatpush1.msra.mxu0 0.0
  %3832 = vmatprep.subr.mxu0 0.0
  %3833 = vmatpush1.msra.mxu0 0.0
  %3834 = vmatprep.subr.mxu0 0.0
  %3835 = vmatpush1.msra.mxu0 0.0
  %3836 = vmatprep.subr.mxu0 0.0
  %3837 = vmatpush1.msra.mxu0 0.0
  %3838 = vmatprep.subr.mxu0 0.0
  %3839 = vmatpush1.msra.mxu0 0.0
  %3840 = vmatprep.subr.mxu0 0.0
  %3841 = vmatpush1.msra.mxu0 0.0
  %3842 = vmatprep.subr.mxu0 0.0
  %3843 = vmatpush1.msra.mxu0 0.0
  %3844 = vmatprep.subr.mxu0 0.0
  %3845 = vmatpush1.msra.mxu0 0.0
  %3846 = vmatprep.subr.mxu0 0.0
  %3847 = vmatpush1.msra.mxu0 0.0
  %3848 = vmatprep.subr.mxu0 0.0
  %3849 = vmatpush1.msra.mxu0 0.0
  %3850 = vmatprep.subr.mxu0 0.0
  %3851 = vmatpush1.msra.mxu0 0.0
  %3852 = vmatprep.subr.mxu0 0.0
  %3853 = vmatpush1.msra.mxu0 0.0
  %3854 = vmatprep.subr.mxu0 0.0
  %3855 = vmatpush1.msra.mxu0 0.0
  %3856 = vmatprep.subr.mxu0 0.0
  %3857 = vmatpush1.msra.mxu0 0.0
  %3858 = vmatprep.subr.mxu0 0.0
  %3859 = vmatpush1.msra.mxu0 0.0
  %3860 = vmatprep.subr.mxu0 0.0
  %3861 = vmatpush1.msra.mxu0 0.0
  %3862 = vmatprep.subr.mxu0 0.0
  %3863 = vmatpush1.msra.mxu0 0.0
  %3864 = vmatprep.mubr.f32.mxu0 0.0
  %3865 = vmatmul.mubr.f32.gmra.mrb[0].mxu0 %v3794
  %v3866 = vpop.f32.mrb[0].mxu0
  %v3867 = vadd.f32 0.0, %v3866
  %v3868 = vpop.f32.mrb[0].mxu0
  %3869 = vdwg.mxu0
  %v3870 = vadd.f32 %v198, %v3867
  %v3871 = vmul.f32 %v3870, 0.2
  %v3872 = vmax.f32 %v3870, %v3871
  %v3873 = vld [vmem:[%s3 + $0x140] sm:$0xff]
  %v3875 = vsel %vm1406, %v3873, 0
  %3877 = vmatprep.subr.mxu0 0.0
  %3878 = vmatpush1.msra.mxu0 %v3872
  %3879 = vmatprep.subr.mxu0 0.0
  %3880 = vmatpush1.msra.mxu0 0.0
  %3881 = vmatprep.subr.mxu0 0.0
  %3882 = vmatpush1.msra.mxu0 0.0
  %3883 = vmatprep.subr.mxu0 0.0
  %3884 = vmatpush1.msra.mxu0 0.0
  %3885 = vmatprep.subr.mxu0 0.0
  %3886 = vmatpush1.msra.mxu0 0.0
  %3887 = vmatprep.subr.mxu0 0.0
  %3888 = vmatpush1.msra.mxu0 0.0
  %3889 = vmatprep.subr.mxu0 0.0
  %3890 = vmatpush1.msra.mxu0 0.0
  %3891 = vmatprep.subr.mxu0 0.0
  %3892 = vmatpush1.msra.mxu0 0.0
  %3893 = vmatprep.subr.mxu0 0.0
  %3894 = vmatpush1.msra.mxu0 0.0
  %3895 = vmatprep.subr.mxu0 0.0
  %3896 = vmatpush1.msra.mxu0 0.0
  %3897 = vmatprep.subr.mxu0 0.0
  %3898 = vmatpush1.msra.mxu0 0.0
  %3899 = vmatprep.subr.mxu0 0.0
  %3900 = vmatpush1.msra.mxu0 0.0
  %3901 = vmatprep.subr.mxu0 0.0
  %3902 = vmatpush1.msra.mxu0 0.0
  %3903 = vmatprep.subr.mxu0 0.0
  %3904 = vmatpush1.msra.mxu0 0.0
  %3905 = vmatprep.subr.mxu0 0.0
  %3906 = vmatpush1.msra.mxu0 0.0
  %3907 = vmatprep.subr.mxu0 0.0
  %3908 = vmatpush1.msra.mxu0 0.0
  %3909 = vmatprep.subr.mxu0 0.0
  %3910 = vmatpush1.msra.mxu0 0.0
  %3911 = vmatprep.subr.mxu0 0.0
  %3912 = vmatpush1.msra.mxu0 0.0
  %3913 = vmatprep.subr.mxu0 0.0
  %3914 = vmatpush1.msra.mxu0 0.0
  %3915 = vmatprep.subr.mxu0 0.0
  %3916 = vmatpush1.msra.mxu0 0.0
  %3917 = vmatprep.subr.mxu0 0.0
  %3918 = vmatpush1.msra.mxu0 0.0
  %3919 = vmatprep.subr.mxu0 0.0
  %3920 = vmatpush1.msra.mxu0 0.0
  %3921 = vmatprep.subr.mxu0 0.0
  %3922 = vmatpush1.msra.mxu0 0.0
  %3923 = vmatprep.subr.mxu0 0.0
  %3924 = vmatpush1.msra.mxu0 0.0
  %3925 = vmatprep.subr.mxu0 0.0
  %3926 = vmatpush1.msra.mxu0 0.0
  %3927 = vmatprep.subr.mxu0 0.0
  %3928 = vmatpush1.msra.mxu0 0.0
  %3929 = vmatprep.subr.mxu0 0.0
  %3930 = vmatpush1.msra.mxu0 0.0
  %3931 = vmatprep.subr.mxu0 0.0
  %3932 = vmatpush1.msra.mxu0 0.0
  %3933 = vmatprep.subr.mxu0 0.0
  %3934 = vmatpush1.msra.mxu0 0.0
  %3935 = vmatprep.subr.mxu0 0.0
  %3936 = vmatpush1.msra.mxu0 0.0
  %3937 = vmatprep.subr.mxu0 0.0
  %3938 = vmatpush1.msra.mxu0 0.0
  %3939 = vmatprep.subr.mxu0 0.0
  %3940 = vmatpush1.msra.mxu0 0.0
  %3941 = vmatprep.mubr.f32.mxu0 0.0
  %3942 = vmatmul.mubr.f32.gmra.mrb[0].mxu0 %v3875
  %v3943 = vpop.f32.mrb[0].mxu0
  %v3944 = vadd.f32 0.0, %v3943
  %v3945 = vpop.f32.mrb[0].mxu0
  %3946 = vdwg.mxu0
  %v3947 = vsel %vm339, %v3944, 0.0
  %3948 = vadd.xlane.f32.xlu0 %v3947
  %v3949 = vpop.xlane.xlu0 %3948
  %v3950 = vmul.f32 %v3949, %v352
  %v3951 = vmul.f32 %v3944, %v3944
  %v3952 = vsel %vm339, %v3951, 0.0
  %3953 = vadd.xlane.f32.xlu0 %v3952
  %v3954 = vpop.xlane.xlu0 %3953
  %v3955 = vmul.f32 %v3954, %v352
  %v3956 = vmul.f32 %v3950, %v3950
  %v3957 = vsub.f32 %v3955, %v3956
  %v3958 = vld [vmem:[%s4 + $0x50] sm:$0xff]
  %v3959 = vadd.f32 %v3957, 0.8
  %v3960 = vrsqrt.pop %v3959
  %v3961 = vmul.f32 %v3958, %v3960
  %v3962 = vmul.f32 %v3950, %v3961
  %3964 = vrot.lane.b32.xlu0 %v3962, 4
  %v3965 = vpop.permute.xlu0 %3964
  %v3967 = vsub.f32 %v3958, %v3965
  %3969 = vset.pattern.permute.xlu0 0
  %3970 = vperm.xlu0 %3969, %v3961
  %v3971 = vpop.permute.xlu0 %3970
  %v3973 = vmul.f32 %v3944, %v3971
  %3975 = vset.pattern.permute.xlu0 4
  %3976 = vperm.xlu0 %3975, %v3967
  %v3977 = vpop.permute.xlu0 %3976
  %v3979 = vadd.f32 %v3973, %v3977
  %v3980 = vmul.f32 %v3979, 0.2
  %v3981 = vmax.f32 %v3979, %v3980
  %v3982 = vld [vmem:[%s3 + $0x148] sm:$0xff]
  %v3984 = vsel %vm1406, %v3982, 0
  %3986 = vmatprep.subr.mxu0 0.0
  %3987 = vmatpush1.msra.mxu0 %v3981
  %3988 = vmatprep.subr.mxu0 0.0
  %3989 = vmatpush1.msra.mxu0 0.0
  %3990 = vmatprep.subr.mxu0 0.0
  %3991 = vmatpush1.msra.mxu0 0.0
  %3992 = vmatprep.subr.mxu0 0.0
  %3993 = vmatpush1.msra.mxu0 0.0
  %3994 = vmatprep.subr.mxu0 0.0
  %3995 = vmatpush1.msra.mxu0 0.0
  %3996 = vmatprep.subr.mxu0 0.0
  %3997 = vmatpush1.msra.mxu0 0.0
  %3998 = vmatprep.subr.mxu0 0.0
  %3999 = vmatpush1.msra.mxu0 0.0
  %4000 = vmatprep.subr.mxu0 0.0
  %4001 = vmatpush1.msra.mxu0 0.0
  %4002 = vmatprep.subr.mxu0 0.0
  %4003 = vmatpush1.msra.mxu0 0.0
  %4004 = vmatprep.subr.mxu0 0.0
  %4005 = vmatpush1.msra.mxu0 0.0
  %4006 = vmatprep.subr.mxu0 0.0
  %4007 = vmatpush1.msra.mxu0 0.0
  %4008 = vmatprep.subr.mxu0 0.0
  %4009 = vmatpush1.msra.mxu0 0.0
  %4010 = vmatprep.subr.mxu0 0.0
  %4011 = vmatpush1.msra.mxu0 0.0
  %4012 = vmatprep.subr.mxu0 0.0
  %4013 = vmatpush1.msra.mxu0 0.0
  %4014 = vmatprep.subr.mxu0 0.0
  %4015 = vmatpush1.msra.mxu0 0.0
  %4016 = vmatprep.subr.mxu0 0.0
  %4017 = vmatpush1.msra.mxu0 0.0
  %4018 = vmatprep.subr.mxu0 0.0
  %4019 = vmatpush1.msra.mxu0 0.0
  %4020 = vmatprep.subr.mxu0 0.0
  %4021 = vmatpush1.msra.mxu0 0.0
  %4022 = vmatprep.subr.mxu0 0.0
  %4023 = vmatpush1.msra.mxu0 0.0
  %4024 = vmatprep.subr.mxu0 0.0
  %4025 = vmatpush1.msra.mxu0 0.0
  %4026 = vmatprep.subr.mxu0 0.0
  %4027 = vmatpush1.msra.mxu0 0.0
  %4028 = vmatprep.subr.mxu0 0.0
  %4029 = vmatpush1.msra.mxu0 0.0
  %4030 = vmatprep.subr.mxu0 0.0
  %4031 = vmatpush1.msra.mxu0 0.0
  %4032 = vmatprep.subr.mxu0 0.0
  %4033 = vmatpush1.msra.mxu0 0.0
  %4034 = vmatprep.subr.mxu0 0.0
  %4035 = vmatpush1.msra.mxu0 0.0
  %4036 = vmatprep.subr.mxu0 0.0
  %4037 = vmatpush1.msra.mxu0 0.0
  %4038 = vmatprep.subr.mxu0 0.0
  %4039 = vmatpush1.msra.mxu0 0.0
  %4040 = vmatprep.subr.mxu0 0.0
  %4041 = vmatpush1.msra.mxu0 0.0
  %4042 = vmatprep.subr.mxu0 0.0
  %4043 = vmatpush1.msra.mxu0 0.0
  %4044 = vmatprep.subr.mxu0 0.0
  %4045 = vmatpush1.msra.mxu0 0.0
  %4046 = vmatprep.subr.mxu0 0.0
  %4047 = vmatpush1.msra.mxu0 0.0
  %4048 = vmatprep.subr.mxu0 0.0
  %4049 = vmatpush1.msra.mxu0 0.0
  %4050 = vmatprep.mubr.f32.mxu0 0.0
  %4051 = vmatmul.mubr.f32.gmra.mrb[0].mxu0 %v3984
  %v4052 = vpop.f32.mrb[0].mxu0
  %v4053 = vadd.f32 0.0, %v4052
  %v4054 = vpop.f32.mrb[0].mxu0
  %4055 = vdwg.mxu0
  %v4056 = vsel %vm339, %v4053, 0.0
  %4057 = vadd.xlane.f32.xlu0 %v4056
  %v4058 = vpop.xlane.xlu0 %4057
  %v4059 = vmul.f32 %v4058, %v352
  %v4060 = vmul.f32 %v4053, %v4053
  %v4061 = vsel %vm339, %v4060, 0.0
  %4062 = vadd.xlane.f32.xlu0 %v4061
  %v4063 = vpop.xlane.xlu0 %4062
  %v4064 = vmul.f32 %v4063, %v352
  %v4065 = vmul.f32 %v4059, %v4059
  %v4066 = vsub.f32 %v4064, %v4065
  %v4067 = vadd.f32 %v4066, 0.8
  %v4068 = vrsqrt.pop %v4067
  %v4069 = vmul.f32 %v3958, %v4068
  %v4070 = vmul.f32 %v4059, %v4069
  %4072 = vrot.lane.b32.xlu0 %v4070, 4
  %v4073 = vpop.permute.xlu0 %4072
  %v4075 = vsub.f32 %v3958, %v4073
  %4077 = vset.pattern.permute.xlu0 1
  %4078 = vperm.xlu0 %4077, %v4069
  %v4079 = vpop.permute.xlu0 %4078
  %v4081 = vmul.f32 %v4053, %v4079
  %4083 = vset.pattern.permute.xlu0 5
  %4084 = vperm.xlu0 %4083, %v4075
  %v4085 = vpop.permute.xlu0 %4084
  %v4087 = vadd.f32 %v4081, %v4085
  %v4088 = vmul.f32 %v4087, 0.2
  %v4089 = vmax.f32 %v4087, %v4088
  %v4090 = vld [vmem:[%s3 + $0x150] sm:$0xff]
  %v4092 = vsel %vm1406, %v4090, 0
  %4094 = vmatprep.subr.mxu0 0.0
  %4095 = vmatpush1.msra.mxu0 %v4089
  %4096 = vmatprep.subr.mxu0 0.0
  %4097 = vmatpush1.msra.mxu0 0.0
  %4098 = vmatprep.subr.mxu0 0.0
  %4099 = vmatpush1.msra.mxu0 0.0
  %4100 = vmatprep.subr.mxu0 0.0
  %4101 = vmatpush1.msra.mxu0 0.0
  %4102 = vmatprep.subr.mxu0 0.0
  %4103 = vmatpush1.msra.mxu0 0.0
  %4104 = vmatprep.subr.mxu0 0.0
  %4105 = vmatpush1.msra.mxu0 0.0
  %4106 = vmatprep.subr.mxu0 0.0
  %4107 = vmatpush1.msra.mxu0 0.0
  %4108 = vmatprep.subr.mxu0 0.0
  %4109 = vmatpush1.msra.mxu0 0.0
  %4110 = vmatprep.subr.mxu0 0.0
  %4111 = vmatpush1.msra.mxu0 0.0
  %4112 = vmatprep.subr.mxu0 0.0
  %4113 = vmatpush1.msra.mxu0 0.0
  %4114 = vmatprep.subr.mxu0 0.0
  %4115 = vmatpush1.msra.mxu0 0.0
  %4116 = vmatprep.subr.mxu0 0.0
  %4117 = vmatpush1.msra.mxu0 0.0
  %4118 = vmatprep.subr.mxu0 0.0
  %4119 = vmatpush1.msra.mxu0 0.0
  %4120 = vmatprep.subr.mxu0 0.0
  %4121 = vmatpush1.msra.mxu0 0.0
  %4122 = vmatprep.subr.mxu0 0.0
  %4123 = vmatpush1.msra.mxu0 0.0
  %4124 = vmatprep.subr.mxu0 0.0
  %4125 = vmatpush1.msra.mxu0 0.0
  %4126 = vmatprep.subr.mxu0 0.0
  %4127 = vmatpush1.msra.mxu0 0.0
  %4128 = vmatprep.subr.mxu0 0.0
  %4129 = vmatpush1.msra.mxu0 0.0
  %4130 = vmatprep.subr.mxu0 0.0
  %4131 = vmatpush1.msra.mxu0 0.0
  %4132 = vmatprep.subr.mxu0 0.0
  %4133 = vmatpush1.msra.mxu0 0.0
  %4134 = vmatprep.subr.mxu0 0.0
  %4135 = vmatpush1.msra.mxu0 0.0
  %4136 = vmatprep.subr.mxu0 0.0
  %4137 = vmatpush1.msra.mxu0 0.0
  %4138 = vmatprep.subr.mxu0 0.0
  %4139 = vmatpush1.msra.mxu0 0.0
  %4140 = vmatprep.subr.mxu0 0.0
  %4141 = vmatpush1.msra.mxu0 0.0
  %4142 = vmatprep.subr.mxu0 0.0
  %4143 = vmatpush1.msra.mxu0 0.0
  %4144 = vmatprep.subr.mxu0 0.0
  %4145 = vmatpush1.msra.mxu0 0.0
  %4146 = vmatprep.subr.mxu0 0.0
  %4147 = vmatpush1.msra.mxu0 0.0
  %4148 = vmatprep.subr.mxu0 0.0
  %4149 = vmatpush1.msra.mxu0 0.0
  %4150 = vmatprep.subr.mxu0 0.0
  %4151 = vmatpush1.msra.mxu0 0.0
  %4152 = vmatprep.subr.mxu0 0.0
  %4153 = vmatpush1.msra.mxu0 0.0
  %4154 = vmatprep.subr.mxu0 0.0
  %4155 = vmatpush1.msra.mxu0 0.0
  %4156 = vmatprep.subr.mxu0 0.0
  %4157 = vmatpush1.msra.mxu0 0.0
  %4158 = vmatprep.mubr.f32.mxu0 0.0
  %4159 = vmatmul.mubr.f32.gmra.mrb[0].mxu0 %v4092
  %v4160 = vpop.f32.mrb[0].mxu0
  %v4161 = vadd.f32 0.0, %v4160
  %v4162 = vpop.f32.mrb[0].mxu0
  %4163 = vdwg.mxu0
  %v4164 = vsel %vm339, %v4161, 0.0
  %4165 = vadd.xlane.f32.xlu0 %v4164
  %v4166 = vpop.xlane.xlu0 %4165
  %v4167 = vmul.f32 %v4166, %v352
  %v4168 = vmul.f32 %v4161, %v4161
  %v4169 = vsel %vm339, %v4168, 0.0
  %4170 = vadd.xlane.f32.xlu0 %v4169
  %v4171 = vpop.xlane.xlu0 %4170
  %v4172 = vmul.f32 %v4171, %v352
  %v4173 = vmul.f32 %v4167, %v4167
  %v4174 = vsub.f32 %v4172, %v4173
  %v4175 = vadd.f32 %v4174, 0.8
  %v4176 = vrsqrt.pop %v4175
  %v4177 = vmul.f32 %v3958, %v4176
  %v4178 = vmul.f32 %v4167, %v4177
  %4180 = vrot.lane.b32.xlu0 %v4178, 4
  %v4181 = vpop.permute.xlu0 %4180
  %v4183 = vsub.f32 %v3958, %v4181
  %4185 = vset.pattern.permute.xlu0 2
  %4186 = vperm.xlu0 %4185, %v4177
  %v4187 = vpop.permute.xlu0 %4186
  %v4189 = vmul.f32 %v4161, %v4187
  %4191 = vset.pattern.permute.xlu0 6
  %4192 = vperm.xlu0 %4191, %v4183
  %v4193 = vpop.permute.xlu0 %4192
  %v4195 = vadd.f32 %v4189, %v4193
  %v4196 = vmul.f32 %v4195, 0.2
  %v4197 = vmax.f32 %v4195, %v4196
  %v4198 = vld [vmem:[%s3 + $0x158] sm:$0xff]
  %v4200 = vsel %vm1406, %v4198, 0
  %4202 = vmatprep.subr.mxu0 0.0
  %4203 = vmatpush1.msra.mxu0 %v4197
  %4204 = vmatprep.subr.mxu0 0.0
  %4205 = vmatpush1.msra.mxu0 0.0
  %4206 = vmatprep.subr.mxu0 0.0
  %4207 = vmatpush1.msra.mxu0 0.0
  %4208 = vmatprep.subr.mxu0 0.0
  %4209 = vmatpush1.msra.mxu0 0.0
  %4210 = vmatprep.subr.mxu0 0.0
  %4211 = vmatpush1.msra.mxu0 0.0
  %4212 = vmatprep.subr.mxu0 0.0
  %4213 = vmatpush1.msra.mxu0 0.0
  %4214 = vmatprep.subr.mxu0 0.0
  %4215 = vmatpush1.msra.mxu0 0.0
  %4216 = vmatprep.subr.mxu0 0.0
  %4217 = vmatpush1.msra.mxu0 0.0
  %4218 = vmatprep.subr.mxu0 0.0
  %4219 = vmatpush1.msra.mxu0 0.0
  %4220 = vmatprep.subr.mxu0 0.0
  %4221 = vmatpush1.msra.mxu0 0.0
  %4222 = vmatprep.subr.mxu0 0.0
  %4223 = vmatpush1.msra.mxu0 0.0
  %4224 = vmatprep.subr.mxu0 0.0
  %4225 = vmatpush1.msra.mxu0 0.0
  %4226 = vmatprep.subr.mxu0 0.0
  %4227 = vmatpush1.msra.mxu0 0.0
  %4228 = vmatprep.subr.mxu0 0.0
  %4229 = vmatpush1.msra.mxu0 0.0
  %4230 = vmatprep.subr.mxu0 0.0
  %4231 = vmatpush1.msra.mxu0 0.0
  %4232 = vmatprep.subr.mxu0 0.0
  %4233 = vmatpush1.msra.mxu0 0.0
  %4234 = vmatprep.subr.mxu0 0.0
  %4235 = vmatpush1.msra.mxu0 0.0
  %4236 = vmatprep.subr.mxu0 0.0
  %4237 = vmatpush1.msra.mxu0 0.0
  %4238 = vmatprep.subr.mxu0 0.0
  %4239 = vmatpush1.msra.mxu0 0.0
  %4240 = vmatprep.subr.mxu0 0.0
  %4241 = vmatpush1.msra.mxu0 0.0
  %4242 = vmatprep.subr.mxu0 0.0
  %4243 = vmatpush1.msra.mxu0 0.0
  %4244 = vmatprep.subr.mxu0 0.0
  %4245 = vmatpush1.msra.mxu0 0.0
  %4246 = vmatprep.subr.mxu0 0.0
  %4247 = vmatpush1.msra.mxu0 0.0
  %4248 = vmatprep.subr.mxu0 0.0
  %4249 = vmatpush1.msra.mxu0 0.0
  %4250 = vmatprep.subr.mxu0 0.0
  %4251 = vmatpush1.msra.mxu0 0.0
  %4252 = vmatprep.subr.mxu0 0.0
  %4253 = vmatpush1.msra.mxu0 0.0
  %4254 = vmatprep.subr.mxu0 0.0
  %4255 = vmatpush1.msra.mxu0 0.0
  %4256 = vmatprep.subr.mxu0 0.0
  %4257 = vmatpush1.msra.mxu0 0.0
  %4258 = vmatprep.subr.mxu0 0.0
  %4259 = vmatpush1.msra.mxu0 0.0
  %4260 = vmatprep.subr.mxu0 0.0
  %4261 = vmatpush1.msra.mxu0 0.0
  %4262 = vmatprep.subr.mxu0 0.0
  %4263 = vmatpush1.msra.mxu0 0.0
  %4264 = vmatprep.subr.mxu0 0.0
  %4265 = vmatpush1.msra.mxu0 0.0
  %4266 = vmatprep.mubr.f32.mxu0 0.0
  %4267 = vmatmul.mubr.f32.gmra.mrb[0].mxu0 %v4200
  %v4268 = vpop.f32.mrb[0].mxu0
  %v4269 = vadd.f32 0.0, %v4268
  %v4270 = vpop.f32.mrb[0].mxu0
  %4271 = vdwg.mxu0
  %v4272 = vsel %vm339, %v4269, 0.0
  %4273 = vadd.xlane.f32.xlu0 %v4272
  %v4274 = vpop.xlane.xlu0 %4273
  %v4275 = vmul.f32 %v4274, %v352
  %v4276 = vmul.f32 %v4269, %v4269
  %v4277 = vsel %vm339, %v4276, 0.0
  %4278 = vadd.xlane.f32.xlu0 %v4277
  %v4279 = vpop.xlane.xlu0 %4278
  %v4280 = vmul.f32 %v4279, %v352
  %v4281 = vmul.f32 %v4275, %v4275
  %v4282 = vsub.f32 %v4280, %v4281
  %v4283 = vadd.f32 %v4282, 0.8
  %v4284 = vrsqrt.pop %v4283
  %v4285 = vmul.f32 %v3958, %v4284
  %v4286 = vmul.f32 %v4275, %v4285
  %4288 = vrot.lane.b32.xlu0 %v4286, 4
  %v4289 = vpop.permute.xlu0 %4288
  %v4291 = vsub.f32 %v3958, %v4289
  %4293 = vset.pattern.permute.xlu0 3
  %4294 = vperm.xlu0 %4293, %v4285
  %v4295 = vpop.permute.xlu0 %4294
  %v4297 = vmul.f32 %v4269, %v4295
  %4299 = vset.pattern.permute.xlu0 7
  %4300 = vperm.xlu0 %4299, %v4291
  %v4301 = vpop.permute.xlu0 %4300
  %v4303 = vadd.f32 %v4297, %v4301
  %v4304 = vmul.f32 %v4303, 0.2
  %v4305 = vmax.f32 %v4303, %v4304
  %v4306 = vld [vmem:[%s5 + $0xa] sm:$0x1]
  %4308 = vset.pattern.permute.xlu0 0
  %4309 = vperm.xlu0 %4308, %v4306
  %v4310 = vpop.permute.xlu0 %4309
  %4313 = vrot.lane.b32.xlu0 %v3958, 120
  %v4314 = vpop.permute.xlu0 %4313
  %4316 = vxpose.xlu0.b32.start [1/16] %v4314, 128
  %4317 = vxpose.xlu0.b32.cont [2/16] 0.0, 128
  %4318 = vxpose.xlu0.b32.cont [3/16] 0.0, 128
  %4319 = vxpose.xlu0.b32.cont [4/16] 0.0, 128
  %4320 = vxpose.xlu0.b32.cont [5/16] 0.0, 128
  %4321 = vxpose.xlu0.b32.cont [6/16] 0.0, 128
  %4322 = vxpose.xlu0.b32.cont [7/16] 0.0, 128
  %4323 = vxpose.xlu0.b32.cont [8/16] 0.0, 128
  %4324 = vxpose.xlu0.b32.cont [9/16] 0.0, 128
  %4325 = vxpose.xlu0.b32.cont [10/16] 0.0, 128
  %4326 = vxpose.xlu0.b32.cont [11/16] 0.0, 128
  %4327 = vxpose.xlu0.b32.cont [12/16] 0.0, 128
  %4328 = vxpose.xlu0.b32.cont [13/16] 0.0, 128
  %4329 = vxpose.xlu0.b32.cont [14/16] 0.0, 128
  %4330 = vxpose.xlu0.b32.cont [15/16] 0.0, 128
  %4331 = vxpose.xlu0.b32.end [16/16] 0.0, 128
  %v4332 = vpop.trf.xlu0
  %v4333 = vpop.trf.xlu0
  %v4334 = vpop.trf.xlu0
  %v4335 = vpop.trf.xlu0
  %v4336 = vpop.trf.xlu0
  %v4337 = vpop.trf.xlu0
  %v4338 = vpop.trf.xlu0
  %v4339 = vpop.trf.xlu0
  %v4340 = vpop.trf.xlu0
  %v4341 = vpop.trf.xlu0
  %v4342 = vpop.trf.xlu0
  %v4343 = vpop.trf.xlu0
  %v4344 = vpop.trf.xlu0
  %v4345 = vpop.trf.xlu0
  %v4346 = vpop.trf.xlu0
  %v4347 = vpop.trf.xlu0
  %v4349 = vsel %vm1406, %v4332, 0
  %4351 = vmatprep.subr.mxu0 0.0
  %4352 = vmatpush1.msra.mxu0 %v4305
  %4353 = vmatprep.subr.mxu0 0.0
  %4354 = vmatpush1.msra.mxu0 0.0
  %4355 = vmatprep.subr.mxu0 0.0
  %4356 = vmatpush1.msra.mxu0 0.0
  %4357 = vmatprep.subr.mxu0 0.0
  %4358 = vmatpush1.msra.mxu0 0.0
  %4359 = vmatprep.subr.mxu0 0.0
  %4360 = vmatpush1.msra.mxu0 0.0
  %4361 = vmatprep.subr.mxu0 0.0
  %4362 = vmatpush1.msra.mxu0 0.0
  %4363 = vmatprep.subr.mxu0 0.0
  %4364 = vmatpush1.msra.mxu0 0.0
  %4365 = vmatprep.subr.mxu0 0.0
  %4366 = vmatpush1.msra.mxu0 0.0
  %4367 = vmatprep.subr.mxu0 0.0
  %4368 = vmatpush1.msra.mxu0 0.0
  %4369 = vmatprep.subr.mxu0 0.0
  %4370 = vmatpush1.msra.mxu0 0.0
  %4371 = vmatprep.subr.mxu0 0.0
  %4372 = vmatpush1.msra.mxu0 0.0
  %4373 = vmatprep.subr.mxu0 0.0
  %4374 = vmatpush1.msra.mxu0 0.0
  %4375 = vmatprep.subr.mxu0 0.0
  %4376 = vmatpush1.msra.mxu0 0.0
  %4377 = vmatprep.subr.mxu0 0.0
  %4378 = vmatpush1.msra.mxu0 0.0
  %4379 = vmatprep.subr.mxu0 0.0
  %4380 = vmatpush1.msra.mxu0 0.0
  %4381 = vmatprep.subr.mxu0 0.0
  %4382 = vmatpush1.msra.mxu0 0.0
  %4383 = vmatprep.subr.mxu0 0.0
  %4384 = vmatpush1.msra.mxu0 0.0
  %4385 = vmatprep.subr.mxu0 0.0
  %4386 = vmatpush1.msra.mxu0 0.0
  %4387 = vmatprep.subr.mxu0 0.0
  %4388 = vmatpush1.msra.mxu0 0.0
  %4389 = vmatprep.subr.mxu0 0.0
  %4390 = vmatpush1.msra.mxu0 0.0
  %4391 = vmatprep.subr.mxu0 0.0
  %4392 = vmatpush1.msra.mxu0 0.0
  %4393 = vmatprep.subr.mxu0 0.0
  %4394 = vmatpush1.msra.mxu0 0.0
  %4395 = vmatprep.subr.mxu0 0.0
  %4396 = vmatpush1.msra.mxu0 0.0
  %4397 = vmatprep.subr.mxu0 0.0
  %4398 = vmatpush1.msra.mxu0 0.0
  %4399 = vmatprep.subr.mxu0 0.0
  %4400 = vmatpush1.msra.mxu0 0.0
  %4401 = vmatprep.subr.mxu0 0.0
  %4402 = vmatpush1.msra.mxu0 0.0
  %4403 = vmatprep.subr.mxu0 0.0
  %4404 = vmatpush1.msra.mxu0 0.0
  %4405 = vmatprep.subr.mxu0 0.0
  %4406 = vmatpush1.msra.mxu0 0.0
  %4407 = vmatprep.subr.mxu0 0.0
  %4408 = vmatpush1.msra.mxu0 0.0
  %4409 = vmatprep.subr.mxu0 0.0
  %4410 = vmatpush1.msra.mxu0 0.0
  %4411 = vmatprep.subr.mxu0 0.0
  %4412 = vmatpush1.msra.mxu0 0.0
  %4413 = vmatprep.subr.mxu0 0.0
  %4414 = vmatpush1.msra.mxu0 0.0
  %4415 = vmatprep.mubr.f32.mxu0 0.0
  %4416 = vmatmul.mubr.f32.gmra.mrb[0].mxu0 %v4349
  %v4417 = vpop.f32.mrb[0].mxu0
  %v4418 = vadd.f32 %v4310, %v4417
  %v4419 = vpop.f32.mrb[0].mxu0
  %4420 = vdwg.mxu0
  %v4421 = vtanh.pop %v4418
  %vm4422 = vcmask 25601
  %4423 = vst.msk [vmem:[%s6 - $0x1] sm:$0x2] %vm4422, %v1319
  %vm4424 = vcmask 26626
  %4425 = vst.msk [vmem:[%s6 - $0x1] sm:$0x4] %vm4424, %v3787
  %4426 = vst.msk [vmem:[%s6 + $0x2] sm:$0x1] %vm23, %v2587
  %4427 = vst.msk [vmem:[%s6 + $0x3] sm:$0x1] %vm23, %v1954
  %4428 = vst.msk [vmem:[%s6 + $0x4] sm:$0x1] %vm23, %v3787
  %vm4429 = vcmask 27651
  %4430 = vst.msk [vmem:[%s6 + $0x2] sm:$0x8] %vm4429, %v3787
  %4431 = vst.msk [vmem:[%s6 + $0x4] sm:$0x4] %vm4424, %v1319
  %4432 = vst.msk [vmem:[%s6 + $0x7] sm:$0x1] %vm23, %v1319
  %4433 = vst.msk [vmem:[%s6 + $0x7] sm:$0x2] %vm4422, %v3787
  %4434 = vst.msk [vmem:[%s6 + $0x6] sm:$0x8] %vm4429, %v1319
  %4435 = vst.msk [vmem:[%s6 + $0xa] sm:$0x1] %vm23, %v4421
  // Predicated region
  $region26: #{cfgan_forward.1} parent=0 // pred_check
    _
  $region27: #{cfgan_forward.1} parent=0 // pred_check_branch
    %4437 = sbr.rel (0) target = $region29
  $region28: #{cfgan_forward.1} parent=0 // pred_region
    _
  $region29: #{cfgan_forward.1} parent=0 // pred_fallthru
    _
  // Predicated region
  $region30: #{cfgan_forward.1} parent=0 // pred_check
    _
  $region31: #{cfgan_forward.1} parent=0 // pred_check_branch
    %4439 = sbr.rel (0) target = $region33
  $region32: #{cfgan_forward.1} parent=0 // pred_region
    _
  $region33: #{cfgan_forward.1} parent=0 // pred_fallthru
    _

</llo_original>
